<compile_context>
chip_gen: v6e
topology: v6e:2x2x1
jax: 0.10.0
libtpu: 0.0.40
codegen_flags: <defaults>
</compile_context>

<pallas_src>
import numpy as np
import jax
import jax.numpy as jnp
from jax import lax
from jax.experimental import pallas as pl
from jax.experimental.pallas import tpu as pltpu


# ----------------------------------------------------------------------------
# Host-side weight packing: HWIO (3,3,Cin,Cout) -> 3 "banded" slabs, one per kernel
# row, that fold the 3 horizontal taps and the zero column padding into the weight:
#   out[h] = x[h-1] @ band0 + x[h] @ band1 + x[h+1] @ band2 + bias     (x[-1]=x[H]=0)
# Two samples are paired along the lane axis, so each slab is duplicated block-
# diagonally: kron(I2, band) with shape (2*W*Cin, 2*W*Cout).
# ----------------------------------------------------------------------------
def _pack_conv(w_hwio, bias, w_spatial):
    _, _, cin, cout = w_hwio.shape
    shifts = {0: 1, 1: 0, 2: -1}  # kw -> diagonal offset of the column-selection matrix
    bands = []
    for kh in range(3):
        band = jnp.zeros((w_spatial * cin, w_spatial * cout), jnp.float32)
        for kw in range(3):
            sel = jnp.eye(w_spatial, k=shifts[kw], dtype=jnp.float32)
            band = band + jnp.kron(sel, w_hwio[kh, kw])
        band = jnp.kron(jnp.eye(2, dtype=jnp.float32), band)   # pair 2 samples on lanes
        bands.append(band)
    wband = jnp.stack(bands, axis=0)                            # (3, 2*W*Cin, 2*W*Cout)
    brow = jnp.tile(bias, (2 * w_spatial,))[None, :]            # (1, 2*W*Cout)
    return wband, brow


def pack_params(params, H, W):
    Wo = W // 2
    w0, b0 = _pack_conv(params["conv0_w"], params["conv0_b"], W)
    packed = [w0, b0]
    for blk in ("block1", "block2"):
        for cv in ("conv1", "conv2"):
            wb, br = _pack_conv(params[f"{blk}_{cv}_w"], params[f"{blk}_{cv}_b"], Wo)
            packed += [wb, br]
    return tuple(packed)


# ----------------------------------------------------------------------------
# One-hot shift / selection constants (numpy -> baked as literals):
#   su/sd : per-sample row shift by +-1 with zero rows at the sample boundaries
#           (implements the conv zero row-padding entirely in vregs / on the MXU).
#   ra/rb/rc : maxpool row picks 2i-1 (clipped), 2i, 2i+1 with stride 2.
#   ca/cb/cc : maxpool column-group picks 2j-1 (clipped), 2j, 2j+1 with stride 2,
#              block-diagonal over the two lane-paired samples.
# ----------------------------------------------------------------------------
def _build_selectors(bb, H, W, C):
    Ho, Wo = H // 2, W // 2
    M0, M1 = bb * H, bb * Ho

    su0 = np.zeros((M0, M0), np.float32)
    sd0 = np.zeros((M0, M0), np.float32)
    for r in range(M0):
        if r % H != 0:
            su0[r, r - 1] = 1.0
        if r % H != H - 1:
            sd0[r, r + 1] = 1.0

    sub = np.zeros((M1, M1), np.float32)
    sdb = np.zeros((M1, M1), np.float32)
    for r in range(M1):
        if r % Ho != 0:
            sub[r, r - 1] = 1.0
        if r % Ho != Ho - 1:
            sdb[r, r + 1] = 1.0

    ra = np.zeros((M1, M0), np.float32)
    rb = np.zeros((M1, M0), np.float32)
    rc = np.zeros((M1, M0), np.float32)
    for r in range(M1):
        s, i = divmod(r, Ho)
        ra[r, s * H + max(2 * i - 1, 0)] = 1.0
        rb[r, s * H + 2 * i] = 1.0
        rc[r, s * H + 2 * i + 1] = 1.0

    L0, Lb = 2 * W * C, 2 * Wo * C
    ca = np.zeros((L0, Lb), np.float32)
    cb = np.zeros((L0, Lb), np.float32)
    cc = np.zeros((L0, Lb), np.float32)
    for s in range(2):
        for j in range(Wo):
            for c in range(C):
                col = s * Wo * C + j * C + c
                ca[s * W * C + max(2 * j - 1, 0) * C + c, col] = 1.0
                cb[s * W * C + (2 * j) * C + c, col] = 1.0
                cc[s * W * C + (2 * j + 1) * C + c, col] = 1.0
    return su0, sd0, sub, sdb, ra, rb, rc, ca, cb, cc


# ----------------------------------------------------------------------------
# Fused kernel: bb sample-pairs per grid step, everything stays in vregs.
# ----------------------------------------------------------------------------
def _conv3x3(x, su, sd, w_ref, brow):
    f32 = jnp.float32
    up = jnp.dot(su, x, preferred_element_type=f32)   # x[h-1], zero at sample tops
    dn = jnp.dot(sd, x, preferred_element_type=f32)   # x[h+1], zero at sample bottoms
    acc = brow + jnp.dot(up, w_ref[0], preferred_element_type=f32)
    acc = acc + jnp.dot(x, w_ref[1], preferred_element_type=f32)
    acc = acc + jnp.dot(dn, w_ref[2], preferred_element_type=f32)
    return acc


def _stack_kernel(x_ref, su0_ref, sd0_ref, w0_ref, b0_ref,
                  ra_ref, rb_ref, rc_ref, ca_ref, cb_ref, cc_ref,
                  sub_ref, sdb_ref,
                  w1a_ref, b1a_ref, w1b_ref, b1b_ref,
                  w2a_ref, b2a_ref, w2b_ref, b2b_ref,
                  o_ref):
    f32 = jnp.float32

    # ---- conv0 : (M0, 2*W*Cin) -> (M0, 2*W*C) ----
    y0 = _conv3x3(x_ref[...], su0_ref[...], sd0_ref[...], w0_ref, b0_ref[...])

    # ---- maxpool 3x3 / stride 2 / pad 1: one-hot selections + jnp.maximum ----
    rmax = jnp.maximum(
        jnp.maximum(jnp.dot(ra_ref[...], y0, preferred_element_type=f32),
                    jnp.dot(rb_ref[...], y0, preferred_element_type=f32)),
        jnp.dot(rc_ref[...], y0, preferred_element_type=f32))
    p = jnp.maximum(
        jnp.maximum(jnp.dot(rmax, ca_ref[...], preferred_element_type=f32),
                    jnp.dot(rmax, cb_ref[...], preferred_element_type=f32)),
        jnp.dot(rmax, cc_ref[...], preferred_element_type=f32))

    # ---- two Impala residual blocks (128-lane dense) ----
    su_b = sub_ref[...]
    sd_b = sdb_ref[...]
    for wa, ba, wb, bb in ((w1a_ref, b1a_ref, w1b_ref, b1b_ref),
                           (w2a_ref, b2a_ref, w2b_ref, b2b_ref)):
        t = _conv3x3(jnp.maximum(p, 0.0), su_b, sd_b, wa, ba[...])
        p = _conv3x3(jnp.maximum(t, 0.0), su_b, sd_b, wb, bb[...]) + p

    o_ref[...] = p


def _const_spec(a):
    nd = a.ndim
    return pl.BlockSpec(tuple(a.shape), lambda i: (0,) * nd)


def impala_residual_stack(x_nchw, packed, *, max_pairs_per_step=8):
    """x_nchw: (B, Cin, H, W) float32; packed: output of pack_params."""
    B0, Cin, H, W = x_nchw.shape
    assert H % 2 == 0 and W % 2 == 0
    C = packed[0].shape[2] // (2 * W)
    Ho, Wo = H // 2, W // 2

    # Pad batch to an even count so samples can be paired along lanes.
    B = B0 + (B0 % 2)
    if B != B0:
        x_nchw = jnp.concatenate(
            [x_nchw, jnp.zeros((1, Cin, H, W), x_nchw.dtype)], axis=0)
    P = B // 2                                    # number of lane-paired samples

    # Pairs per grid step: amortize per-step overhead / fill MXU M, but keep the grid
    # length >= 2 when the batch allows so v7x's two TensorCores both get work.
    bb = min(max_pairs_per_step, P)
    while P % bb:
        bb -= 1
    if P // bb == 1 and P >= 2:
        bb = bb // 2
        while P % bb:
            bb -= 1
    grid = P // bb
    if grid > 1 and ((bb * H) % 8 != 0 or (bb * Ho) % 8 != 0):
        bb, grid = P, 1                           # fall back to full-extent row block

    Lin, L0, Lb = 2 * W * Cin, 2 * W * C, 2 * Wo * C
    M0, M1 = bb * H, bb * Ho

    # NCHW -> lane-paired, row-stacked layout: (P*H, 2*W*Cin).
    x = jnp.transpose(x_nchw, (0, 2, 3, 1))       # (B, H, W, Cin)
    x = x.reshape(P, 2, H, W * Cin)
    x = jnp.transpose(x, (0, 2, 1, 3))            # (P, H, 2, W*Cin)
    x = x.reshape(P * H, Lin)

    sel = _build_selectors(bb, H, W, C)
    su0, sd0, sub, sdb, ra, rb, rc, ca, cb, cc = [jnp.asarray(s) for s in sel]

    in_specs = [
        pl.BlockSpec((M0, Lin), lambda i: (i, 0)),            # activations
        _const_spec(su0), _const_spec(sd0),
        _const_spec(packed[0]), _const_spec(packed[1]),       # conv0 bands + bias
        _const_spec(ra), _const_spec(rb), _const_spec(rc),
        _const_spec(ca), _const_spec(cb), _const_spec(cc),
        _const_spec(sub), _const_spec(sdb),
    ] + [_const_spec(a) for a in packed[2:]]                  # 4 block convs

    out_flat = pl.pallas_call(
        _stack_kernel,
        out_shape=jax.ShapeDtypeStruct((P * Ho, Lb), jnp.float32),
        grid=(grid,),
        in_specs=in_specs,
        out_specs=pl.BlockSpec((M1, Lb), lambda i: (i, 0)),
        compiler_params=pltpu.CompilerParams(dimension_semantics=("parallel",)),
    )(x, su0, sd0, packed[0], packed[1], ra, rb, rc, ca, cb, cc, sub, sdb, *packed[2:])

    # (P*Ho, 2*Wo*C) -> (B, C, Ho, Wo), then drop the batch pad (if any).
    out = out_flat.reshape(P, Ho, 2, Wo, C)
    out = jnp.transpose(out, (0, 2, 4, 1, 3))     # (P, 2, C, Ho, Wo)
    out = out.reshape(B, C, Ho, Wo)
    return out[:B0]


# ----------------------------------------------------------------------------
# Pure-JAX reference (correctness check only).
# ----------------------------------------------------------------------------
def impala_residual_stack_ref(x_nchw, params):
    x = jnp.transpose(x_nchw, (0, 2, 3, 1))

    def conv(x, w, b):
        y = lax.conv_general_dilated(
            x, w, (1, 1), "SAME",
            dimension_numbers=("NHWC", "HWIO", "NHWC"),
            precision=lax.Precision.HIGHEST)
        return y + b

    x = conv(x, params["conv0_w"], params["conv0_b"])
    x = lax.reduce_window(
        x, -jnp.inf, lax.max, (1, 3, 3, 1), (1, 2, 2, 1),
        ((0, 0), (1, 1), (1, 1), (0, 0)))
    for blk in ("block1", "block2"):
        y = conv(jax.nn.relu(x), params[f"{blk}_conv1_w"], params[f"{blk}_conv1_b"])
        x = conv(jax.nn.relu(y), params[f"{blk}_conv2_w"], params[f"{blk}_conv2_b"]) + x
    return jnp.transpose(x, (0, 3, 1, 2))


# ----------------------------------------------------------------------------
# Deterministic parameter init (PyTorch-like uniform(-1/sqrt(fan_in), +)).
# Conv weights are stored HWIO = (3, 3, Cin, Cout).
# ----------------------------------------------------------------------------
def init_params(key, in_channels, stack_channels):
    params = {}

    def conv_init(key, cin, cout):
        kw, kb = jax.random.split(key)
        bound = 1.0 / jnp.sqrt(cin * 3.0 * 3.0)
        w = jax.random.uniform(kw, (3, 3, cin, cout), jnp.float32, -bound, bound)
        b = jax.random.uniform(kb, (cout,), jnp.float32, -bound, bound)
        return w, b

    names = [
        ("conv0", in_channels),
        ("block1_conv1", stack_channels),
        ("block1_conv2", stack_channels),
        ("block2_conv1", stack_channels),
        ("block2_conv2", stack_channels),
    ]
    for i, (name, cin) in enumerate(names):
        w, b = conv_init(jax.random.fold_in(key, i), cin, stack_channels)
        params[f"{name}_w"] = w
        params[f"{name}_b"] = b
    return params


if __name__ == "__main__":
    B, Cin, H, W = 2, 4, 16, 16
    stack_channels = 8

    key = jax.random.PRNGKey(0)
    kx, kp = jax.random.split(key)
    x = jax.random.normal(kx, (B, Cin, H, W), jnp.float32)  # NCHW, like PyTorch
    params = init_params(kp, Cin, stack_channels)

    packed = jax.tree_util.tree_map(jax.block_until_ready, pack_params(params, H, W))

    fwd = jax.jit(impala_residual_stack)
    out = jax.block_until_ready(fwd(x, packed))

    ref = jax.block_until_ready(impala_residual_stack_ref(x, params))

    assert out.shape == (B, stack_channels, H // 2, W // 2), out.shape
    max_diff = float(jnp.max(jnp.abs(out - ref)))
    assert jnp.allclose(out, ref, atol=1e-4, rtol=1e-4), f"max abs diff = {max_diff}"
    print("KERNEL_OK")
</pallas_src>

<mosaic_0001>
module attributes {stable_mosaic.version = 11 : i64} {
  func.func @_stack_kernel(%arg0: i32, %arg1: memref<16x128xf32, #tpu.memory_space<vmem>>, %arg2: memref<16x16xf32, #tpu.memory_space<vmem>>, %arg3: memref<16x16xf32, #tpu.memory_space<vmem>>, %arg4: memref<3x128x256xf32, #tpu.memory_space<vmem>>, %arg5: memref<1x256xf32, #tpu.memory_space<vmem>>, %arg6: memref<8x16xf32, #tpu.memory_space<vmem>>, %arg7: memref<8x16xf32, #tpu.memory_space<vmem>>, %arg8: memref<8x16xf32, #tpu.memory_space<vmem>>, %arg9: memref<256x128xf32, #tpu.memory_space<vmem>>, %arg10: memref<256x128xf32, #tpu.memory_space<vmem>>, %arg11: memref<256x128xf32, #tpu.memory_space<vmem>>, %arg12: memref<8x8xf32, #tpu.memory_space<vmem>>, %arg13: memref<8x8xf32, #tpu.memory_space<vmem>>, %arg14: memref<3x128x128xf32, #tpu.memory_space<vmem>>, %arg15: memref<1x128xf32, #tpu.memory_space<vmem>>, %arg16: memref<3x128x128xf32, #tpu.memory_space<vmem>>, %arg17: memref<1x128xf32, #tpu.memory_space<vmem>>, %arg18: memref<3x128x128xf32, #tpu.memory_space<vmem>>, %arg19: memref<1x128xf32, #tpu.memory_space<vmem>>, %arg20: memref<3x128x128xf32, #tpu.memory_space<vmem>>, %arg21: memref<1x128xf32, #tpu.memory_space<vmem>>, %arg22: memref<8x128xf32, #tpu.memory_space<vmem>>) attributes {dimension_semantics = [#tpu.dimension_semantics<parallel>], iteration_bounds = array<i64: 1>, scalar_prefetch = 0 : i64, scratch_operands = 0 : i64, tpu.core_type = #tpu.core_type<tc>, window_params = [{transform_indices = @transform_0, window_bounds = array<i64: 16, 128>}, {pipeline_mode = #tpu.pipeline_mode<synchronous>, transform_indices = @transform_1, window_bounds = array<i64: 16, 16>}, {pipeline_mode = #tpu.pipeline_mode<synchronous>, transform_indices = @transform_2, window_bounds = array<i64: 16, 16>}, {pipeline_mode = #tpu.pipeline_mode<synchronous>, transform_indices = @transform_3, window_bounds = array<i64: 3, 128, 256>}, {pipeline_mode = #tpu.pipeline_mode<synchronous>, transform_indices = @transform_4, window_bounds = array<i64: 1, 256>}, {pipeline_mode = #tpu.pipeline_mode<synchronous>, transform_indices = @transform_5, window_bounds = array<i64: 8, 16>}, {pipeline_mode = #tpu.pipeline_mode<synchronous>, transform_indices = @transform_6, window_bounds = array<i64: 8, 16>}, {pipeline_mode = #tpu.pipeline_mode<synchronous>, transform_indices = @transform_7, window_bounds = array<i64: 8, 16>}, {pipeline_mode = #tpu.pipeline_mode<synchronous>, transform_indices = @transform_8, window_bounds = array<i64: 256, 128>}, {pipeline_mode = #tpu.pipeline_mode<synchronous>, transform_indices = @transform_9, window_bounds = array<i64: 256, 128>}, {pipeline_mode = #tpu.pipeline_mode<synchronous>, transform_indices = @transform_10, window_bounds = array<i64: 256, 128>}, {pipeline_mode = #tpu.pipeline_mode<synchronous>, transform_indices = @transform_11, window_bounds = array<i64: 8, 8>}, {pipeline_mode = #tpu.pipeline_mode<synchronous>, transform_indices = @transform_12, window_bounds = array<i64: 8, 8>}, {pipeline_mode = #tpu.pipeline_mode<synchronous>, transform_indices = @transform_13, window_bounds = array<i64: 3, 128, 128>}, {pipeline_mode = #tpu.pipeline_mode<synchronous>, transform_indices = @transform_14, window_bounds = array<i64: 1, 128>}, {pipeline_mode = #tpu.pipeline_mode<synchronous>, transform_indices = @transform_15, window_bounds = array<i64: 3, 128, 128>}, {pipeline_mode = #tpu.pipeline_mode<synchronous>, transform_indices = @transform_16, window_bounds = array<i64: 1, 128>}, {pipeline_mode = #tpu.pipeline_mode<synchronous>, transform_indices = @transform_17, window_bounds = array<i64: 3, 128, 128>}, {pipeline_mode = #tpu.pipeline_mode<synchronous>, transform_indices = @transform_18, window_bounds = array<i64: 1, 128>}, {pipeline_mode = #tpu.pipeline_mode<synchronous>, transform_indices = @transform_19, window_bounds = array<i64: 3, 128, 128>}, {pipeline_mode = #tpu.pipeline_mode<synchronous>, transform_indices = @transform_20, window_bounds = array<i64: 1, 128>}, {transform_indices = @transform_21, window_bounds = array<i64: 8, 128>}]} {
    %c0 = arith.constant 0 : index
    %c0_0 = arith.constant 0 : index
    %0 = vector.load %arg1[%c0, %c0_0] : memref<16x128xf32, #tpu.memory_space<vmem>>, vector<16x128xf32>
    %c0_1 = arith.constant 0 : index
    %c0_2 = arith.constant 0 : index
    %1 = vector.load %arg2[%c0_1, %c0_2] : memref<16x16xf32, #tpu.memory_space<vmem>>, vector<16x16xf32>
    %c0_3 = arith.constant 0 : index
    %c0_4 = arith.constant 0 : index
    %2 = vector.load %arg3[%c0_3, %c0_4] : memref<16x16xf32, #tpu.memory_space<vmem>>, vector<16x16xf32>
    %c0_5 = arith.constant 0 : index
    %c0_6 = arith.constant 0 : index
    %3 = vector.load %arg5[%c0_5, %c0_6] : memref<1x256xf32, #tpu.memory_space<vmem>>, vector<1x256xf32>
    %cst = arith.constant dense<0.000000e+00> : vector<16x128xf32>
    %4 = tpu.matmul %1, %0, %cst {dimension_numbers = #tpu.dot_dimension_numbers<[1], [0], [0], [1], [0, 0, 1, 1], [], []>} : vector<16x16xf32>, vector<16x128xf32>, vector<16x128xf32> -> vector<16x128xf32>
    %cst_7 = arith.constant dense<0.000000e+00> : vector<16x128xf32>
    %5 = tpu.matmul %2, %0, %cst_7 {dimension_numbers = #tpu.dot_dimension_numbers<[1], [0], [0], [1], [0, 0, 1, 1], [], []>} : vector<16x16xf32>, vector<16x128xf32>, vector<16x128xf32> -> vector<16x128xf32>
    %c0_8 = arith.constant 0 : index
    %c0_9 = arith.constant 0 : index
    %c0_10 = arith.constant 0 : index
    %6 = vector.load %arg4[%c0_8, %c0_9, %c0_10] : memref<3x128x256xf32, #tpu.memory_space<vmem>>, vector<1x128x256xf32>
    %7 = vector.shape_cast %6 : vector<1x128x256xf32> to vector<128x256xf32>
    %cst_11 = arith.constant dense<0.000000e+00> : vector<16x256xf32>
    %8 = tpu.matmul %4, %7, %cst_11 {dimension_numbers = #tpu.dot_dimension_numbers<[1], [0], [0], [1], [0, 0, 1, 1], [], []>} : vector<16x128xf32>, vector<128x256xf32>, vector<16x256xf32> -> vector<16x256xf32>
    %9 = vector.broadcast %3 : vector<1x256xf32> to vector<16x256xf32>
    %10 = arith.addf %9, %8 : vector<16x256xf32>
    %c1 = arith.constant 1 : index
    %c0_12 = arith.constant 0 : index
    %c0_13 = arith.constant 0 : index
    %11 = vector.load %arg4[%c1, %c0_12, %c0_13] : memref<3x128x256xf32, #tpu.memory_space<vmem>>, vector<1x128x256xf32>
    %12 = vector.shape_cast %11 : vector<1x128x256xf32> to vector<128x256xf32>
    %cst_14 = arith.constant dense<0.000000e+00> : vector<16x256xf32>
    %13 = tpu.matmul %0, %12, %cst_14 {dimension_numbers = #tpu.dot_dimension_numbers<[1], [0], [0], [1], [0, 0, 1, 1], [], []>} : vector<16x128xf32>, vector<128x256xf32>, vector<16x256xf32> -> vector<16x256xf32>
    %14 = arith.addf %10, %13 : vector<16x256xf32>
    %c2 = arith.constant 2 : index
    %c0_15 = arith.constant 0 : index
    %c0_16 = arith.constant 0 : index
    %15 = vector.load %arg4[%c2, %c0_15, %c0_16] : memref<3x128x256xf32, #tpu.memory_space<vmem>>, vector<1x128x256xf32>
    %16 = vector.shape_cast %15 : vector<1x128x256xf32> to vector<128x256xf32>
    %cst_17 = arith.constant dense<0.000000e+00> : vector<16x256xf32>
    %17 = tpu.matmul %5, %16, %cst_17 {dimension_numbers = #tpu.dot_dimension_numbers<[1], [0], [0], [1], [0, 0, 1, 1], [], []>} : vector<16x128xf32>, vector<128x256xf32>, vector<16x256xf32> -> vector<16x256xf32>
    %18 = arith.addf %14, %17 : vector<16x256xf32>
    %c0_18 = arith.constant 0 : index
    %c0_19 = arith.constant 0 : index
    %19 = vector.load %arg6[%c0_18, %c0_19] : memref<8x16xf32, #tpu.memory_space<vmem>>, vector<8x16xf32>
    %cst_20 = arith.constant dense<0.000000e+00> : vector<8x256xf32>
    %20 = tpu.matmul %19, %18, %cst_20 {dimension_numbers = #tpu.dot_dimension_numbers<[1], [0], [0], [1], [0, 0, 1, 1], [], []>} : vector<8x16xf32>, vector<16x256xf32>, vector<8x256xf32> -> vector<8x256xf32>
    %c0_21 = arith.constant 0 : index
    %c0_22 = arith.constant 0 : index
    %21 = vector.load %arg7[%c0_21, %c0_22] : memref<8x16xf32, #tpu.memory_space<vmem>>, vector<8x16xf32>
    %cst_23 = arith.constant dense<0.000000e+00> : vector<8x256xf32>
    %22 = tpu.matmul %21, %18, %cst_23 {dimension_numbers = #tpu.dot_dimension_numbers<[1], [0], [0], [1], [0, 0, 1, 1], [], []>} : vector<8x16xf32>, vector<16x256xf32>, vector<8x256xf32> -> vector<8x256xf32>
    %23 = arith.maximumf %20, %22 : vector<8x256xf32>
    %c0_24 = arith.constant 0 : index
    %c0_25 = arith.constant 0 : index
    %24 = vector.load %arg8[%c0_24, %c0_25] : memref<8x16xf32, #tpu.memory_space<vmem>>, vector<8x16xf32>
    %cst_26 = arith.constant dense<0.000000e+00> : vector<8x256xf32>
    %25 = tpu.matmul %24, %18, %cst_26 {dimension_numbers = #tpu.dot_dimension_numbers<[1], [0], [0], [1], [0, 0, 1, 1], [], []>} : vector<8x16xf32>, vector<16x256xf32>, vector<8x256xf32> -> vector<8x256xf32>
    %26 = arith.maximumf %23, %25 : vector<8x256xf32>
    %c0_27 = arith.constant 0 : index
    %c0_28 = arith.constant 0 : index
    %27 = vector.load %arg9[%c0_27, %c0_28] : memref<256x128xf32, #tpu.memory_space<vmem>>, vector<256x128xf32>
    %cst_29 = arith.constant dense<0.000000e+00> : vector<8x128xf32>
    %28 = tpu.matmul %26, %27, %cst_29 {dimension_numbers = #tpu.dot_dimension_numbers<[1], [0], [0], [1], [0, 0, 1, 1], [], []>} : vector<8x256xf32>, vector<256x128xf32>, vector<8x128xf32> -> vector<8x128xf32>
    %c0_30 = arith.constant 0 : index
    %c0_31 = arith.constant 0 : index
    %29 = vector.load %arg10[%c0_30, %c0_31] : memref<256x128xf32, #tpu.memory_space<vmem>>, vector<256x128xf32>
    %cst_32 = arith.constant dense<0.000000e+00> : vector<8x128xf32>
    %30 = tpu.matmul %26, %29, %cst_32 {dimension_numbers = #tpu.dot_dimension_numbers<[1], [0], [0], [1], [0, 0, 1, 1], [], []>} : vector<8x256xf32>, vector<256x128xf32>, vector<8x128xf32> -> vector<8x128xf32>
    %31 = arith.maximumf %28, %30 : vector<8x128xf32>
    %c0_33 = arith.constant 0 : index
    %c0_34 = arith.constant 0 : index
    %32 = vector.load %arg11[%c0_33, %c0_34] : memref<256x128xf32, #tpu.memory_space<vmem>>, vector<256x128xf32>
    %cst_35 = arith.constant dense<0.000000e+00> : vector<8x128xf32>
    %33 = tpu.matmul %26, %32, %cst_35 {dimension_numbers = #tpu.dot_dimension_numbers<[1], [0], [0], [1], [0, 0, 1, 1], [], []>} : vector<8x256xf32>, vector<256x128xf32>, vector<8x128xf32> -> vector<8x128xf32>
    %34 = arith.maximumf %31, %33 : vector<8x128xf32>
    %c0_36 = arith.constant 0 : index
    %c0_37 = arith.constant 0 : index
    %35 = vector.load %arg12[%c0_36, %c0_37] : memref<8x8xf32, #tpu.memory_space<vmem>>, vector<8x8xf32>
    %c0_38 = arith.constant 0 : index
    %c0_39 = arith.constant 0 : index
    %36 = vector.load %arg13[%c0_38, %c0_39] : memref<8x8xf32, #tpu.memory_space<vmem>>, vector<8x8xf32>
    %cst_40 = arith.constant 0.000000e+00 : f32
    %37 = vector.broadcast %cst_40 : f32 to vector<8x128xf32>
    %38 = arith.maximumf %34, %37 : vector<8x128xf32>
    %c0_41 = arith.constant 0 : index
    %c0_42 = arith.constant 0 : index
    %39 = vector.load %arg15[%c0_41, %c0_42] : memref<1x128xf32, #tpu.memory_space<vmem>>, vector<1x128xf32>
    %cst_43 = arith.constant dense<0.000000e+00> : vector<8x128xf32>
    %40 = tpu.matmul %35, %38, %cst_43 {dimension_numbers = #tpu.dot_dimension_numbers<[1], [0], [0], [1], [0, 0, 1, 1], [], []>} : vector<8x8xf32>, vector<8x128xf32>, vector<8x128xf32> -> vector<8x128xf32>
    %cst_44 = arith.constant dense<0.000000e+00> : vector<8x128xf32>
    %41 = tpu.matmul %36, %38, %cst_44 {dimension_numbers = #tpu.dot_dimension_numbers<[1], [0], [0], [1], [0, 0, 1, 1], [], []>} : vector<8x8xf32>, vector<8x128xf32>, vector<8x128xf32> -> vector<8x128xf32>
    %c0_45 = arith.constant 0 : index
    %c0_46 = arith.constant 0 : index
    %c0_47 = arith.constant 0 : index
    %42 = vector.load %arg14[%c0_45, %c0_46, %c0_47] : memref<3x128x128xf32, #tpu.memory_space<vmem>>, vector<1x128x128xf32>
    %43 = vector.shape_cast %42 : vector<1x128x128xf32> to vector<128x128xf32>
    %cst_48 = arith.constant dense<0.000000e+00> : vector<8x128xf32>
    %44 = tpu.matmul %40, %43, %cst_48 {dimension_numbers = #tpu.dot_dimension_numbers<[1], [0], [0], [1], [0, 0, 1, 1], [], []>} : vector<8x128xf32>, vector<128x128xf32>, vector<8x128xf32> -> vector<8x128xf32>
    %45 = vector.broadcast %39 : vector<1x128xf32> to vector<8x128xf32>
    %46 = arith.addf %45, %44 : vector<8x128xf32>
    %c1_49 = arith.constant 1 : index
    %c0_50 = arith.constant 0 : index
    %c0_51 = arith.constant 0 : index
    %47 = vector.load %arg14[%c1_49, %c0_50, %c0_51] : memref<3x128x128xf32, #tpu.memory_space<vmem>>, vector<1x128x128xf32>
    %48 = vector.shape_cast %47 : vector<1x128x128xf32> to vector<128x128xf32>
    %cst_52 = arith.constant dense<0.000000e+00> : vector<8x128xf32>
    %49 = tpu.matmul %38, %48, %cst_52 {dimension_numbers = #tpu.dot_dimension_numbers<[1], [0], [0], [1], [0, 0, 1, 1], [], []>} : vector<8x128xf32>, vector<128x128xf32>, vector<8x128xf32> -> vector<8x128xf32>
    %50 = arith.addf %46, %49 : vector<8x128xf32>
    %c2_53 = arith.constant 2 : index
    %c0_54 = arith.constant 0 : index
    %c0_55 = arith.constant 0 : index
    %51 = vector.load %arg14[%c2_53, %c0_54, %c0_55] : memref<3x128x128xf32, #tpu.memory_space<vmem>>, vector<1x128x128xf32>
    %52 = vector.shape_cast %51 : vector<1x128x128xf32> to vector<128x128xf32>
    %cst_56 = arith.constant dense<0.000000e+00> : vector<8x128xf32>
    %53 = tpu.matmul %41, %52, %cst_56 {dimension_numbers = #tpu.dot_dimension_numbers<[1], [0], [0], [1], [0, 0, 1, 1], [], []>} : vector<8x128xf32>, vector<128x128xf32>, vector<8x128xf32> -> vector<8x128xf32>
    %54 = arith.addf %50, %53 : vector<8x128xf32>
    %cst_57 = arith.constant 0.000000e+00 : f32
    %55 = vector.broadcast %cst_57 : f32 to vector<8x128xf32>
    %56 = arith.maximumf %54, %55 : vector<8x128xf32>
    %c0_58 = arith.constant 0 : index
    %c0_59 = arith.constant 0 : index
    %57 = vector.load %arg17[%c0_58, %c0_59] : memref<1x128xf32, #tpu.memory_space<vmem>>, vector<1x128xf32>
    %cst_60 = arith.constant dense<0.000000e+00> : vector<8x128xf32>
    %58 = tpu.matmul %35, %56, %cst_60 {dimension_numbers = #tpu.dot_dimension_numbers<[1], [0], [0], [1], [0, 0, 1, 1], [], []>} : vector<8x8xf32>, vector<8x128xf32>, vector<8x128xf32> -> vector<8x128xf32>
    %cst_61 = arith.constant dense<0.000000e+00> : vector<8x128xf32>
    %59 = tpu.matmul %36, %56, %cst_61 {dimension_numbers = #tpu.dot_dimension_numbers<[1], [0], [0], [1], [0, 0, 1, 1], [], []>} : vector<8x8xf32>, vector<8x128xf32>, vector<8x128xf32> -> vector<8x128xf32>
    %c0_62 = arith.constant 0 : index
    %c0_63 = arith.constant 0 : index
    %c0_64 = arith.constant 0 : index
    %60 = vector.load %arg16[%c0_62, %c0_63, %c0_64] : memref<3x128x128xf32, #tpu.memory_space<vmem>>, vector<1x128x128xf32>
    %61 = vector.shape_cast %60 : vector<1x128x128xf32> to vector<128x128xf32>
    %cst_65 = arith.constant dense<0.000000e+00> : vector<8x128xf32>
    %62 = tpu.matmul %58, %61, %cst_65 {dimension_numbers = #tpu.dot_dimension_numbers<[1], [0], [0], [1], [0, 0, 1, 1], [], []>} : vector<8x128xf32>, vector<128x128xf32>, vector<8x128xf32> -> vector<8x128xf32>
    %63 = vector.broadcast %57 : vector<1x128xf32> to vector<8x128xf32>
    %64 = arith.addf %63, %62 : vector<8x128xf32>
    %c1_66 = arith.constant 1 : index
    %c0_67 = arith.constant 0 : index
    %c0_68 = arith.constant 0 : index
    %65 = vector.load %arg16[%c1_66, %c0_67, %c0_68] : memref<3x128x128xf32, #tpu.memory_space<vmem>>, vector<1x128x128xf32>
    %66 = vector.shape_cast %65 : vector<1x128x128xf32> to vector<128x128xf32>
    %cst_69 = arith.constant dense<0.000000e+00> : vector<8x128xf32>
    %67 = tpu.matmul %56, %66, %cst_69 {dimension_numbers = #tpu.dot_dimension_numbers<[1], [0], [0], [1], [0, 0, 1, 1], [], []>} : vector<8x128xf32>, vector<128x128xf32>, vector<8x128xf32> -> vector<8x128xf32>
    %68 = arith.addf %64, %67 : vector<8x128xf32>
    %c2_70 = arith.constant 2 : index
    %c0_71 = arith.constant 0 : index
    %c0_72 = arith.constant 0 : index
    %69 = vector.load %arg16[%c2_70, %c0_71, %c0_72] : memref<3x128x128xf32, #tpu.memory_space<vmem>>, vector<1x128x128xf32>
    %70 = vector.shape_cast %69 : vector<1x128x128xf32> to vector<128x128xf32>
    %cst_73 = arith.constant dense<0.000000e+00> : vector<8x128xf32>
    %71 = tpu.matmul %59, %70, %cst_73 {dimension_numbers = #tpu.dot_dimension_numbers<[1], [0], [0], [1], [0, 0, 1, 1], [], []>} : vector<8x128xf32>, vector<128x128xf32>, vector<8x128xf32> -> vector<8x128xf32>
    %72 = arith.addf %68, %71 : vector<8x128xf32>
    %73 = arith.addf %72, %34 : vector<8x128xf32>
    %cst_74 = arith.constant 0.000000e+00 : f32
    %74 = vector.broadcast %cst_74 : f32 to vector<8x128xf32>
    %75 = arith.maximumf %73, %74 : vector<8x128xf32>
    %c0_75 = arith.constant 0 : index
    %c0_76 = arith.constant 0 : index
    %76 = vector.load %arg19[%c0_75, %c0_76] : memref<1x128xf32, #tpu.memory_space<vmem>>, vector<1x128xf32>
    %cst_77 = arith.constant dense<0.000000e+00> : vector<8x128xf32>
    %77 = tpu.matmul %35, %75, %cst_77 {dimension_numbers = #tpu.dot_dimension_numbers<[1], [0], [0], [1], [0, 0, 1, 1], [], []>} : vector<8x8xf32>, vector<8x128xf32>, vector<8x128xf32> -> vector<8x128xf32>
    %cst_78 = arith.constant dense<0.000000e+00> : vector<8x128xf32>
    %78 = tpu.matmul %36, %75, %cst_78 {dimension_numbers = #tpu.dot_dimension_numbers<[1], [0], [0], [1], [0, 0, 1, 1], [], []>} : vector<8x8xf32>, vector<8x128xf32>, vector<8x128xf32> -> vector<8x128xf32>
    %c0_79 = arith.constant 0 : index
    %c0_80 = arith.constant 0 : index
    %c0_81 = arith.constant 0 : index
    %79 = vector.load %arg18[%c0_79, %c0_80, %c0_81] : memref<3x128x128xf32, #tpu.memory_space<vmem>>, vector<1x128x128xf32>
    %80 = vector.shape_cast %79 : vector<1x128x128xf32> to vector<128x128xf32>
    %cst_82 = arith.constant dense<0.000000e+00> : vector<8x128xf32>
    %81 = tpu.matmul %77, %80, %cst_82 {dimension_numbers = #tpu.dot_dimension_numbers<[1], [0], [0], [1], [0, 0, 1, 1], [], []>} : vector<8x128xf32>, vector<128x128xf32>, vector<8x128xf32> -> vector<8x128xf32>
    %82 = vector.broadcast %76 : vector<1x128xf32> to vector<8x128xf32>
    %83 = arith.addf %82, %81 : vector<8x128xf32>
    %c1_83 = arith.constant 1 : index
    %c0_84 = arith.constant 0 : index
    %c0_85 = arith.constant 0 : index
    %84 = vector.load %arg18[%c1_83, %c0_84, %c0_85] : memref<3x128x128xf32, #tpu.memory_space<vmem>>, vector<1x128x128xf32>
    %85 = vector.shape_cast %84 : vector<1x128x128xf32> to vector<128x128xf32>
    %cst_86 = arith.constant dense<0.000000e+00> : vector<8x128xf32>
    %86 = tpu.matmul %75, %85, %cst_86 {dimension_numbers = #tpu.dot_dimension_numbers<[1], [0], [0], [1], [0, 0, 1, 1], [], []>} : vector<8x128xf32>, vector<128x128xf32>, vector<8x128xf32> -> vector<8x128xf32>
    %87 = arith.addf %83, %86 : vector<8x128xf32>
    %c2_87 = arith.constant 2 : index
    %c0_88 = arith.constant 0 : index
    %c0_89 = arith.constant 0 : index
    %88 = vector.load %arg18[%c2_87, %c0_88, %c0_89] : memref<3x128x128xf32, #tpu.memory_space<vmem>>, vector<1x128x128xf32>
    %89 = vector.shape_cast %88 : vector<1x128x128xf32> to vector<128x128xf32>
    %cst_90 = arith.constant dense<0.000000e+00> : vector<8x128xf32>
    %90 = tpu.matmul %78, %89, %cst_90 {dimension_numbers = #tpu.dot_dimension_numbers<[1], [0], [0], [1], [0, 0, 1, 1], [], []>} : vector<8x128xf32>, vector<128x128xf32>, vector<8x128xf32> -> vector<8x128xf32>
    %91 = arith.addf %87, %90 : vector<8x128xf32>
    %cst_91 = arith.constant 0.000000e+00 : f32
    %92 = vector.broadcast %cst_91 : f32 to vector<8x128xf32>
    %93 = arith.maximumf %91, %92 : vector<8x128xf32>
    %c0_92 = arith.constant 0 : index
    %c0_93 = arith.constant 0 : index
    %94 = vector.load %arg21[%c0_92, %c0_93] : memref<1x128xf32, #tpu.memory_space<vmem>>, vector<1x128xf32>
    %cst_94 = arith.constant dense<0.000000e+00> : vector<8x128xf32>
    %95 = tpu.matmul %35, %93, %cst_94 {dimension_numbers = #tpu.dot_dimension_numbers<[1], [0], [0], [1], [0, 0, 1, 1], [], []>} : vector<8x8xf32>, vector<8x128xf32>, vector<8x128xf32> -> vector<8x128xf32>
    %cst_95 = arith.constant dense<0.000000e+00> : vector<8x128xf32>
    %96 = tpu.matmul %36, %93, %cst_95 {dimension_numbers = #tpu.dot_dimension_numbers<[1], [0], [0], [1], [0, 0, 1, 1], [], []>} : vector<8x8xf32>, vector<8x128xf32>, vector<8x128xf32> -> vector<8x128xf32>
    %c0_96 = arith.constant 0 : index
    %c0_97 = arith.constant 0 : index
    %c0_98 = arith.constant 0 : index
    %97 = vector.load %arg20[%c0_96, %c0_97, %c0_98] : memref<3x128x128xf32, #tpu.memory_space<vmem>>, vector<1x128x128xf32>
    %98 = vector.shape_cast %97 : vector<1x128x128xf32> to vector<128x128xf32>
    %cst_99 = arith.constant dense<0.000000e+00> : vector<8x128xf32>
    %99 = tpu.matmul %95, %98, %cst_99 {dimension_numbers = #tpu.dot_dimension_numbers<[1], [0], [0], [1], [0, 0, 1, 1], [], []>} : vector<8x128xf32>, vector<128x128xf32>, vector<8x128xf32> -> vector<8x128xf32>
    %100 = vector.broadcast %94 : vector<1x128xf32> to vector<8x128xf32>
    %101 = arith.addf %100, %99 : vector<8x128xf32>
    %c1_100 = arith.constant 1 : index
    %c0_101 = arith.constant 0 : index
    %c0_102 = arith.constant 0 : index
    %102 = vector.load %arg20[%c1_100, %c0_101, %c0_102] : memref<3x128x128xf32, #tpu.memory_space<vmem>>, vector<1x128x128xf32>
    %103 = vector.shape_cast %102 : vector<1x128x128xf32> to vector<128x128xf32>
    %cst_103 = arith.constant dense<0.000000e+00> : vector<8x128xf32>
    %104 = tpu.matmul %93, %103, %cst_103 {dimension_numbers = #tpu.dot_dimension_numbers<[1], [0], [0], [1], [0, 0, 1, 1], [], []>} : vector<8x128xf32>, vector<128x128xf32>, vector<8x128xf32> -> vector<8x128xf32>
    %105 = arith.addf %101, %104 : vector<8x128xf32>
    %c2_104 = arith.constant 2 : index
    %c0_105 = arith.constant 0 : index
    %c0_106 = arith.constant 0 : index
    %106 = vector.load %arg20[%c2_104, %c0_105, %c0_106] : memref<3x128x128xf32, #tpu.memory_space<vmem>>, vector<1x128x128xf32>
    %107 = vector.shape_cast %106 : vector<1x128x128xf32> to vector<128x128xf32>
    %cst_107 = arith.constant dense<0.000000e+00> : vector<8x128xf32>
    %108 = tpu.matmul %96, %107, %cst_107 {dimension_numbers = #tpu.dot_dimension_numbers<[1], [0], [0], [1], [0, 0, 1, 1], [], []>} : vector<8x128xf32>, vector<128x128xf32>, vector<8x128xf32> -> vector<8x128xf32>
    %109 = arith.addf %105, %108 : vector<8x128xf32>
    %110 = arith.addf %109, %73 : vector<8x128xf32>
    %c0_108 = arith.constant 0 : index
    %c0_109 = arith.constant 0 : index
    %111 = vector.load %arg22[%c0_108, %c0_109] : memref<8x128xf32, #tpu.memory_space<vmem>>, vector<8x128xf32>
    tpu.vector_store %arg22[%c0_108, %c0_109], %110 {strides = array<i32>} : memref<8x128xf32, #tpu.memory_space<vmem>>, vector<8x128xf32>,
    return
  }
  func.func @transform_0(%arg0: i32) -> (i32, i32) {
    %c0_i32 = arith.constant 0 : i32
    %c0_i32_0 = arith.constant 0 : i32
    return %arg0, %c0_i32 : i32, i32
  }
  func.func @transform_1(%arg0: i32) -> (i32, i32) {
    %c0_i32 = arith.constant 0 : i32
    %c0_i32_0 = arith.constant 0 : i32
    %c0_i32_1 = arith.constant 0 : i32
    return %c0_i32, %c0_i32_0 : i32, i32
  }
  func.func @transform_2(%arg0: i32) -> (i32, i32) {
    %c0_i32 = arith.constant 0 : i32
    %c0_i32_0 = arith.constant 0 : i32
    %c0_i32_1 = arith.constant 0 : i32
    return %c0_i32, %c0_i32_0 : i32, i32
  }
  func.func @transform_3(%arg0: i32) -> (i32, i32, i32) {
    %c0_i32 = arith.constant 0 : i32
    %c0_i32_0 = arith.constant 0 : i32
    %c0_i32_1 = arith.constant 0 : i32
    %c0_i32_2 = arith.constant 0 : i32
    return %c0_i32, %c0_i32_0, %c0_i32_1 : i32, i32, i32
  }
  func.func @transform_4(%arg0: i32) -> (i32, i32) {
    %c0_i32 = arith.constant 0 : i32
    %c0_i32_0 = arith.constant 0 : i32
    %c0_i32_1 = arith.constant 0 : i32
    return %c0_i32, %c0_i32_0 : i32, i32
  }
  func.func @transform_5(%arg0: i32) -> (i32, i32) {
    %c0_i32 = arith.constant 0 : i32
    %c0_i32_0 = arith.constant 0 : i32
    %c0_i32_1 = arith.constant 0 : i32
    return %c0_i32, %c0_i32_0 : i32, i32
  }
  func.func @transform_6(%arg0: i32) -> (i32, i32) {
    %c0_i32 = arith.constant 0 : i32
    %c0_i32_0 = arith.constant 0 : i32
    %c0_i32_1 = arith.constant 0 : i32
    return %c0_i32, %c0_i32_0 : i32, i32
  }
  func.func @transform_7(%arg0: i32) -> (i32, i32) {
    %c0_i32 = arith.constant 0 : i32
    %c0_i32_0 = arith.constant 0 : i32
    %c0_i32_1 = arith.constant 0 : i32
    return %c0_i32, %c0_i32_0 : i32, i32
  }
  func.func @transform_8(%arg0: i32) -> (i32, i32) {
    %c0_i32 = arith.constant 0 : i32
    %c0_i32_0 = arith.constant 0 : i32
    %c0_i32_1 = arith.constant 0 : i32
    return %c0_i32, %c0_i32_0 : i32, i32
  }
  func.func @transform_9(%arg0: i32) -> (i32, i32) {
    %c0_i32 = arith.constant 0 : i32
    %c0_i32_0 = arith.constant 0 : i32
    %c0_i32_1 = arith.constant 0 : i32
    return %c0_i32, %c0_i32_0 : i32, i32
  }
  func.func @transform_10(%arg0: i32) -> (i32, i32) {
    %c0_i32 = arith.constant 0 : i32
    %c0_i32_0 = arith.constant 0 : i32
    %c0_i32_1 = arith.constant 0 : i32
    return %c0_i32, %c0_i32_0 : i32, i32
  }
  func.func @transform_11(%arg0: i32) -> (i32, i32) {
    %c0_i32 = arith.constant 0 : i32
    %c0_i32_0 = arith.constant 0 : i32
    %c0_i32_1 = arith.constant 0 : i32
    return %c0_i32, %c0_i32_0 : i32, i32
  }
  func.func @transform_12(%arg0: i32) -> (i32, i32) {
    %c0_i32 = arith.constant 0 : i32
    %c0_i32_0 = arith.constant 0 : i32
    %c0_i32_1 = arith.constant 0 : i32
    return %c0_i32, %c0_i32_0 : i32, i32
  }
  func.func @transform_13(%arg0: i32) -> (i32, i32, i32) {
    %c0_i32 = arith.constant 0 : i32
    %c0_i32_0 = arith.constant 0 : i32
    %c0_i32_1 = arith.constant 0 : i32
    %c0_i32_2 = arith.constant 0 : i32
    return %c0_i32, %c0_i32_0, %c0_i32_1 : i32, i32, i32
  }
  func.func @transform_14(%arg0: i32) -> (i32, i32) {
    %c0_i32 = arith.constant 0 : i32
    %c0_i32_0 = arith.constant 0 : i32
    %c0_i32_1 = arith.constant 0 : i32
    return %c0_i32, %c0_i32_0 : i32, i32
  }
  func.func @transform_15(%arg0: i32) -> (i32, i32, i32) {
    %c0_i32 = arith.constant 0 : i32
    %c0_i32_0 = arith.constant 0 : i32
    %c0_i32_1 = arith.constant 0 : i32
    %c0_i32_2 = arith.constant 0 : i32
    return %c0_i32, %c0_i32_0, %c0_i32_1 : i32, i32, i32
  }
  func.func @transform_16(%arg0: i32) -> (i32, i32) {
    %c0_i32 = arith.constant 0 : i32
    %c0_i32_0 = arith.constant 0 : i32
    %c0_i32_1 = arith.constant 0 : i32
    return %c0_i32, %c0_i32_0 : i32, i32
  }
  func.func @transform_17(%arg0: i32) -> (i32, i32, i32) {
    %c0_i32 = arith.constant 0 : i32
    %c0_i32_0 = arith.constant 0 : i32
    %c0_i32_1 = arith.constant 0 : i32
    %c0_i32_2 = arith.constant 0 : i32
    return %c0_i32, %c0_i32_0, %c0_i32_1 : i32, i32, i32
  }
  func.func @transform_18(%arg0: i32) -> (i32, i32) {
    %c0_i32 = arith.constant 0 : i32
    %c0_i32_0 = arith.constant 0 : i32
    %c0_i32_1 = arith.constant 0 : i32
    return %c0_i32, %c0_i32_0 : i32, i32
  }
  func.func @transform_19(%arg0: i32) -> (i32, i32, i32) {
    %c0_i32 = arith.constant 0 : i32
    %c0_i32_0 = arith.constant 0 : i32
    %c0_i32_1 = arith.constant 0 : i32
    %c0_i32_2 = arith.constant 0 : i32
    return %c0_i32, %c0_i32_0, %c0_i32_1 : i32, i32, i32
  }
  func.func @transform_20(%arg0: i32) -> (i32, i32) {
    %c0_i32 = arith.constant 0 : i32
    %c0_i32_0 = arith.constant 0 : i32
    %c0_i32_1 = arith.constant 0 : i32
    return %c0_i32, %c0_i32_0 : i32, i32
  }
  func.func @transform_21(%arg0: i32) -> (i32, i32) {
    %c0_i32 = arith.constant 0 : i32
    %c0_i32_0 = arith.constant 0 : i32
    return %arg0, %c0_i32 : i32, i32
  }
}

</mosaic_0001>

<llo_original>
// kernel: impala_residual_stack.1
$region0: #{impala_residual_stack.1}
  #allocation0 [shape = 'u32[]', space=smem, size = 0x4, offset = 0x4, fixed_abs, tag = 'smem constant byte address 0x4 - core index']
  #allocation1 [shape = 'u32[144,128]{1,0:T(1,128)}', space=vmem, size = 0x12000, scoped, tag = 'internal scratch']
  %s0 = inlined_call_operand.vmem [shape: f32[16,128], index: 0, kind: input, shape index: {}]
  %s1 = inlined_call_operand.vmem [shape: f32[16,16], index: 1, kind: input, shape index: {}]
  %s2 = inlined_call_operand.vmem [shape: f32[16,16], index: 2, kind: input, shape index: {}]
  %s3 = inlined_call_operand.hbm [shape: f32[3,128,256], index: 3, kind: input, shape index: {}]
  %s4 = inlined_call_operand.vmem [shape: f32[1,256], index: 4, kind: input, shape index: {}]
  %s5 = inlined_call_operand.hbm [shape: f32[8,16], index: 5, kind: input, shape index: {}]
  %s6 = inlined_call_operand.hbm [shape: f32[8,16], index: 6, kind: input, shape index: {}]
  %s7 = inlined_call_operand.vmem [shape: f32[8,16], index: 7, kind: input, shape index: {}]
  %s8 = inlined_call_operand.hbm [shape: f32[256,128], index: 8, kind: input, shape index: {}]
  %s9 = inlined_call_operand.hbm [shape: f32[256,128], index: 9, kind: input, shape index: {}]
  %s10 = inlined_call_operand.hbm [shape: f32[256,128], index: 10, kind: input, shape index: {}]
  %s11 = inlined_call_operand.hbm [shape: f32[8,8], index: 11, kind: input, shape index: {}]
  %s12 = inlined_call_operand.hbm [shape: f32[8,8], index: 12, kind: input, shape index: {}]
  %s13 = inlined_call_operand.vmem [shape: f32[3,128,128], index: 13, kind: input, shape index: {}]
  %s14 = inlined_call_operand.hbm [shape: f32[1,128], index: 14, kind: input, shape index: {}]
  %s15 = inlined_call_operand.hbm [shape: f32[3,128,128], index: 15, kind: input, shape index: {}]
  %s16 = inlined_call_operand.hbm [shape: f32[1,128], index: 16, kind: input, shape index: {}]
  %s17 = inlined_call_operand.hbm [shape: f32[3,128,128], index: 17, kind: input, shape index: {}]
  %s18 = inlined_call_operand.hbm [shape: f32[1,128], index: 18, kind: input, shape index: {}]
  %s19 = inlined_call_operand.hbm [shape: f32[3,128,128], index: 19, kind: input, shape index: {}]
  %s20 = inlined_call_operand.hbm [shape: f32[1,128], index: 20, kind: input, shape index: {}]
  %s21 = inlined_call_operand.vmem [shape: f32[8,128], index: 21, kind: output, shape index: {}]
  %s22 = sld [smem:[#allocation0]]
  $region154: #{impala_residual_stack.1} parent=0
    _
  %s24 = ssub.s32 1, %s22
  %s25 = scalar_select 0, %s24, %s22
  $region1: #{impala_residual_stack.1} parent=0
    #allocation2 [shape = 'u8[393216]{0}', space=vmem, size = 0x60000, scoped, tag = 'input window, operand 3, single buffered']
    #allocation3 [shape = 's32[1]{0}', space=sflag, size = 0x4, scoped, tag = 'scoped memory for impala_residual_stack.1']
    #allocation4 [shape = 'u8[4096]{0}', space=vmem, size = 0x1000, scoped, tag = 'input window, operand 5, single buffered']
    #allocation5 [shape = 's32[1]{0}', space=sflag, size = 0x4, scoped, tag = 'scoped memory for impala_residual_stack.1']
    #allocation6 [shape = 'u8[4096]{0}', space=vmem, size = 0x1000, scoped, tag = 'input window, operand 6, single buffered']
    #allocation7 [shape = 'u8[131072]{0}', space=vmem, size = 0x20000, scoped, tag = 'input window, operand 8, single buffered']
    #allocation8 [shape = 's32[1]{0}', space=sflag, size = 0x4, scoped, tag = 'scoped memory for impala_residual_stack.1']
    #allocation9 [shape = 'u8[131072]{0}', space=vmem, size = 0x20000, scoped, tag = 'input window, operand 9, single buffered']
    #allocation10 [shape = 'u8[131072]{0}', space=vmem, size = 0x20000, scoped, tag = 'input window, operand 10, single buffered']
    #allocation11 [shape = 's32[1]{0}', space=sflag, size = 0x4, scoped, tag = 'scoped memory for impala_residual_stack.1']
    #allocation12 [shape = 'u8[4096]{0}', space=vmem, size = 0x1000, scoped, tag = 'input window, operand 11, single buffered']
    #allocation13 [shape = 'u8[4096]{0}', space=vmem, size = 0x1000, scoped, tag = 'input window, operand 12, single buffered']
    #allocation14 [shape = 's32[1]{0}', space=sflag, size = 0x4, scoped, tag = 'scoped memory for impala_residual_stack.1']
    #allocation15 [shape = 'u8[512]{0}', space=vmem, size = 0x400, scoped, tag = 'input window, operand 14, single buffered']
    #allocation16 [shape = 'u8[196608]{0}', space=vmem, size = 0x30000, scoped, tag = 'input window, operand 15, single buffered']
    #allocation17 [shape = 's32[1]{0}', space=sflag, size = 0x4, scoped, tag = 'scoped memory for impala_residual_stack.1']
    #allocation18 [shape = 'u8[512]{0}', space=vmem, size = 0x400, scoped, tag = 'input window, operand 16, single buffered']
    #allocation19 [shape = 'u8[196608]{0}', space=vmem, size = 0x30000, scoped, tag = 'input window, operand 17, single buffered']
    #allocation20 [shape = 's32[1]{0}', space=sflag, size = 0x4, scoped, tag = 'scoped memory for impala_residual_stack.1']
    #allocation21 [shape = 'u8[512]{0}', space=vmem, size = 0x400, scoped, tag = 'input window, operand 18, single buffered']
    #allocation22 [shape = 'u8[196608]{0}', space=vmem, size = 0x30000, scoped, tag = 'input window, operand 19, single buffered']
    #allocation23 [shape = 's32[1]{0}', space=sflag, size = 0x4, scoped, tag = 'scoped memory for impala_residual_stack.1']
    #allocation24 [shape = 'u8[512]{0}', space=vmem, size = 0x400, scoped, tag = 'input window, operand 20, single buffered']
    %26 = vsyncpa [#allocation3], 0
    %27 = vsyncpa [#allocation5], 0
    %28 = vsyncpa [#allocation8], 0
    %29 = vsyncpa [#allocation11], 0
    %30 = vsyncpa [#allocation14], 0
    %31 = vsyncpa [#allocation17], 0
    %32 = vsyncpa [#allocation20], 0
    %33 = vsyncpa [#allocation23], 0
    // Predicated region
    $region2: #{impala_residual_stack.1} parent=1 // pred_check
      _
    $region3: #{impala_residual_stack.1} parent=1 // pred_check_branch
      %35 = sbr.rel (0) target = $region5
    $region4: #{impala_residual_stack.1} parent=1 // pred_region
      _
    $region5: #{impala_residual_stack.1} parent=1 // pred_fallthru
      _
    // Predicated region
    $region6: #{impala_residual_stack.1} parent=1 // pred_check
      _
    $region7: #{impala_residual_stack.1} parent=1 // pred_check_branch
      %37 = sbr.rel (0) target = $region9
    $region8: #{impala_residual_stack.1} parent=1 // pred_region
      _
    $region9: #{impala_residual_stack.1} parent=1 // pred_fallthru
      _
    // Predicated region
    $region10: #{impala_residual_stack.1} parent=1 // pred_check
      _
    $region11: #{impala_residual_stack.1} parent=1 // pred_check_branch
      %39 = sbr.rel (0) target = $region13
    $region12: #{impala_residual_stack.1} parent=1 // pred_region
      _
    $region13: #{impala_residual_stack.1} parent=1 // pred_fallthru
      _
    // Predicated region
    $region14: #{impala_residual_stack.1} parent=1 // pred_check
      _
    $region15: #{impala_residual_stack.1} parent=1 // pred_check_branch
      %41 = sbr.rel (0) target = $region17
    $region16: #{impala_residual_stack.1} parent=1 // pred_region
      %s43 = ssub.s32 12288, 12288
      %44 = vsyncadd [#allocation3], %s43
      %s45 = sshll.u32 [#allocation2], 4
      %s46 = int_to_ptr.vmem [resolvable:$true] %s45
      %51 = dma.hbm_to_vmem [thread:$0]  %s3, 12288, %s46, [#allocation3], 256, 256, 16
    $region17: #{impala_residual_stack.1} parent=1 // pred_fallthru
      _
    // Predicated region
    $region18: #{impala_residual_stack.1} parent=1 // pred_check
      _
    $region19: #{impala_residual_stack.1} parent=1 // pred_check_branch
      %53 = sbr.rel (0) target = $region21
    $region20: #{impala_residual_stack.1} parent=1 // pred_region
      _
    $region21: #{impala_residual_stack.1} parent=1 // pred_fallthru
      _
    // Predicated region
    $region22: #{impala_residual_stack.1} parent=1 // pred_check
      _
    $region23: #{impala_residual_stack.1} parent=1 // pred_check_branch
      %55 = sbr.rel (0) target = $region25
    $region24: #{impala_residual_stack.1} parent=1 // pred_region
      %s57 = ssub.s32 128, 128
      %58 = vsyncadd [#allocation5], %s57
      %s60 = sshll.u32 [#allocation4], 4
      %s61 = int_to_ptr.vmem [resolvable:$true] %s60
      %63 = dma.hbm_to_vmem [thread:$0]  %s5, 128, %s61, [#allocation5]
    $region25: #{impala_residual_stack.1} parent=1 // pred_fallthru
      _
    // Predicated region
    $region26: #{impala_residual_stack.1} parent=1 // pred_check
      _
    $region27: #{impala_residual_stack.1} parent=1 // pred_check_branch
      %65 = sbr.rel (0) target = $region29
    $region28: #{impala_residual_stack.1} parent=1 // pred_region
      %s67 = ssub.s32 128, 128
      %68 = vsyncadd [#allocation5], %s67
      %s70 = sshll.u32 [#allocation6], 4
      %s71 = int_to_ptr.vmem [resolvable:$true] %s70
      %73 = dma.hbm_to_vmem [thread:$0]  %s6, 128, %s71, [#allocation5]
    $region29: #{impala_residual_stack.1} parent=1 // pred_fallthru
      _
    // Predicated region
    $region30: #{impala_residual_stack.1} parent=1 // pred_check
      _
    $region31: #{impala_residual_stack.1} parent=1 // pred_check_branch
      %75 = sbr.rel (0) target = $region33
    $region32: #{impala_residual_stack.1} parent=1 // pred_region
      _
    $region33: #{impala_residual_stack.1} parent=1 // pred_fallthru
      _
    // Predicated region
    $region34: #{impala_residual_stack.1} parent=1 // pred_check
      _
    $region35: #{impala_residual_stack.1} parent=1 // pred_check_branch
      %77 = sbr.rel (0) target = $region37
    $region36: #{impala_residual_stack.1} parent=1 // pred_region
      %s79 = ssub.s32 4096, 4096
      %80 = vsyncadd [#allocation8], %s79
      %s81 = sshll.u32 [#allocation7], 4
      %s82 = int_to_ptr.vmem [resolvable:$true] %s81
      %87 = dma.hbm_to_vmem [thread:$0]  %s8, 4096, %s82, [#allocation8], 128, 128, 8
    $region37: #{impala_residual_stack.1} parent=1 // pred_fallthru
      _
    // Predicated region
    $region38: #{impala_residual_stack.1} parent=1 // pred_check
      _
    $region39: #{impala_residual_stack.1} parent=1 // pred_check_branch
      %89 = sbr.rel (0) target = $region41
    $region40: #{impala_residual_stack.1} parent=1 // pred_region
      %s91 = ssub.s32 4096, 4096
      %92 = vsyncadd [#allocation8], %s91
      %s93 = sshll.u32 [#allocation9], 4
      %s94 = int_to_ptr.vmem [resolvable:$true] %s93
      %99 = dma.hbm_to_vmem [thread:$0]  %s9, 4096, %s94, [#allocation8], 128, 128, 8
    $region41: #{impala_residual_stack.1} parent=1 // pred_fallthru
      _
    // Predicated region
    $region42: #{impala_residual_stack.1} parent=1 // pred_check
      _
    $region43: #{impala_residual_stack.1} parent=1 // pred_check_branch
      %101 = sbr.rel (0) target = $region45
    $region44: #{impala_residual_stack.1} parent=1 // pred_region
      %s103 = ssub.s32 4096, 4096
      %104 = vsyncadd [#allocation11], %s103
      %s105 = sshll.u32 [#allocation10], 4
      %s106 = int_to_ptr.vmem [resolvable:$true] %s105
      %111 = dma.hbm_to_vmem [thread:$0]  %s10, 4096, %s106, [#allocation11], 128, 128, 8
    $region45: #{impala_residual_stack.1} parent=1 // pred_fallthru
      _
    // Predicated region
    $region46: #{impala_residual_stack.1} parent=1 // pred_check
      _
    $region47: #{impala_residual_stack.1} parent=1 // pred_check_branch
      %113 = sbr.rel (0) target = $region49
    $region48: #{impala_residual_stack.1} parent=1 // pred_region
      %s115 = ssub.s32 128, 128
      %116 = vsyncadd [#allocation11], %s115
      %s118 = sshll.u32 [#allocation12], 4
      %s119 = int_to_ptr.vmem [resolvable:$true] %s118
      %121 = dma.hbm_to_vmem [thread:$0]  %s11, 128, %s119, [#allocation11]
    $region49: #{impala_residual_stack.1} parent=1 // pred_fallthru
      _
    // Predicated region
    $region50: #{impala_residual_stack.1} parent=1 // pred_check
      _
    $region51: #{impala_residual_stack.1} parent=1 // pred_check_branch
      %123 = sbr.rel (0) target = $region53
    $region52: #{impala_residual_stack.1} parent=1 // pred_region
      %s125 = ssub.s32 128, 128
      %126 = vsyncadd [#allocation14], %s125
      %s128 = sshll.u32 [#allocation13], 4
      %s129 = int_to_ptr.vmem [resolvable:$true] %s128
      %131 = dma.hbm_to_vmem [thread:$0]  %s12, 128, %s129, [#allocation14]
    $region53: #{impala_residual_stack.1} parent=1 // pred_fallthru
      _
    // Predicated region
    $region54: #{impala_residual_stack.1} parent=1 // pred_check
      _
    $region55: #{impala_residual_stack.1} parent=1 // pred_check_branch
      %133 = sbr.rel (0) target = $region57
    $region56: #{impala_residual_stack.1} parent=1 // pred_region
      _
    $region57: #{impala_residual_stack.1} parent=1 // pred_fallthru
      _
    // Predicated region
    $region58: #{impala_residual_stack.1} parent=1 // pred_check
      _
    $region59: #{impala_residual_stack.1} parent=1 // pred_check_branch
      %135 = sbr.rel (0) target = $region61
    $region60: #{impala_residual_stack.1} parent=1 // pred_region
      %s137 = ssub.s32 16, 16
      %138 = vsyncadd [#allocation14], %s137
      %s140 = sshll.u32 [#allocation15], 4
      %s141 = int_to_ptr.vmem [resolvable:$true] %s140
      %143 = dma.hbm_to_vmem [thread:$0]  %s14, 16, %s141, [#allocation14]
    $region61: #{impala_residual_stack.1} parent=1 // pred_fallthru
      _
    // Predicated region
    $region62: #{impala_residual_stack.1} parent=1 // pred_check
      _
    $region63: #{impala_residual_stack.1} parent=1 // pred_check_branch
      %145 = sbr.rel (0) target = $region65
    $region64: #{impala_residual_stack.1} parent=1 // pred_region
      %s147 = ssub.s32 6144, 6144
      %148 = vsyncadd [#allocation17], %s147
      %s149 = sshll.u32 [#allocation16], 4
      %s150 = int_to_ptr.vmem [resolvable:$true] %s149
      %155 = dma.hbm_to_vmem [thread:$0]  %s15, 6144, %s150, [#allocation17], 128, 128, 8
    $region65: #{impala_residual_stack.1} parent=1 // pred_fallthru
      _
    // Predicated region
    $region66: #{impala_residual_stack.1} parent=1 // pred_check
      _
    $region67: #{impala_residual_stack.1} parent=1 // pred_check_branch
      %157 = sbr.rel (0) target = $region69
    $region68: #{impala_residual_stack.1} parent=1 // pred_region
      %s159 = ssub.s32 16, 16
      %160 = vsyncadd [#allocation17], %s159
      %s162 = sshll.u32 [#allocation18], 4
      %s163 = int_to_ptr.vmem [resolvable:$true] %s162
      %165 = dma.hbm_to_vmem [thread:$0]  %s16, 16, %s163, [#allocation17]
    $region69: #{impala_residual_stack.1} parent=1 // pred_fallthru
      _
    // Predicated region
    $region70: #{impala_residual_stack.1} parent=1 // pred_check
      _
    $region71: #{impala_residual_stack.1} parent=1 // pred_check_branch
      %167 = sbr.rel (0) target = $region73
    $region72: #{impala_residual_stack.1} parent=1 // pred_region
      %s169 = ssub.s32 6144, 6144
      %170 = vsyncadd [#allocation20], %s169
      %s171 = sshll.u32 [#allocation19], 4
      %s172 = int_to_ptr.vmem [resolvable:$true] %s171
      %177 = dma.hbm_to_vmem [thread:$0]  %s17, 6144, %s172, [#allocation20], 128, 128, 8
    $region73: #{impala_residual_stack.1} parent=1 // pred_fallthru
      _
    // Predicated region
    $region74: #{impala_residual_stack.1} parent=1 // pred_check
      _
    $region75: #{impala_residual_stack.1} parent=1 // pred_check_branch
      %179 = sbr.rel (0) target = $region77
    $region76: #{impala_residual_stack.1} parent=1 // pred_region
      %s181 = ssub.s32 16, 16
      %182 = vsyncadd [#allocation20], %s181
      %s184 = sshll.u32 [#allocation21], 4
      %s185 = int_to_ptr.vmem [resolvable:$true] %s184
      %187 = dma.hbm_to_vmem [thread:$0]  %s18, 16, %s185, [#allocation20]
    $region77: #{impala_residual_stack.1} parent=1 // pred_fallthru
      _
    // Predicated region
    $region78: #{impala_residual_stack.1} parent=1 // pred_check
      _
    $region79: #{impala_residual_stack.1} parent=1 // pred_check_branch
      %189 = sbr.rel (0) target = $region81
    $region80: #{impala_residual_stack.1} parent=1 // pred_region
      %s191 = ssub.s32 6144, 6144
      %192 = vsyncadd [#allocation23], %s191
      %s193 = sshll.u32 [#allocation22], 4
      %s194 = int_to_ptr.vmem [resolvable:$true] %s193
      %199 = dma.hbm_to_vmem [thread:$0]  %s19, 6144, %s194, [#allocation23], 128, 128, 8
    $region81: #{impala_residual_stack.1} parent=1 // pred_fallthru
      _
    // Predicated region
    $region82: #{impala_residual_stack.1} parent=1 // pred_check
      _
    $region83: #{impala_residual_stack.1} parent=1 // pred_check_branch
      %201 = sbr.rel (0) target = $region85
    $region84: #{impala_residual_stack.1} parent=1 // pred_region
      %s203 = ssub.s32 16, 16
      %204 = vsyncadd [#allocation23], %s203
      %s206 = sshll.u32 [#allocation24], 4
      %s207 = int_to_ptr.vmem [resolvable:$true] %s206
      %209 = dma.hbm_to_vmem [thread:$0]  %s20, 16, %s207, [#allocation23]
    $region85: #{impala_residual_stack.1} parent=1 // pred_fallthru
      _
    // Predicated region
    $region86: #{impala_residual_stack.1} parent=1 // pred_check
      _
    $region87: #{impala_residual_stack.1} parent=1 // pred_check_branch
      %211 = sbr.rel (0) target = $region89
    $region88: #{impala_residual_stack.1} parent=1 // pred_region
      %212 = dma.done [#allocation3], 12288
    $region89: #{impala_residual_stack.1} parent=1 // pred_fallthru
      _
    // Predicated region
    $region90: #{impala_residual_stack.1} parent=1 // pred_check
      _
    $region91: #{impala_residual_stack.1} parent=1 // pred_check_branch
      %214 = sbr.rel (0) target = $region93
    $region92: #{impala_residual_stack.1} parent=1 // pred_region
      %215 = dma.done [#allocation5], 128
    $region93: #{impala_residual_stack.1} parent=1 // pred_fallthru
      _
    // Predicated region
    $region94: #{impala_residual_stack.1} parent=1 // pred_check
      _
    $region95: #{impala_residual_stack.1} parent=1 // pred_check_branch
      %217 = sbr.rel (0) target = $region97
    $region96: #{impala_residual_stack.1} parent=1 // pred_region
      %218 = dma.done [#allocation5], 128
    $region97: #{impala_residual_stack.1} parent=1 // pred_fallthru
      _
    // Predicated region
    $region98: #{impala_residual_stack.1} parent=1 // pred_check
      _
    $region99: #{impala_residual_stack.1} parent=1 // pred_check_branch
      %220 = sbr.rel (0) target = $region101
    $region100: #{impala_residual_stack.1} parent=1 // pred_region
      %221 = dma.done [#allocation8], 4096
    $region101: #{impala_residual_stack.1} parent=1 // pred_fallthru
      _
    // Predicated region
    $region102: #{impala_residual_stack.1} parent=1 // pred_check
      _
    $region103: #{impala_residual_stack.1} parent=1 // pred_check_branch
      %223 = sbr.rel (0) target = $region105
    $region104: #{impala_residual_stack.1} parent=1 // pred_region
      %224 = dma.done [#allocation8], 4096
    $region105: #{impala_residual_stack.1} parent=1 // pred_fallthru
      _
    // Predicated region
    $region106: #{impala_residual_stack.1} parent=1 // pred_check
      _
    $region107: #{impala_residual_stack.1} parent=1 // pred_check_branch
      %226 = sbr.rel (0) target = $region109
    $region108: #{impala_residual_stack.1} parent=1 // pred_region
      %227 = dma.done [#allocation11], 4096
    $region109: #{impala_residual_stack.1} parent=1 // pred_fallthru
      _
    // Predicated region
    $region110: #{impala_residual_stack.1} parent=1 // pred_check
      _
    $region111: #{impala_residual_stack.1} parent=1 // pred_check_branch
      %229 = sbr.rel (0) target = $region113
    $region112: #{impala_residual_stack.1} parent=1 // pred_region
      %230 = dma.done [#allocation11], 128
    $region113: #{impala_residual_stack.1} parent=1 // pred_fallthru
      _
    // Predicated region
    $region114: #{impala_residual_stack.1} parent=1 // pred_check
      _
    $region115: #{impala_residual_stack.1} parent=1 // pred_check_branch
      %232 = sbr.rel (0) target = $region117
    $region116: #{impala_residual_stack.1} parent=1 // pred_region
      %233 = dma.done [#allocation14], 128
    $region117: #{impala_residual_stack.1} parent=1 // pred_fallthru
      _
    // Predicated region
    $region118: #{impala_residual_stack.1} parent=1 // pred_check
      _
    $region119: #{impala_residual_stack.1} parent=1 // pred_check_branch
      %235 = sbr.rel (0) target = $region121
    $region120: #{impala_residual_stack.1} parent=1 // pred_region
      %236 = dma.done [#allocation14], 16
    $region121: #{impala_residual_stack.1} parent=1 // pred_fallthru
      _
    // Predicated region
    $region122: #{impala_residual_stack.1} parent=1 // pred_check
      _
    $region123: #{impala_residual_stack.1} parent=1 // pred_check_branch
      %238 = sbr.rel (0) target = $region125
    $region124: #{impala_residual_stack.1} parent=1 // pred_region
      %239 = dma.done [#allocation17], 6144
    $region125: #{impala_residual_stack.1} parent=1 // pred_fallthru
      _
    // Predicated region
    $region126: #{impala_residual_stack.1} parent=1 // pred_check
      _
    $region127: #{impala_residual_stack.1} parent=1 // pred_check_branch
      %241 = sbr.rel (0) target = $region129
    $region128: #{impala_residual_stack.1} parent=1 // pred_region
      %242 = dma.done [#allocation17], 16
    $region129: #{impala_residual_stack.1} parent=1 // pred_fallthru
      _
    // Predicated region
    $region130: #{impala_residual_stack.1} parent=1 // pred_check
      _
    $region131: #{impala_residual_stack.1} parent=1 // pred_check_branch
      %244 = sbr.rel (0) target = $region133
    $region132: #{impala_residual_stack.1} parent=1 // pred_region
      %245 = dma.done [#allocation20], 6144
    $region133: #{impala_residual_stack.1} parent=1 // pred_fallthru
      _
    // Predicated region
    $region134: #{impala_residual_stack.1} parent=1 // pred_check
      _
    $region135: #{impala_residual_stack.1} parent=1 // pred_check_branch
      %247 = sbr.rel (0) target = $region137
    $region136: #{impala_residual_stack.1} parent=1 // pred_region
      %248 = dma.done [#allocation20], 16
    $region137: #{impala_residual_stack.1} parent=1 // pred_fallthru
      _
    // Predicated region
    $region138: #{impala_residual_stack.1} parent=1 // pred_check
      _
    $region139: #{impala_residual_stack.1} parent=1 // pred_check_branch
      %250 = sbr.rel (0) target = $region141
    $region140: #{impala_residual_stack.1} parent=1 // pred_region
      %251 = dma.done [#allocation23], 6144
    $region141: #{impala_residual_stack.1} parent=1 // pred_fallthru
      _
    // Predicated region
    $region142: #{impala_residual_stack.1} parent=1 // pred_check
      _
    $region143: #{impala_residual_stack.1} parent=1 // pred_check_branch
      %253 = sbr.rel (0) target = $region145
    $region144: #{impala_residual_stack.1} parent=1 // pred_region
      %254 = dma.done [#allocation23], 16
    $region145: #{impala_residual_stack.1} parent=1 // pred_fallthru
      _
    %v255 = vld [vmem:[%s0] sm:$0xff]
    %v256 = vld [vmem:[%s0 + $0x8] sm:$0xff]
    %v257 = vld [vmem:[%s1] sm:$0xff]
    %v258 = vld [vmem:[%s1 + $0x8] sm:$0xff]
    %v259 = vld [vmem:[%s2] sm:$0xff]
    %v260 = vld [vmem:[%s2 + $0x8] sm:$0xff]
    %v261 = vld [vmem:[%s4] sm:$0x3]
    %vm262 = vcmask 130048
    %v264 = vsel %vm262, %v257, 0
    %v267 = vsel %vm262, %v258, 0
    %269 = vmatprep.subr.mxu0 0.0
    %270 = vmatpush1.msra.mxu0 0.0
    %271 = vmatprep.subr.mxu0 0.0
    %272 = vmatpush1.msra.mxu0 0.0
    %273 = vmatprep.subr.mxu0 0.0
    %274 = vmatpush1.msra.mxu0 0.0
    %275 = vmatprep.subr.mxu0 0.0
    %276 = vmatpush1.msra.mxu0 0.0
    %277 = vmatprep.subr.mxu0 0.0
    %278 = vmatpush1.msra.mxu0 0.0
    %279 = vmatprep.subr.mxu0 0.0
    %280 = vmatpush1.msra.mxu0 0.0
    %281 = vmatprep.subr.mxu0 0.0
    %282 = vmatpush1.msra.mxu0 0.0
    %283 = vmatprep.subr.mxu0 0.0
    %284 = vmatpush1.msra.mxu0 0.0
    %285 = vmatprep.subr.mxu0 0.0
    %286 = vmatpush1.msra.mxu0 0.0
    %287 = vmatprep.subr.mxu0 0.0
    %288 = vmatpush1.msra.mxu0 0.0
    %289 = vmatprep.subr.mxu0 0.0
    %290 = vmatpush1.msra.mxu0 0.0
    %291 = vmatprep.subr.mxu0 0.0
    %292 = vmatpush1.msra.mxu0 0.0
    %293 = vmatprep.subr.mxu0 0.0
    %294 = vmatpush1.msra.mxu0 0.0
    %295 = vmatprep.subr.mxu0 0.0
    %296 = vmatpush1.msra.mxu0 0.0
    %297 = vmatprep.subr.mxu0 0.0
    %298 = vmatpush1.msra.mxu0 %v256
    %299 = vmatprep.subr.mxu0 0.0
    %300 = vmatpush1.msra.mxu0 %v255
    %301 = vmatprep.subr.mxu0 0.0
    %302 = vmatpush2.msra.mxu0 0.0
    %303 = vmatprep.subr.mxu0 0.0
    %304 = vmatpush2.msra.mxu0 0.0
    %305 = vmatprep.subr.mxu0 0.0
    %306 = vmatpush2.msra.mxu0 0.0
    %307 = vmatprep.subr.mxu0 0.0
    %308 = vmatpush2.msra.mxu0 0.0
    %309 = vmatprep.subr.mxu0 0.0
    %310 = vmatpush2.msra.mxu0 0.0
    %311 = vmatprep.subr.mxu0 0.0
    %312 = vmatpush2.msra.mxu0 0.0
    %313 = vmatprep.subr.mxu0 0.0
    %314 = vmatpush2.msra.mxu0 0.0
    %315 = vmatprep.subr.mxu0 0.0
    %316 = vmatpush2.msra.mxu0 0.0
    %317 = vmatprep.subr.mxu0 0.0
    %318 = vmatpush2.msra.mxu0 0.0
    %319 = vmatprep.subr.mxu0 0.0
    %320 = vmatpush2.msra.mxu0 0.0
    %321 = vmatprep.subr.mxu0 0.0
    %322 = vmatpush2.msra.mxu0 0.0
    %323 = vmatprep.subr.mxu0 0.0
    %324 = vmatpush2.msra.mxu0 0.0
    %325 = vmatprep.subr.mxu0 0.0
    %326 = vmatpush2.msra.mxu0 0.0
    %327 = vmatprep.subr.mxu0 0.0
    %328 = vmatpush2.msra.mxu0 0.0
    %329 = vmatprep.subr.mxu0 0.0
    %330 = vmatpush2.msra.mxu0 0.0
    %331 = vmatprep.subr.mxu0 0.0
    %332 = vmatpush2.msra.mxu0 0.0
    %333 = vmatprep.mubr.f32.mxu0 0.0
    %334 = vmatmul.mubr.f32.gmra.mxu0 %v264
    %v335 = vpop.f32.mrf.mxu0
    %v336 = vadd.f32 0.0, %v335
    %v337 = vpop.f32.mrf.mxu0
    %338 = vmatprep.mubr.f32.mxu0 0.0
    %339 = vmatmul.mubr.f32.gmra.mxu0 %v267
    %v340 = vpop.f32.mrf.mxu0
    %v341 = vadd.f32 0.0, %v340
    %v342 = vpop.f32.mrf.mxu0
    %343 = vdwg.mxu0
    %v345 = vsel %vm262, %v259, 0
    %v348 = vsel %vm262, %v260, 0
    %350 = vmatprep.subr.mxu0 0.0
    %351 = vmatpush1.msra.mxu0 0.0
    %352 = vmatprep.subr.mxu0 0.0
    %353 = vmatpush1.msra.mxu0 0.0
    %354 = vmatprep.subr.mxu0 0.0
    %355 = vmatpush1.msra.mxu0 0.0
    %356 = vmatprep.subr.mxu0 0.0
    %357 = vmatpush1.msra.mxu0 0.0
    %358 = vmatprep.subr.mxu0 0.0
    %359 = vmatpush1.msra.mxu0 0.0
    %360 = vmatprep.subr.mxu0 0.0
    %361 = vmatpush1.msra.mxu0 0.0
    %362 = vmatprep.subr.mxu0 0.0
    %363 = vmatpush1.msra.mxu0 0.0
    %364 = vmatprep.subr.mxu0 0.0
    %365 = vmatpush1.msra.mxu0 0.0
    %366 = vmatprep.subr.mxu0 0.0
    %367 = vmatpush1.msra.mxu0 0.0
    %368 = vmatprep.subr.mxu0 0.0
    %369 = vmatpush1.msra.mxu0 0.0
    %370 = vmatprep.subr.mxu0 0.0
    %371 = vmatpush1.msra.mxu0 0.0
    %372 = vmatprep.subr.mxu0 0.0
    %373 = vmatpush1.msra.mxu0 0.0
    %374 = vmatprep.subr.mxu0 0.0
    %375 = vmatpush1.msra.mxu0 0.0
    %376 = vmatprep.subr.mxu0 0.0
    %377 = vmatpush1.msra.mxu0 0.0
    %378 = vmatprep.subr.mxu0 0.0
    %379 = vmatpush1.msra.mxu0 %v256
    %380 = vmatprep.subr.mxu0 0.0
    %381 = vmatpush1.msra.mxu0 %v255
    %382 = vmatprep.subr.mxu0 0.0
    %383 = vmatpush2.msra.mxu0 0.0
    %384 = vmatprep.subr.mxu0 0.0
    %385 = vmatpush2.msra.mxu0 0.0
    %386 = vmatprep.subr.mxu0 0.0
    %387 = vmatpush2.msra.mxu0 0.0
    %388 = vmatprep.subr.mxu0 0.0
    %389 = vmatpush2.msra.mxu0 0.0
    %390 = vmatprep.subr.mxu0 0.0
    %391 = vmatpush2.msra.mxu0 0.0
    %392 = vmatprep.subr.mxu0 0.0
    %393 = vmatpush2.msra.mxu0 0.0
    %394 = vmatprep.subr.mxu0 0.0
    %395 = vmatpush2.msra.mxu0 0.0
    %396 = vmatprep.subr.mxu0 0.0
    %397 = vmatpush2.msra.mxu0 0.0
    %398 = vmatprep.subr.mxu0 0.0
    %399 = vmatpush2.msra.mxu0 0.0
    %400 = vmatprep.subr.mxu0 0.0
    %401 = vmatpush2.msra.mxu0 0.0
    %402 = vmatprep.subr.mxu0 0.0
    %403 = vmatpush2.msra.mxu0 0.0
    %404 = vmatprep.subr.mxu0 0.0
    %405 = vmatpush2.msra.mxu0 0.0
    %406 = vmatprep.subr.mxu0 0.0
    %407 = vmatpush2.msra.mxu0 0.0
    %408 = vmatprep.subr.mxu0 0.0
    %409 = vmatpush2.msra.mxu0 0.0
    %410 = vmatprep.subr.mxu0 0.0
    %411 = vmatpush2.msra.mxu0 0.0
    %412 = vmatprep.subr.mxu0 0.0
    %413 = vmatpush2.msra.mxu0 0.0
    %414 = vmatprep.mubr.f32.mxu0 0.0
    %415 = vmatmul.mubr.f32.gmra.mxu0 %v345
    %v416 = vpop.f32.mrf.mxu0
    %v417 = vadd.f32 0.0, %v416
    %v418 = vpop.f32.mrf.mxu0
    %419 = vmatprep.mubr.f32.mxu0 0.0
    %420 = vmatmul.mubr.f32.gmra.mxu0 %v348
    %v421 = vpop.f32.mrf.mxu0
    %v422 = vadd.f32 0.0, %v421
    %v423 = vpop.f32.mrf.mxu0
    %424 = vdwg.mxu0
    %v425 = vld [vmem:[#allocation2] sm:$0xff]
    %v426 = vld [vmem:[#allocation2 + $0x8] sm:$0xff]
    %v427 = vld [vmem:[#allocation2 + $0x10] sm:$0xff]
    %v428 = vld [vmem:[#allocation2 + $0x18] sm:$0xff]
    %v429 = vld [vmem:[#allocation2 + $0x20] sm:$0xff]
    %v430 = vld [vmem:[#allocation2 + $0x28] sm:$0xff]
    %v431 = vld [vmem:[#allocation2 + $0x30] sm:$0xff]
    %v432 = vld [vmem:[#allocation2 + $0x38] sm:$0xff]
    %v433 = vld [vmem:[#allocation2 + $0x40] sm:$0xff]
    %v434 = vld [vmem:[#allocation2 + $0x48] sm:$0xff]
    %v435 = vld [vmem:[#allocation2 + $0x50] sm:$0xff]
    %v436 = vld [vmem:[#allocation2 + $0x58] sm:$0xff]
    %v437 = vld [vmem:[#allocation2 + $0x60] sm:$0xff]
    %v438 = vld [vmem:[#allocation2 + $0x68] sm:$0xff]
    %v439 = vld [vmem:[#allocation2 + $0x70] sm:$0xff]
    %v440 = vld [vmem:[#allocation2 + $0x78] sm:$0xff]
    %v441 = vld [vmem:[#allocation2 + $0x80] sm:$0xff]
    %v442 = vld [vmem:[#allocation2 + $0x88] sm:$0xff]
    %v443 = vld [vmem:[#allocation2 + $0x90] sm:$0xff]
    %v444 = vld [vmem:[#allocation2 + $0x98] sm:$0xff]
    %v445 = vld [vmem:[#allocation2 + $0xa0] sm:$0xff]
    %v446 = vld [vmem:[#allocation2 + $0xa8] sm:$0xff]
    %v447 = vld [vmem:[#allocation2 + $0xb0] sm:$0xff]
    %v448 = vld [vmem:[#allocation2 + $0xb8] sm:$0xff]
    %v449 = vld [vmem:[#allocation2 + $0xc0] sm:$0xff]
    %v450 = vld [vmem:[#allocation2 + $0xc8] sm:$0xff]
    %v451 = vld [vmem:[#allocation2 + $0xd0] sm:$0xff]
    %v452 = vld [vmem:[#allocation2 + $0xd8] sm:$0xff]
    %v453 = vld [vmem:[#allocation2 + $0xe0] sm:$0xff]
    %v454 = vld [vmem:[#allocation2 + $0xe8] sm:$0xff]
    %v455 = vld [vmem:[#allocation2 + $0xf0] sm:$0xff]
    %v456 = vld [vmem:[#allocation2 + $0xf8] sm:$0xff]
    %457 = vmatprep.subr.mxu0 %v456
    %458 = vmatpush1.msra.mxu0 %v455
    %459 = vmatprep.subr.mxu0 %v454
    %460 = vmatpush1.msra.mxu0 %v453
    %461 = vmatprep.subr.mxu0 %v452
    %462 = vmatpush1.msra.mxu0 %v451
    %463 = vmatprep.subr.mxu0 %v450
    %464 = vmatpush1.msra.mxu0 %v449
    %465 = vmatprep.subr.mxu0 %v448
    %466 = vmatpush1.msra.mxu0 %v447
    %467 = vmatprep.subr.mxu0 %v446
    %468 = vmatpush1.msra.mxu0 %v445
    %469 = vmatprep.subr.mxu0 %v444
    %470 = vmatpush1.msra.mxu0 %v443
    %471 = vmatprep.subr.mxu0 %v442
    %472 = vmatpush1.msra.mxu0 %v441
    %473 = vmatprep.subr.mxu0 %v440
    %474 = vmatpush1.msra.mxu0 %v439
    %475 = vmatprep.subr.mxu0 %v438
    %476 = vmatpush1.msra.mxu0 %v437
    %477 = vmatprep.subr.mxu0 %v436
    %478 = vmatpush1.msra.mxu0 %v435
    %479 = vmatprep.subr.mxu0 %v434
    %480 = vmatpush1.msra.mxu0 %v433
    %481 = vmatprep.subr.mxu0 %v432
    %482 = vmatpush1.msra.mxu0 %v431
    %483 = vmatprep.subr.mxu0 %v430
    %484 = vmatpush1.msra.mxu0 %v429
    %485 = vmatprep.subr.mxu0 %v428
    %486 = vmatpush1.msra.mxu0 %v427
    %487 = vmatprep.subr.mxu0 %v426
    %488 = vmatpush1.msra.mxu0 %v425
    %489 = vmatprep.subr.mxu0 0.0
    %490 = vmatpush2.msra.mxu0 0.0
    %491 = vmatprep.subr.mxu0 0.0
    %492 = vmatpush2.msra.mxu0 0.0
    %493 = vmatprep.subr.mxu0 0.0
    %494 = vmatpush2.msra.mxu0 0.0
    %495 = vmatprep.subr.mxu0 0.0
    %496 = vmatpush2.msra.mxu0 0.0
    %497 = vmatprep.subr.mxu0 0.0
    %498 = vmatpush2.msra.mxu0 0.0
    %499 = vmatprep.subr.mxu0 0.0
    %500 = vmatpush2.msra.mxu0 0.0
    %501 = vmatprep.subr.mxu0 0.0
    %502 = vmatpush2.msra.mxu0 0.0
    %503 = vmatprep.subr.mxu0 0.0
    %504 = vmatpush2.msra.mxu0 0.0
    %505 = vmatprep.subr.mxu0 0.0
    %506 = vmatpush2.msra.mxu0 0.0
    %507 = vmatprep.subr.mxu0 0.0
    %508 = vmatpush2.msra.mxu0 0.0
    %509 = vmatprep.subr.mxu0 0.0
    %510 = vmatpush2.msra.mxu0 0.0
    %511 = vmatprep.subr.mxu0 0.0
    %512 = vmatpush2.msra.mxu0 0.0
    %513 = vmatprep.subr.mxu0 0.0
    %514 = vmatpush2.msra.mxu0 0.0
    %515 = vmatprep.subr.mxu0 0.0
    %516 = vmatpush2.msra.mxu0 0.0
    %517 = vmatprep.subr.mxu0 0.0
    %518 = vmatpush2.msra.mxu0 0.0
    %519 = vmatprep.subr.mxu0 0.0
    %520 = vmatpush2.msra.mxu0 0.0
    %521 = vmatprep.mubr.f32.mxu0 0.0
    %522 = vmatmul.mubr.f32.gmra.mxu0 %v336
    %v523 = vpop.f32.mrf.mxu0
    %v524 = vadd.f32 0.0, %v523
    %v525 = vpop.f32.mrf.mxu0
    %v526 = vadd.f32 0.0, %v525
    %527 = vmatprep.mubr.f32.mxu0 0.0
    %528 = vmatmul.mubr.f32.gmra.mxu0 %v341
    %v529 = vpop.f32.mrf.mxu0
    %v530 = vadd.f32 0.0, %v529
    %v531 = vpop.f32.mrf.mxu0
    %v532 = vadd.f32 0.0, %v531
    %533 = vdwg.mxu0
    %v535 = vlaneseq
    %v536 = vshrl.u32 %v535, 7
    %v537 = vsub.s32 0, %v536
    %v538 = vrot.slane %v261, %v537
    %v539 = vlaneseq
    %v540 = vshrl.u32 %v539, 7
    %v541 = vsub.s32 1, %v540
    %v542 = vrot.slane %v261, %v541
    %v545 = vadd.f32 %v538, %v524
    %v546 = vadd.f32 %v542, %v526
    %v547 = vadd.f32 %v538, %v530
    %v548 = vadd.f32 %v542, %v532
    %s549 = scalar_lea.vmem [#allocation2], 256
    %v550 = vld [vmem:[%s549] sm:$0xff]
    %v551 = vld [vmem:[%s549 + $0x8] sm:$0xff]
    %v552 = vld [vmem:[%s549 + $0x10] sm:$0xff]
    %v553 = vld [vmem:[%s549 + $0x18] sm:$0xff]
    %v554 = vld [vmem:[%s549 + $0x20] sm:$0xff]
    %v555 = vld [vmem:[%s549 + $0x28] sm:$0xff]
    %v556 = vld [vmem:[%s549 + $0x30] sm:$0xff]
    %v557 = vld [vmem:[%s549 + $0x38] sm:$0xff]
    %v558 = vld [vmem:[%s549 + $0x40] sm:$0xff]
    %v559 = vld [vmem:[%s549 + $0x48] sm:$0xff]
    %v560 = vld [vmem:[%s549 + $0x50] sm:$0xff]
    %v561 = vld [vmem:[%s549 + $0x58] sm:$0xff]
    %v562 = vld [vmem:[%s549 + $0x60] sm:$0xff]
    %v563 = vld [vmem:[%s549 + $0x68] sm:$0xff]
    %v564 = vld [vmem:[%s549 + $0x70] sm:$0xff]
    %v565 = vld [vmem:[%s549 + $0x78] sm:$0xff]
    %v566 = vld [vmem:[%s549 + $0x80] sm:$0xff]
    %v567 = vld [vmem:[%s549 + $0x88] sm:$0xff]
    %v568 = vld [vmem:[%s549 + $0x90] sm:$0xff]
    %v569 = vld [vmem:[%s549 + $0x98] sm:$0xff]
    %v570 = vld [vmem:[%s549 + $0xa0] sm:$0xff]
    %v571 = vld [vmem:[%s549 + $0xa8] sm:$0xff]
    %v572 = vld [vmem:[%s549 + $0xb0] sm:$0xff]
    %v573 = vld [vmem:[%s549 + $0xb8] sm:$0xff]
    %v574 = vld [vmem:[%s549 + $0xc0] sm:$0xff]
    %v575 = vld [vmem:[%s549 + $0xc8] sm:$0xff]
    %v576 = vld [vmem:[%s549 + $0xd0] sm:$0xff]
    %v577 = vld [vmem:[%s549 + $0xd8] sm:$0xff]
    %v578 = vld [vmem:[%s549 + $0xe0] sm:$0xff]
    %v579 = vld [vmem:[%s549 + $0xe8] sm:$0xff]
    %v580 = vld [vmem:[%s549 + $0xf0] sm:$0xff]
    %v581 = vld [vmem:[%s549 + $0xf8] sm:$0xff]
    %582 = vmatprep.subr.mxu0 %v581
    %583 = vmatpush1.msra.mxu0 %v580
    %584 = vmatprep.subr.mxu0 %v579
    %585 = vmatpush1.msra.mxu0 %v578
    %586 = vmatprep.subr.mxu0 %v577
    %587 = vmatpush1.msra.mxu0 %v576
    %588 = vmatprep.subr.mxu0 %v575
    %589 = vmatpush1.msra.mxu0 %v574
    %590 = vmatprep.subr.mxu0 %v573
    %591 = vmatpush1.msra.mxu0 %v572
    %592 = vmatprep.subr.mxu0 %v571
    %593 = vmatpush1.msra.mxu0 %v570
    %594 = vmatprep.subr.mxu0 %v569
    %595 = vmatpush1.msra.mxu0 %v568
    %596 = vmatprep.subr.mxu0 %v567
    %597 = vmatpush1.msra.mxu0 %v566
    %598 = vmatprep.subr.mxu0 %v565
    %599 = vmatpush1.msra.mxu0 %v564
    %600 = vmatprep.subr.mxu0 %v563
    %601 = vmatpush1.msra.mxu0 %v562
    %602 = vmatprep.subr.mxu0 %v561
    %603 = vmatpush1.msra.mxu0 %v560
    %604 = vmatprep.subr.mxu0 %v559
    %605 = vmatpush1.msra.mxu0 %v558
    %606 = vmatprep.subr.mxu0 %v557
    %607 = vmatpush1.msra.mxu0 %v556
    %608 = vmatprep.subr.mxu0 %v555
    %609 = vmatpush1.msra.mxu0 %v554
    %610 = vmatprep.subr.mxu0 %v553
    %611 = vmatpush1.msra.mxu0 %v552
    %612 = vmatprep.subr.mxu0 %v551
    %613 = vmatpush1.msra.mxu0 %v550
    %614 = vmatprep.subr.mxu0 0.0
    %615 = vmatpush2.msra.mxu0 0.0
    %616 = vmatprep.subr.mxu0 0.0
    %617 = vmatpush2.msra.mxu0 0.0
    %618 = vmatprep.subr.mxu0 0.0
    %619 = vmatpush2.msra.mxu0 0.0
    %620 = vmatprep.subr.mxu0 0.0
    %621 = vmatpush2.msra.mxu0 0.0
    %622 = vmatprep.subr.mxu0 0.0
    %623 = vmatpush2.msra.mxu0 0.0
    %624 = vmatprep.subr.mxu0 0.0
    %625 = vmatpush2.msra.mxu0 0.0
    %626 = vmatprep.subr.mxu0 0.0
    %627 = vmatpush2.msra.mxu0 0.0
    %628 = vmatprep.subr.mxu0 0.0
    %629 = vmatpush2.msra.mxu0 0.0
    %630 = vmatprep.subr.mxu0 0.0
    %631 = vmatpush2.msra.mxu0 0.0
    %632 = vmatprep.subr.mxu0 0.0
    %633 = vmatpush2.msra.mxu0 0.0
    %634 = vmatprep.subr.mxu0 0.0
    %635 = vmatpush2.msra.mxu0 0.0
    %636 = vmatprep.subr.mxu0 0.0
    %637 = vmatpush2.msra.mxu0 0.0
    %638 = vmatprep.subr.mxu0 0.0
    %639 = vmatpush2.msra.mxu0 0.0
    %640 = vmatprep.subr.mxu0 0.0
    %641 = vmatpush2.msra.mxu0 0.0
    %642 = vmatprep.subr.mxu0 0.0
    %643 = vmatpush2.msra.mxu0 0.0
    %644 = vmatprep.subr.mxu0 0.0
    %645 = vmatpush2.msra.mxu0 0.0
    %646 = vmatprep.mubr.f32.mxu0 0.0
    %647 = vmatmul.mubr.f32.gmra.mxu0 %v255
    %v648 = vpop.f32.mrf.mxu0
    %v649 = vadd.f32 0.0, %v648
    %v650 = vpop.f32.mrf.mxu0
    %v651 = vadd.f32 0.0, %v650
    %652 = vmatprep.mubr.f32.mxu0 0.0
    %653 = vmatmul.mubr.f32.gmra.mxu0 %v256
    %v654 = vpop.f32.mrf.mxu0
    %v655 = vadd.f32 0.0, %v654
    %v656 = vpop.f32.mrf.mxu0
    %v657 = vadd.f32 0.0, %v656
    %658 = vdwg.mxu0
    %v659 = vadd.f32 %v545, %v649
    %v660 = vadd.f32 %v546, %v651
    %v661 = vadd.f32 %v547, %v655
    %v662 = vadd.f32 %v548, %v657
    %s663 = scalar_lea.vmem [#allocation2], 512
    %v664 = vld [vmem:[%s663] sm:$0xff]
    %v665 = vld [vmem:[%s663 + $0x8] sm:$0xff]
    %v666 = vld [vmem:[%s663 + $0x10] sm:$0xff]
    %v667 = vld [vmem:[%s663 + $0x18] sm:$0xff]
    %v668 = vld [vmem:[%s663 + $0x20] sm:$0xff]
    %v669 = vld [vmem:[%s663 + $0x28] sm:$0xff]
    %v670 = vld [vmem:[%s663 + $0x30] sm:$0xff]
    %v671 = vld [vmem:[%s663 + $0x38] sm:$0xff]
    %v672 = vld [vmem:[%s663 + $0x40] sm:$0xff]
    %v673 = vld [vmem:[%s663 + $0x48] sm:$0xff]
    %v674 = vld [vmem:[%s663 + $0x50] sm:$0xff]
    %v675 = vld [vmem:[%s663 + $0x58] sm:$0xff]
    %v676 = vld [vmem:[%s663 + $0x60] sm:$0xff]
    %v677 = vld [vmem:[%s663 + $0x68] sm:$0xff]
    %v678 = vld [vmem:[%s663 + $0x70] sm:$0xff]
    %v679 = vld [vmem:[%s663 + $0x78] sm:$0xff]
    %v680 = vld [vmem:[%s663 + $0x80] sm:$0xff]
    %v681 = vld [vmem:[%s663 + $0x88] sm:$0xff]
    %v682 = vld [vmem:[%s663 + $0x90] sm:$0xff]
    %v683 = vld [vmem:[%s663 + $0x98] sm:$0xff]
    %v684 = vld [vmem:[%s663 + $0xa0] sm:$0xff]
    %v685 = vld [vmem:[%s663 + $0xa8] sm:$0xff]
    %v686 = vld [vmem:[%s663 + $0xb0] sm:$0xff]
    %v687 = vld [vmem:[%s663 + $0xb8] sm:$0xff]
    %v688 = vld [vmem:[%s663 + $0xc0] sm:$0xff]
    %v689 = vld [vmem:[%s663 + $0xc8] sm:$0xff]
    %v690 = vld [vmem:[%s663 + $0xd0] sm:$0xff]
    %v691 = vld [vmem:[%s663 + $0xd8] sm:$0xff]
    %v692 = vld [vmem:[%s663 + $0xe0] sm:$0xff]
    %v693 = vld [vmem:[%s663 + $0xe8] sm:$0xff]
    %v694 = vld [vmem:[%s663 + $0xf0] sm:$0xff]
    %v695 = vld [vmem:[%s663 + $0xf8] sm:$0xff]
    %696 = vmatprep.subr.mxu0 %v695
    %697 = vmatpush1.msra.mxu0 %v694
    %698 = vmatprep.subr.mxu0 %v693
    %699 = vmatpush1.msra.mxu0 %v692
    %700 = vmatprep.subr.mxu0 %v691
    %701 = vmatpush1.msra.mxu0 %v690
    %702 = vmatprep.subr.mxu0 %v689
    %703 = vmatpush1.msra.mxu0 %v688
    %704 = vmatprep.subr.mxu0 %v687
    %705 = vmatpush1.msra.mxu0 %v686
    %706 = vmatprep.subr.mxu0 %v685
    %707 = vmatpush1.msra.mxu0 %v684
    %708 = vmatprep.subr.mxu0 %v683
    %709 = vmatpush1.msra.mxu0 %v682
    %710 = vmatprep.subr.mxu0 %v681
    %711 = vmatpush1.msra.mxu0 %v680
    %712 = vmatprep.subr.mxu0 %v679
    %713 = vmatpush1.msra.mxu0 %v678
    %714 = vmatprep.subr.mxu0 %v677
    %715 = vmatpush1.msra.mxu0 %v676
    %716 = vmatprep.subr.mxu0 %v675
    %717 = vmatpush1.msra.mxu0 %v674
    %718 = vmatprep.subr.mxu0 %v673
    %719 = vmatpush1.msra.mxu0 %v672
    %720 = vmatprep.subr.mxu0 %v671
    %721 = vmatpush1.msra.mxu0 %v670
    %722 = vmatprep.subr.mxu0 %v669
    %723 = vmatpush1.msra.mxu0 %v668
    %724 = vmatprep.subr.mxu0 %v667
    %725 = vmatpush1.msra.mxu0 %v666
    %726 = vmatprep.subr.mxu0 %v665
    %727 = vmatpush1.msra.mxu0 %v664
    %728 = vmatprep.subr.mxu0 0.0
    %729 = vmatpush2.msra.mxu0 0.0
    %730 = vmatprep.subr.mxu0 0.0
    %731 = vmatpush2.msra.mxu0 0.0
    %732 = vmatprep.subr.mxu0 0.0
    %733 = vmatpush2.msra.mxu0 0.0
    %734 = vmatprep.subr.mxu0 0.0
    %735 = vmatpush2.msra.mxu0 0.0
    %736 = vmatprep.subr.mxu0 0.0
    %737 = vmatpush2.msra.mxu0 0.0
    %738 = vmatprep.subr.mxu0 0.0
    %739 = vmatpush2.msra.mxu0 0.0
    %740 = vmatprep.subr.mxu0 0.0
    %741 = vmatpush2.msra.mxu0 0.0
    %742 = vmatprep.subr.mxu0 0.0
    %743 = vmatpush2.msra.mxu0 0.0
    %744 = vmatprep.subr.mxu0 0.0
    %745 = vmatpush2.msra.mxu0 0.0
    %746 = vmatprep.subr.mxu0 0.0
    %747 = vmatpush2.msra.mxu0 0.0
    %748 = vmatprep.subr.mxu0 0.0
    %749 = vmatpush2.msra.mxu0 0.0
    %750 = vmatprep.subr.mxu0 0.0
    %751 = vmatpush2.msra.mxu0 0.0
    %752 = vmatprep.subr.mxu0 0.0
    %753 = vmatpush2.msra.mxu0 0.0
    %754 = vmatprep.subr.mxu0 0.0
    %755 = vmatpush2.msra.mxu0 0.0
    %756 = vmatprep.subr.mxu0 0.0
    %757 = vmatpush2.msra.mxu0 0.0
    %758 = vmatprep.subr.mxu0 0.0
    %759 = vmatpush2.msra.mxu0 0.0
    %760 = vmatprep.mubr.f32.mxu0 0.0
    %761 = vmatmul.mubr.f32.gmra.mxu0 %v417
    %v762 = vpop.f32.mrf.mxu0
    %v763 = vadd.f32 0.0, %v762
    %v764 = vpop.f32.mrf.mxu0
    %v765 = vadd.f32 0.0, %v764
    %766 = vmatprep.mubr.f32.mxu0 0.0
    %767 = vmatmul.mubr.f32.gmra.mxu0 %v422
    %v768 = vpop.f32.mrf.mxu0
    %v769 = vadd.f32 0.0, %v768
    %v770 = vpop.f32.mrf.mxu0
    %v771 = vadd.f32 0.0, %v770
    %772 = vdwg.mxu0
    %v773 = vadd.f32 %v659, %v763
    %v774 = vadd.f32 %v660, %v765
    %v775 = vadd.f32 %v661, %v769
    %v776 = vadd.f32 %v662, %v771
    %v777 = vld [vmem:[#allocation4] sm:$0xff]
    %v779 = vsel %vm262, %v777, 0
    %781 = vmatprep.subr.mxu0 0.0
    %782 = vmatpush1.msra.mxu0 0.0
    %783 = vmatprep.subr.mxu0 0.0
    %784 = vmatpush1.msra.mxu0 0.0
    %785 = vmatprep.subr.mxu0 0.0
    %786 = vmatpush1.msra.mxu0 0.0
    %787 = vmatprep.subr.mxu0 0.0
    %788 = vmatpush1.msra.mxu0 0.0
    %789 = vmatprep.subr.mxu0 0.0
    %790 = vmatpush1.msra.mxu0 0.0
    %791 = vmatprep.subr.mxu0 0.0
    %792 = vmatpush1.msra.mxu0 0.0
    %793 = vmatprep.subr.mxu0 0.0
    %794 = vmatpush1.msra.mxu0 0.0
    %795 = vmatprep.subr.mxu0 0.0
    %796 = vmatpush1.msra.mxu0 0.0
    %797 = vmatprep.subr.mxu0 0.0
    %798 = vmatpush1.msra.mxu0 0.0
    %799 = vmatprep.subr.mxu0 0.0
    %800 = vmatpush1.msra.mxu0 0.0
    %801 = vmatprep.subr.mxu0 0.0
    %802 = vmatpush1.msra.mxu0 0.0
    %803 = vmatprep.subr.mxu0 0.0
    %804 = vmatpush1.msra.mxu0 0.0
    %805 = vmatprep.subr.mxu0 0.0
    %806 = vmatpush1.msra.mxu0 0.0
    %807 = vmatprep.subr.mxu0 0.0
    %808 = vmatpush1.msra.mxu0 0.0
    %809 = vmatprep.subr.mxu0 %v776
    %810 = vmatpush1.msra.mxu0 %v775
    %811 = vmatprep.subr.mxu0 %v774
    %812 = vmatpush1.msra.mxu0 %v773
    %813 = vmatprep.subr.mxu0 0.0
    %814 = vmatpush2.msra.mxu0 0.0
    %815 = vmatprep.subr.mxu0 0.0
    %816 = vmatpush2.msra.mxu0 0.0
    %817 = vmatprep.subr.mxu0 0.0
    %818 = vmatpush2.msra.mxu0 0.0
    %819 = vmatprep.subr.mxu0 0.0
    %820 = vmatpush2.msra.mxu0 0.0
    %821 = vmatprep.subr.mxu0 0.0
    %822 = vmatpush2.msra.mxu0 0.0
    %823 = vmatprep.subr.mxu0 0.0
    %824 = vmatpush2.msra.mxu0 0.0
    %825 = vmatprep.subr.mxu0 0.0
    %826 = vmatpush2.msra.mxu0 0.0
    %827 = vmatprep.subr.mxu0 0.0
    %828 = vmatpush2.msra.mxu0 0.0
    %829 = vmatprep.subr.mxu0 0.0
    %830 = vmatpush2.msra.mxu0 0.0
    %831 = vmatprep.subr.mxu0 0.0
    %832 = vmatpush2.msra.mxu0 0.0
    %833 = vmatprep.subr.mxu0 0.0
    %834 = vmatpush2.msra.mxu0 0.0
    %835 = vmatprep.subr.mxu0 0.0
    %836 = vmatpush2.msra.mxu0 0.0
    %837 = vmatprep.subr.mxu0 0.0
    %838 = vmatpush2.msra.mxu0 0.0
    %839 = vmatprep.subr.mxu0 0.0
    %840 = vmatpush2.msra.mxu0 0.0
    %841 = vmatprep.subr.mxu0 0.0
    %842 = vmatpush2.msra.mxu0 0.0
    %843 = vmatprep.subr.mxu0 0.0
    %844 = vmatpush2.msra.mxu0 0.0
    %845 = vmatprep.mubr.f32.mxu0 0.0
    %846 = vmatmul.mubr.f32.gmra.mxu0 %v779
    %v847 = vpop.f32.mrf.mxu0
    %v848 = vadd.f32 0.0, %v847
    %v849 = vpop.f32.mrf.mxu0
    %v850 = vadd.f32 0.0, %v849
    %851 = vdwg.mxu0
    %v852 = vld [vmem:[#allocation6] sm:$0xff]
    %v854 = vsel %vm262, %v852, 0
    %856 = vmatprep.subr.mxu0 0.0
    %857 = vmatpush1.msra.mxu0 0.0
    %858 = vmatprep.subr.mxu0 0.0
    %859 = vmatpush1.msra.mxu0 0.0
    %860 = vmatprep.subr.mxu0 0.0
    %861 = vmatpush1.msra.mxu0 0.0
    %862 = vmatprep.subr.mxu0 0.0
    %863 = vmatpush1.msra.mxu0 0.0
    %864 = vmatprep.subr.mxu0 0.0
    %865 = vmatpush1.msra.mxu0 0.0
    %866 = vmatprep.subr.mxu0 0.0
    %867 = vmatpush1.msra.mxu0 0.0
    %868 = vmatprep.subr.mxu0 0.0
    %869 = vmatpush1.msra.mxu0 0.0
    %870 = vmatprep.subr.mxu0 0.0
    %871 = vmatpush1.msra.mxu0 0.0
    %872 = vmatprep.subr.mxu0 0.0
    %873 = vmatpush1.msra.mxu0 0.0
    %874 = vmatprep.subr.mxu0 0.0
    %875 = vmatpush1.msra.mxu0 0.0
    %876 = vmatprep.subr.mxu0 0.0
    %877 = vmatpush1.msra.mxu0 0.0
    %878 = vmatprep.subr.mxu0 0.0
    %879 = vmatpush1.msra.mxu0 0.0
    %880 = vmatprep.subr.mxu0 0.0
    %881 = vmatpush1.msra.mxu0 0.0
    %882 = vmatprep.subr.mxu0 0.0
    %883 = vmatpush1.msra.mxu0 0.0
    %884 = vmatprep.subr.mxu0 %v776
    %885 = vmatpush1.msra.mxu0 %v775
    %886 = vmatprep.subr.mxu0 %v774
    %887 = vmatpush1.msra.mxu0 %v773
    %888 = vmatprep.subr.mxu0 0.0
    %889 = vmatpush2.msra.mxu0 0.0
    %890 = vmatprep.subr.mxu0 0.0
    %891 = vmatpush2.msra.mxu0 0.0
    %892 = vmatprep.subr.mxu0 0.0
    %893 = vmatpush2.msra.mxu0 0.0
    %894 = vmatprep.subr.mxu0 0.0
    %895 = vmatpush2.msra.mxu0 0.0
    %896 = vmatprep.subr.mxu0 0.0
    %897 = vmatpush2.msra.mxu0 0.0
    %898 = vmatprep.subr.mxu0 0.0
    %899 = vmatpush2.msra.mxu0 0.0
    %900 = vmatprep.subr.mxu0 0.0
    %901 = vmatpush2.msra.mxu0 0.0
    %902 = vmatprep.subr.mxu0 0.0
    %903 = vmatpush2.msra.mxu0 0.0
    %904 = vmatprep.subr.mxu0 0.0
    %905 = vmatpush2.msra.mxu0 0.0
    %906 = vmatprep.subr.mxu0 0.0
    %907 = vmatpush2.msra.mxu0 0.0
    %908 = vmatprep.subr.mxu0 0.0
    %909 = vmatpush2.msra.mxu0 0.0
    %910 = vmatprep.subr.mxu0 0.0
    %911 = vmatpush2.msra.mxu0 0.0
    %912 = vmatprep.subr.mxu0 0.0
    %913 = vmatpush2.msra.mxu0 0.0
    %914 = vmatprep.subr.mxu0 0.0
    %915 = vmatpush2.msra.mxu0 0.0
    %916 = vmatprep.subr.mxu0 0.0
    %917 = vmatpush2.msra.mxu0 0.0
    %918 = vmatprep.subr.mxu0 0.0
    %919 = vmatpush2.msra.mxu0 0.0
    %920 = vmatprep.mubr.f32.mxu0 0.0
    %921 = vmatmul.mubr.f32.gmra.mxu0 %v854
    %v922 = vpop.f32.mrf.mxu0
    %v923 = vadd.f32 0.0, %v922
    %v924 = vpop.f32.mrf.mxu0
    %v925 = vadd.f32 0.0, %v924
    %926 = vdwg.mxu0
    %v927 = vmax.f32 %v848, %v923
    %v928 = vmax.f32 %v850, %v925
    %v929 = vld [vmem:[%s7] sm:$0xff]
    %v931 = vsel %vm262, %v929, 0
    %933 = vmatprep.subr.mxu0 0.0
    %934 = vmatpush1.msra.mxu0 0.0
    %935 = vmatprep.subr.mxu0 0.0
    %936 = vmatpush1.msra.mxu0 0.0
    %937 = vmatprep.subr.mxu0 0.0
    %938 = vmatpush1.msra.mxu0 0.0
    %939 = vmatprep.subr.mxu0 0.0
    %940 = vmatpush1.msra.mxu0 0.0
    %941 = vmatprep.subr.mxu0 0.0
    %942 = vmatpush1.msra.mxu0 0.0
    %943 = vmatprep.subr.mxu0 0.0
    %944 = vmatpush1.msra.mxu0 0.0
    %945 = vmatprep.subr.mxu0 0.0
    %946 = vmatpush1.msra.mxu0 0.0
    %947 = vmatprep.subr.mxu0 0.0
    %948 = vmatpush1.msra.mxu0 0.0
    %949 = vmatprep.subr.mxu0 0.0
    %950 = vmatpush1.msra.mxu0 0.0
    %951 = vmatprep.subr.mxu0 0.0
    %952 = vmatpush1.msra.mxu0 0.0
    %953 = vmatprep.subr.mxu0 0.0
    %954 = vmatpush1.msra.mxu0 0.0
    %955 = vmatprep.subr.mxu0 0.0
    %956 = vmatpush1.msra.mxu0 0.0
    %957 = vmatprep.subr.mxu0 0.0
    %958 = vmatpush1.msra.mxu0 0.0
    %959 = vmatprep.subr.mxu0 0.0
    %960 = vmatpush1.msra.mxu0 0.0
    %961 = vmatprep.subr.mxu0 %v776
    %962 = vmatpush1.msra.mxu0 %v775
    %963 = vmatprep.subr.mxu0 %v774
    %964 = vmatpush1.msra.mxu0 %v773
    %965 = vmatprep.subr.mxu0 0.0
    %966 = vmatpush2.msra.mxu0 0.0
    %967 = vmatprep.subr.mxu0 0.0
    %968 = vmatpush2.msra.mxu0 0.0
    %969 = vmatprep.subr.mxu0 0.0
    %970 = vmatpush2.msra.mxu0 0.0
    %971 = vmatprep.subr.mxu0 0.0
    %972 = vmatpush2.msra.mxu0 0.0
    %973 = vmatprep.subr.mxu0 0.0
    %974 = vmatpush2.msra.mxu0 0.0
    %975 = vmatprep.subr.mxu0 0.0
    %976 = vmatpush2.msra.mxu0 0.0
    %977 = vmatprep.subr.mxu0 0.0
    %978 = vmatpush2.msra.mxu0 0.0
    %979 = vmatprep.subr.mxu0 0.0
    %980 = vmatpush2.msra.mxu0 0.0
    %981 = vmatprep.subr.mxu0 0.0
    %982 = vmatpush2.msra.mxu0 0.0
    %983 = vmatprep.subr.mxu0 0.0
    %984 = vmatpush2.msra.mxu0 0.0
    %985 = vmatprep.subr.mxu0 0.0
    %986 = vmatpush2.msra.mxu0 0.0
    %987 = vmatprep.subr.mxu0 0.0
    %988 = vmatpush2.msra.mxu0 0.0
    %989 = vmatprep.subr.mxu0 0.0
    %990 = vmatpush2.msra.mxu0 0.0
    %991 = vmatprep.subr.mxu0 0.0
    %992 = vmatpush2.msra.mxu0 0.0
    %993 = vmatprep.subr.mxu0 0.0
    %994 = vmatpush2.msra.mxu0 0.0
    %995 = vmatprep.subr.mxu0 0.0
    %996 = vmatpush2.msra.mxu0 0.0
    %997 = vmatprep.mubr.f32.mxu0 0.0
    %998 = vmatmul.mubr.f32.gmra.mxu0 %v931
    %v999 = vpop.f32.mrf.mxu0
    %v1000 = vadd.f32 0.0, %v999
    %v1001 = vpop.f32.mrf.mxu0
    %v1002 = vadd.f32 0.0, %v1001
    %1003 = vdwg.mxu0
    %v1004 = vmax.f32 %v927, %v1000
    %v1005 = vmax.f32 %v928, %v1002
    %v1006 = vld [vmem:[#allocation7] sm:$0xff]
    %v1007 = vld [vmem:[#allocation7 + $0x8] sm:$0xff]
    %v1008 = vld [vmem:[#allocation7 + $0x10] sm:$0xff]
    %v1009 = vld [vmem:[#allocation7 + $0x18] sm:$0xff]
    %v1010 = vld [vmem:[#allocation7 + $0x20] sm:$0xff]
    %v1011 = vld [vmem:[#allocation7 + $0x28] sm:$0xff]
    %v1012 = vld [vmem:[#allocation7 + $0x30] sm:$0xff]
    %v1013 = vld [vmem:[#allocation7 + $0x38] sm:$0xff]
    %v1014 = vld [vmem:[#allocation7 + $0x40] sm:$0xff]
    %v1015 = vld [vmem:[#allocation7 + $0x48] sm:$0xff]
    %v1016 = vld [vmem:[#allocation7 + $0x50] sm:$0xff]
    %v1017 = vld [vmem:[#allocation7 + $0x58] sm:$0xff]
    %v1018 = vld [vmem:[#allocation7 + $0x60] sm:$0xff]
    %v1019 = vld [vmem:[#allocation7 + $0x68] sm:$0xff]
    %v1020 = vld [vmem:[#allocation7 + $0x70] sm:$0xff]
    %v1021 = vld [vmem:[#allocation7 + $0x78] sm:$0xff]
    %v1022 = vld [vmem:[#allocation7 + $0x80] sm:$0xff]
    %v1023 = vld [vmem:[#allocation7 + $0x88] sm:$0xff]
    %v1024 = vld [vmem:[#allocation7 + $0x90] sm:$0xff]
    %v1025 = vld [vmem:[#allocation7 + $0x98] sm:$0xff]
    %v1026 = vld [vmem:[#allocation7 + $0xa0] sm:$0xff]
    %v1027 = vld [vmem:[#allocation7 + $0xa8] sm:$0xff]
    %v1028 = vld [vmem:[#allocation7 + $0xb0] sm:$0xff]
    %v1029 = vld [vmem:[#allocation7 + $0xb8] sm:$0xff]
    %v1030 = vld [vmem:[#allocation7 + $0xc0] sm:$0xff]
    %v1031 = vld [vmem:[#allocation7 + $0xc8] sm:$0xff]
    %v1032 = vld [vmem:[#allocation7 + $0xd0] sm:$0xff]
    %v1033 = vld [vmem:[#allocation7 + $0xd8] sm:$0xff]
    %v1034 = vld [vmem:[#allocation7 + $0xe0] sm:$0xff]
    %v1035 = vld [vmem:[#allocation7 + $0xe8] sm:$0xff]
    %v1036 = vld [vmem:[#allocation7 + $0xf0] sm:$0xff]
    %v1037 = vld [vmem:[#allocation7 + $0xf8] sm:$0xff]
    %1038 = vmatprep.subr.mxu0 0.0
    %1039 = vmatpush1.msra.mxu0 %v1021
    %1040 = vmatprep.subr.mxu0 0.0
    %1041 = vmatpush1.msra.mxu0 %v1020
    %1042 = vmatprep.subr.mxu0 0.0
    %1043 = vmatpush1.msra.mxu0 %v1019
    %1044 = vmatprep.subr.mxu0 0.0
    %1045 = vmatpush1.msra.mxu0 %v1018
    %1046 = vmatprep.subr.mxu0 0.0
    %1047 = vmatpush1.msra.mxu0 %v1017
    %1048 = vmatprep.subr.mxu0 0.0
    %1049 = vmatpush1.msra.mxu0 %v1016
    %1050 = vmatprep.subr.mxu0 0.0
    %1051 = vmatpush1.msra.mxu0 %v1015
    %1052 = vmatprep.subr.mxu0 0.0
    %1053 = vmatpush1.msra.mxu0 %v1014
    %1054 = vmatprep.subr.mxu0 0.0
    %1055 = vmatpush1.msra.mxu0 %v1013
    %1056 = vmatprep.subr.mxu0 0.0
    %1057 = vmatpush1.msra.mxu0 %v1012
    %1058 = vmatprep.subr.mxu0 0.0
    %1059 = vmatpush1.msra.mxu0 %v1011
    %1060 = vmatprep.subr.mxu0 0.0
    %1061 = vmatpush1.msra.mxu0 %v1010
    %1062 = vmatprep.subr.mxu0 0.0
    %1063 = vmatpush1.msra.mxu0 %v1009
    %1064 = vmatprep.subr.mxu0 0.0
    %1065 = vmatpush1.msra.mxu0 %v1008
    %1066 = vmatprep.subr.mxu0 0.0
    %1067 = vmatpush1.msra.mxu0 %v1007
    %1068 = vmatprep.subr.mxu0 0.0
    %1069 = vmatpush1.msra.mxu0 %v1006
    %1070 = vmatprep.subr.mxu0 0.0
    %1071 = vmatpush2.msra.mxu0 %v1037
    %1072 = vmatprep.subr.mxu0 0.0
    %1073 = vmatpush2.msra.mxu0 %v1036
    %1074 = vmatprep.subr.mxu0 0.0
    %1075 = vmatpush2.msra.mxu0 %v1035
    %1076 = vmatprep.subr.mxu0 0.0
    %1077 = vmatpush2.msra.mxu0 %v1034
    %1078 = vmatprep.subr.mxu0 0.0
    %1079 = vmatpush2.msra.mxu0 %v1033
    %1080 = vmatprep.subr.mxu0 0.0
    %1081 = vmatpush2.msra.mxu0 %v1032
    %1082 = vmatprep.subr.mxu0 0.0
    %1083 = vmatpush2.msra.mxu0 %v1031
    %1084 = vmatprep.subr.mxu0 0.0
    %1085 = vmatpush2.msra.mxu0 %v1030
    %1086 = vmatprep.subr.mxu0 0.0
    %1087 = vmatpush2.msra.mxu0 %v1029
    %1088 = vmatprep.subr.mxu0 0.0
    %1089 = vmatpush2.msra.mxu0 %v1028
    %1090 = vmatprep.subr.mxu0 0.0
    %1091 = vmatpush2.msra.mxu0 %v1027
    %1092 = vmatprep.subr.mxu0 0.0
    %1093 = vmatpush2.msra.mxu0 %v1026
    %1094 = vmatprep.subr.mxu0 0.0
    %1095 = vmatpush2.msra.mxu0 %v1025
    %1096 = vmatprep.subr.mxu0 0.0
    %1097 = vmatpush2.msra.mxu0 %v1024
    %1098 = vmatprep.subr.mxu0 0.0
    %1099 = vmatpush2.msra.mxu0 %v1023
    %1100 = vmatprep.subr.mxu0 0.0
    %1101 = vmatpush2.msra.mxu0 %v1022
    %1102 = vmatprep.mubr.f32.mxu0 %v1005
    %1103 = vmatmul.mubr.f32.gmra.mxu0 %v1004
    %v1104 = vpop.f32.mrf.mxu0
    %v1105 = vadd.f32 0.0, %v1104
    %v1106 = vpop.f32.mrf.mxu0
    %1107 = vdwg.mxu0
    %v1108 = vld [vmem:[#allocation9] sm:$0xff]
    %v1109 = vld [vmem:[#allocation9 + $0x8] sm:$0xff]
    %v1110 = vld [vmem:[#allocation9 + $0x10] sm:$0xff]
    %v1111 = vld [vmem:[#allocation9 + $0x18] sm:$0xff]
    %v1112 = vld [vmem:[#allocation9 + $0x20] sm:$0xff]
    %v1113 = vld [vmem:[#allocation9 + $0x28] sm:$0xff]
    %v1114 = vld [vmem:[#allocation9 + $0x30] sm:$0xff]
    %v1115 = vld [vmem:[#allocation9 + $0x38] sm:$0xff]
    %v1116 = vld [vmem:[#allocation9 + $0x40] sm:$0xff]
    %v1117 = vld [vmem:[#allocation9 + $0x48] sm:$0xff]
    %v1118 = vld [vmem:[#allocation9 + $0x50] sm:$0xff]
    %v1119 = vld [vmem:[#allocation9 + $0x58] sm:$0xff]
    %v1120 = vld [vmem:[#allocation9 + $0x60] sm:$0xff]
    %v1121 = vld [vmem:[#allocation9 + $0x68] sm:$0xff]
    %v1122 = vld [vmem:[#allocation9 + $0x70] sm:$0xff]
    %v1123 = vld [vmem:[#allocation9 + $0x78] sm:$0xff]
    %v1124 = vld [vmem:[#allocation9 + $0x80] sm:$0xff]
    %v1125 = vld [vmem:[#allocation9 + $0x88] sm:$0xff]
    %v1126 = vld [vmem:[#allocation9 + $0x90] sm:$0xff]
    %v1127 = vld [vmem:[#allocation9 + $0x98] sm:$0xff]
    %v1128 = vld [vmem:[#allocation9 + $0xa0] sm:$0xff]
    %v1129 = vld [vmem:[#allocation9 + $0xa8] sm:$0xff]
    %v1130 = vld [vmem:[#allocation9 + $0xb0] sm:$0xff]
    %v1131 = vld [vmem:[#allocation9 + $0xb8] sm:$0xff]
    %v1132 = vld [vmem:[#allocation9 + $0xc0] sm:$0xff]
    %v1133 = vld [vmem:[#allocation9 + $0xc8] sm:$0xff]
    %v1134 = vld [vmem:[#allocation9 + $0xd0] sm:$0xff]
    %v1135 = vld [vmem:[#allocation9 + $0xd8] sm:$0xff]
    %v1136 = vld [vmem:[#allocation9 + $0xe0] sm:$0xff]
    %v1137 = vld [vmem:[#allocation9 + $0xe8] sm:$0xff]
    %v1138 = vld [vmem:[#allocation9 + $0xf0] sm:$0xff]
    %v1139 = vld [vmem:[#allocation9 + $0xf8] sm:$0xff]
    %1140 = vmatprep.subr.mxu0 0.0
    %1141 = vmatpush1.msra.mxu0 %v1123
    %1142 = vmatprep.subr.mxu0 0.0
    %1143 = vmatpush1.msra.mxu0 %v1122
    %1144 = vmatprep.subr.mxu0 0.0
    %1145 = vmatpush1.msra.mxu0 %v1121
    %1146 = vmatprep.subr.mxu0 0.0
    %1147 = vmatpush1.msra.mxu0 %v1120
    %1148 = vmatprep.subr.mxu0 0.0
    %1149 = vmatpush1.msra.mxu0 %v1119
    %1150 = vmatprep.subr.mxu0 0.0
    %1151 = vmatpush1.msra.mxu0 %v1118
    %1152 = vmatprep.subr.mxu0 0.0
    %1153 = vmatpush1.msra.mxu0 %v1117
    %1154 = vmatprep.subr.mxu0 0.0
    %1155 = vmatpush1.msra.mxu0 %v1116
    %1156 = vmatprep.subr.mxu0 0.0
    %1157 = vmatpush1.msra.mxu0 %v1115
    %1158 = vmatprep.subr.mxu0 0.0
    %1159 = vmatpush1.msra.mxu0 %v1114
    %1160 = vmatprep.subr.mxu0 0.0
    %1161 = vmatpush1.msra.mxu0 %v1113
    %1162 = vmatprep.subr.mxu0 0.0
    %1163 = vmatpush1.msra.mxu0 %v1112
    %1164 = vmatprep.subr.mxu0 0.0
    %1165 = vmatpush1.msra.mxu0 %v1111
    %1166 = vmatprep.subr.mxu0 0.0
    %1167 = vmatpush1.msra.mxu0 %v1110
    %1168 = vmatprep.subr.mxu0 0.0
    %1169 = vmatpush1.msra.mxu0 %v1109
    %1170 = vmatprep.subr.mxu0 0.0
    %1171 = vmatpush1.msra.mxu0 %v1108
    %1172 = vmatprep.subr.mxu0 0.0
    %1173 = vmatpush2.msra.mxu0 %v1139
    %1174 = vmatprep.subr.mxu0 0.0
    %1175 = vmatpush2.msra.mxu0 %v1138
    %1176 = vmatprep.subr.mxu0 0.0
    %1177 = vmatpush2.msra.mxu0 %v1137
    %1178 = vmatprep.subr.mxu0 0.0
    %1179 = vmatpush2.msra.mxu0 %v1136
    %1180 = vmatprep.subr.mxu0 0.0
    %1181 = vmatpush2.msra.mxu0 %v1135
    %1182 = vmatprep.subr.mxu0 0.0
    %1183 = vmatpush2.msra.mxu0 %v1134
    %1184 = vmatprep.subr.mxu0 0.0
    %1185 = vmatpush2.msra.mxu0 %v1133
    %1186 = vmatprep.subr.mxu0 0.0
    %1187 = vmatpush2.msra.mxu0 %v1132
    %1188 = vmatprep.subr.mxu0 0.0
    %1189 = vmatpush2.msra.mxu0 %v1131
    %1190 = vmatprep.subr.mxu0 0.0
    %1191 = vmatpush2.msra.mxu0 %v1130
    %1192 = vmatprep.subr.mxu0 0.0
    %1193 = vmatpush2.msra.mxu0 %v1129
    %1194 = vmatprep.subr.mxu0 0.0
    %1195 = vmatpush2.msra.mxu0 %v1128
    %1196 = vmatprep.subr.mxu0 0.0
    %1197 = vmatpush2.msra.mxu0 %v1127
    %1198 = vmatprep.subr.mxu0 0.0
    %1199 = vmatpush2.msra.mxu0 %v1126
    %1200 = vmatprep.subr.mxu0 0.0
    %1201 = vmatpush2.msra.mxu0 %v1125
    %1202 = vmatprep.subr.mxu0 0.0
    %1203 = vmatpush2.msra.mxu0 %v1124
    %1204 = vmatprep.mubr.f32.mxu0 %v1005
    %1205 = vmatmul.mubr.f32.gmra.mxu0 %v1004
    %v1206 = vpop.f32.mrf.mxu0
    %v1207 = vadd.f32 0.0, %v1206
    %v1208 = vpop.f32.mrf.mxu0
    %1209 = vdwg.mxu0
    %v1210 = vmax.f32 %v1105, %v1207
    %v1211 = vld [vmem:[#allocation10] sm:$0xff]
    %v1212 = vld [vmem:[#allocation10 + $0x8] sm:$0xff]
    %v1213 = vld [vmem:[#allocation10 + $0x10] sm:$0xff]
    %v1214 = vld [vmem:[#allocation10 + $0x18] sm:$0xff]
    %v1215 = vld [vmem:[#allocation10 + $0x20] sm:$0xff]
    %v1216 = vld [vmem:[#allocation10 + $0x28] sm:$0xff]
    %v1217 = vld [vmem:[#allocation10 + $0x30] sm:$0xff]
    %v1218 = vld [vmem:[#allocation10 + $0x38] sm:$0xff]
    %v1219 = vld [vmem:[#allocation10 + $0x40] sm:$0xff]
    %v1220 = vld [vmem:[#allocation10 + $0x48] sm:$0xff]
    %v1221 = vld [vmem:[#allocation10 + $0x50] sm:$0xff]
    %v1222 = vld [vmem:[#allocation10 + $0x58] sm:$0xff]
    %v1223 = vld [vmem:[#allocation10 + $0x60] sm:$0xff]
    %v1224 = vld [vmem:[#allocation10 + $0x68] sm:$0xff]
    %v1225 = vld [vmem:[#allocation10 + $0x70] sm:$0xff]
    %v1226 = vld [vmem:[#allocation10 + $0x78] sm:$0xff]
    %v1227 = vld [vmem:[#allocation10 + $0x80] sm:$0xff]
    %v1228 = vld [vmem:[#allocation10 + $0x88] sm:$0xff]
    %v1229 = vld [vmem:[#allocation10 + $0x90] sm:$0xff]
    %v1230 = vld [vmem:[#allocation10 + $0x98] sm:$0xff]
    %v1231 = vld [vmem:[#allocation10 + $0xa0] sm:$0xff]
    %v1232 = vld [vmem:[#allocation10 + $0xa8] sm:$0xff]
    %v1233 = vld [vmem:[#allocation10 + $0xb0] sm:$0xff]
    %v1234 = vld [vmem:[#allocation10 + $0xb8] sm:$0xff]
    %v1235 = vld [vmem:[#allocation10 + $0xc0] sm:$0xff]
    %v1236 = vld [vmem:[#allocation10 + $0xc8] sm:$0xff]
    %v1237 = vld [vmem:[#allocation10 + $0xd0] sm:$0xff]
    %v1238 = vld [vmem:[#allocation10 + $0xd8] sm:$0xff]
    %v1239 = vld [vmem:[#allocation10 + $0xe0] sm:$0xff]
    %v1240 = vld [vmem:[#allocation10 + $0xe8] sm:$0xff]
    %v1241 = vld [vmem:[#allocation10 + $0xf0] sm:$0xff]
    %v1242 = vld [vmem:[#allocation10 + $0xf8] sm:$0xff]
    %1243 = vmatprep.subr.mxu0 0.0
    %1244 = vmatpush1.msra.mxu0 %v1226
    %1245 = vmatprep.subr.mxu0 0.0
    %1246 = vmatpush1.msra.mxu0 %v1225
    %1247 = vmatprep.subr.mxu0 0.0
    %1248 = vmatpush1.msra.mxu0 %v1224
    %1249 = vmatprep.subr.mxu0 0.0
    %1250 = vmatpush1.msra.mxu0 %v1223
    %1251 = vmatprep.subr.mxu0 0.0
    %1252 = vmatpush1.msra.mxu0 %v1222
    %1253 = vmatprep.subr.mxu0 0.0
    %1254 = vmatpush1.msra.mxu0 %v1221
    %1255 = vmatprep.subr.mxu0 0.0
    %1256 = vmatpush1.msra.mxu0 %v1220
    %1257 = vmatprep.subr.mxu0 0.0
    %1258 = vmatpush1.msra.mxu0 %v1219
    %1259 = vmatprep.subr.mxu0 0.0
    %1260 = vmatpush1.msra.mxu0 %v1218
    %1261 = vmatprep.subr.mxu0 0.0
    %1262 = vmatpush1.msra.mxu0 %v1217
    %1263 = vmatprep.subr.mxu0 0.0
    %1264 = vmatpush1.msra.mxu0 %v1216
    %1265 = vmatprep.subr.mxu0 0.0
    %1266 = vmatpush1.msra.mxu0 %v1215
    %1267 = vmatprep.subr.mxu0 0.0
    %1268 = vmatpush1.msra.mxu0 %v1214
    %1269 = vmatprep.subr.mxu0 0.0
    %1270 = vmatpush1.msra.mxu0 %v1213
    %1271 = vmatprep.subr.mxu0 0.0
    %1272 = vmatpush1.msra.mxu0 %v1212
    %1273 = vmatprep.subr.mxu0 0.0
    %1274 = vmatpush1.msra.mxu0 %v1211
    %1275 = vmatprep.subr.mxu0 0.0
    %1276 = vmatpush2.msra.mxu0 %v1242
    %1277 = vmatprep.subr.mxu0 0.0
    %1278 = vmatpush2.msra.mxu0 %v1241
    %1279 = vmatprep.subr.mxu0 0.0
    %1280 = vmatpush2.msra.mxu0 %v1240
    %1281 = vmatprep.subr.mxu0 0.0
    %1282 = vmatpush2.msra.mxu0 %v1239
    %1283 = vmatprep.subr.mxu0 0.0
    %1284 = vmatpush2.msra.mxu0 %v1238
    %1285 = vmatprep.subr.mxu0 0.0
    %1286 = vmatpush2.msra.mxu0 %v1237
    %1287 = vmatprep.subr.mxu0 0.0
    %1288 = vmatpush2.msra.mxu0 %v1236
    %1289 = vmatprep.subr.mxu0 0.0
    %1290 = vmatpush2.msra.mxu0 %v1235
    %1291 = vmatprep.subr.mxu0 0.0
    %1292 = vmatpush2.msra.mxu0 %v1234
    %1293 = vmatprep.subr.mxu0 0.0
    %1294 = vmatpush2.msra.mxu0 %v1233
    %1295 = vmatprep.subr.mxu0 0.0
    %1296 = vmatpush2.msra.mxu0 %v1232
    %1297 = vmatprep.subr.mxu0 0.0
    %1298 = vmatpush2.msra.mxu0 %v1231
    %1299 = vmatprep.subr.mxu0 0.0
    %1300 = vmatpush2.msra.mxu0 %v1230
    %1301 = vmatprep.subr.mxu0 0.0
    %1302 = vmatpush2.msra.mxu0 %v1229
    %1303 = vmatprep.subr.mxu0 0.0
    %1304 = vmatpush2.msra.mxu0 %v1228
    %1305 = vmatprep.subr.mxu0 0.0
    %1306 = vmatpush2.msra.mxu0 %v1227
    %1307 = vmatprep.mubr.f32.mxu0 %v1005
    %1308 = vmatmul.mubr.f32.gmra.mxu0 %v1004
    %v1309 = vpop.f32.mrf.mxu0
    %v1310 = vadd.f32 0.0, %v1309
    %v1311 = vpop.f32.mrf.mxu0
    %1312 = vdwg.mxu0
    %v1313 = vmax.f32 %v1210, %v1310
    %v1314 = vld [vmem:[#allocation12] sm:$0xff]
    %v1315 = vld [vmem:[#allocation13] sm:$0xff]
    %v1316 = vmax.f32 %v1313, 0.0
    %v1317 = vld [vmem:[#allocation15] sm:$0x1]
    %vm1318 = vcmask 64512
    %v1320 = vsel %vm1318, %v1314, 0
    %1322 = vmatprep.subr.mxu0 0.0
    %1323 = vmatpush1.msra.mxu0 0.0
    %1324 = vmatprep.subr.mxu0 0.0
    %1325 = vmatpush1.msra.mxu0 0.0
    %1326 = vmatprep.subr.mxu0 0.0
    %1327 = vmatpush1.msra.mxu0 0.0
    %1328 = vmatprep.subr.mxu0 0.0
    %1329 = vmatpush1.msra.mxu0 0.0
    %1330 = vmatprep.subr.mxu0 0.0
    %1331 = vmatpush1.msra.mxu0 0.0
    %1332 = vmatprep.subr.mxu0 0.0
    %1333 = vmatpush1.msra.mxu0 0.0
    %1334 = vmatprep.subr.mxu0 0.0
    %1335 = vmatpush1.msra.mxu0 0.0
    %1336 = vmatprep.subr.mxu0 0.0
    %1337 = vmatpush1.msra.mxu0 0.0
    %1338 = vmatprep.subr.mxu0 0.0
    %1339 = vmatpush1.msra.mxu0 0.0
    %1340 = vmatprep.subr.mxu0 0.0
    %1341 = vmatpush1.msra.mxu0 0.0
    %1342 = vmatprep.subr.mxu0 0.0
    %1343 = vmatpush1.msra.mxu0 0.0
    %1344 = vmatprep.subr.mxu0 0.0
    %1345 = vmatpush1.msra.mxu0 0.0
    %1346 = vmatprep.subr.mxu0 0.0
    %1347 = vmatpush1.msra.mxu0 0.0
    %1348 = vmatprep.subr.mxu0 0.0
    %1349 = vmatpush1.msra.mxu0 0.0
    %1350 = vmatprep.subr.mxu0 0.0
    %1351 = vmatpush1.msra.mxu0 0.0
    %1352 = vmatprep.subr.mxu0 0.0
    %1353 = vmatpush1.msra.mxu0 %v1316
    %1354 = vmatprep.subr.mxu0 0.0
    %1355 = vmatpush2.msra.mxu0 0.0
    %1356 = vmatprep.subr.mxu0 0.0
    %1357 = vmatpush2.msra.mxu0 0.0
    %1358 = vmatprep.subr.mxu0 0.0
    %1359 = vmatpush2.msra.mxu0 0.0
    %1360 = vmatprep.subr.mxu0 0.0
    %1361 = vmatpush2.msra.mxu0 0.0
    %1362 = vmatprep.subr.mxu0 0.0
    %1363 = vmatpush2.msra.mxu0 0.0
    %1364 = vmatprep.subr.mxu0 0.0
    %1365 = vmatpush2.msra.mxu0 0.0
    %1366 = vmatprep.subr.mxu0 0.0
    %1367 = vmatpush2.msra.mxu0 0.0
    %1368 = vmatprep.subr.mxu0 0.0
    %1369 = vmatpush2.msra.mxu0 0.0
    %1370 = vmatprep.subr.mxu0 0.0
    %1371 = vmatpush2.msra.mxu0 0.0
    %1372 = vmatprep.subr.mxu0 0.0
    %1373 = vmatpush2.msra.mxu0 0.0
    %1374 = vmatprep.subr.mxu0 0.0
    %1375 = vmatpush2.msra.mxu0 0.0
    %1376 = vmatprep.subr.mxu0 0.0
    %1377 = vmatpush2.msra.mxu0 0.0
    %1378 = vmatprep.subr.mxu0 0.0
    %1379 = vmatpush2.msra.mxu0 0.0
    %1380 = vmatprep.subr.mxu0 0.0
    %1381 = vmatpush2.msra.mxu0 0.0
    %1382 = vmatprep.subr.mxu0 0.0
    %1383 = vmatpush2.msra.mxu0 0.0
    %1384 = vmatprep.subr.mxu0 0.0
    %1385 = vmatpush2.msra.mxu0 0.0
    %1386 = vmatprep.mubr.f32.mxu0 0.0
    %1387 = vmatmul.mubr.f32.gmra.mxu0 %v1320
    %v1388 = vpop.f32.mrf.mxu0
    %v1389 = vadd.f32 0.0, %v1388
    %v1390 = vpop.f32.mrf.mxu0
    %1391 = vdwg.mxu0
    %v1393 = vsel %vm1318, %v1315, 0
    %1395 = vmatprep.subr.mxu0 0.0
    %1396 = vmatpush1.msra.mxu0 0.0
    %1397 = vmatprep.subr.mxu0 0.0
    %1398 = vmatpush1.msra.mxu0 0.0
    %1399 = vmatprep.subr.mxu0 0.0
    %1400 = vmatpush1.msra.mxu0 0.0
    %1401 = vmatprep.subr.mxu0 0.0
    %1402 = vmatpush1.msra.mxu0 0.0
    %1403 = vmatprep.subr.mxu0 0.0
    %1404 = vmatpush1.msra.mxu0 0.0
    %1405 = vmatprep.subr.mxu0 0.0
    %1406 = vmatpush1.msra.mxu0 0.0
    %1407 = vmatprep.subr.mxu0 0.0
    %1408 = vmatpush1.msra.mxu0 0.0
    %1409 = vmatprep.subr.mxu0 0.0
    %1410 = vmatpush1.msra.mxu0 0.0
    %1411 = vmatprep.subr.mxu0 0.0
    %1412 = vmatpush1.msra.mxu0 0.0
    %1413 = vmatprep.subr.mxu0 0.0
    %1414 = vmatpush1.msra.mxu0 0.0
    %1415 = vmatprep.subr.mxu0 0.0
    %1416 = vmatpush1.msra.mxu0 0.0
    %1417 = vmatprep.subr.mxu0 0.0
    %1418 = vmatpush1.msra.mxu0 0.0
    %1419 = vmatprep.subr.mxu0 0.0
    %1420 = vmatpush1.msra.mxu0 0.0
    %1421 = vmatprep.subr.mxu0 0.0
    %1422 = vmatpush1.msra.mxu0 0.0
    %1423 = vmatprep.subr.mxu0 0.0
    %1424 = vmatpush1.msra.mxu0 0.0
    %1425 = vmatprep.subr.mxu0 0.0
    %1426 = vmatpush1.msra.mxu0 %v1316
    %1427 = vmatprep.subr.mxu0 0.0
    %1428 = vmatpush2.msra.mxu0 0.0
    %1429 = vmatprep.subr.mxu0 0.0
    %1430 = vmatpush2.msra.mxu0 0.0
    %1431 = vmatprep.subr.mxu0 0.0
    %1432 = vmatpush2.msra.mxu0 0.0
    %1433 = vmatprep.subr.mxu0 0.0
    %1434 = vmatpush2.msra.mxu0 0.0
    %1435 = vmatprep.subr.mxu0 0.0
    %1436 = vmatpush2.msra.mxu0 0.0
    %1437 = vmatprep.subr.mxu0 0.0
    %1438 = vmatpush2.msra.mxu0 0.0
    %1439 = vmatprep.subr.mxu0 0.0
    %1440 = vmatpush2.msra.mxu0 0.0
    %1441 = vmatprep.subr.mxu0 0.0
    %1442 = vmatpush2.msra.mxu0 0.0
    %1443 = vmatprep.subr.mxu0 0.0
    %1444 = vmatpush2.msra.mxu0 0.0
    %1445 = vmatprep.subr.mxu0 0.0
    %1446 = vmatpush2.msra.mxu0 0.0
    %1447 = vmatprep.subr.mxu0 0.0
    %1448 = vmatpush2.msra.mxu0 0.0
    %1449 = vmatprep.subr.mxu0 0.0
    %1450 = vmatpush2.msra.mxu0 0.0
    %1451 = vmatprep.subr.mxu0 0.0
    %1452 = vmatpush2.msra.mxu0 0.0
    %1453 = vmatprep.subr.mxu0 0.0
    %1454 = vmatpush2.msra.mxu0 0.0
    %1455 = vmatprep.subr.mxu0 0.0
    %1456 = vmatpush2.msra.mxu0 0.0
    %1457 = vmatprep.subr.mxu0 0.0
    %1458 = vmatpush2.msra.mxu0 0.0
    %1459 = vmatprep.mubr.f32.mxu0 0.0
    %1460 = vmatmul.mubr.f32.gmra.mxu0 %v1393
    %v1461 = vpop.f32.mrf.mxu0
    %v1462 = vadd.f32 0.0, %v1461
    %v1463 = vpop.f32.mrf.mxu0
    %1464 = vdwg.mxu0
    %v1465 = vld [vmem:[%s13] sm:$0xff]
    %v1466 = vld [vmem:[%s13 + $0x8] sm:$0xff]
    %v1467 = vld [vmem:[%s13 + $0x10] sm:$0xff]
    %v1468 = vld [vmem:[%s13 + $0x18] sm:$0xff]
    %v1469 = vld [vmem:[%s13 + $0x20] sm:$0xff]
    %v1470 = vld [vmem:[%s13 + $0x28] sm:$0xff]
    %v1471 = vld [vmem:[%s13 + $0x30] sm:$0xff]
    %v1472 = vld [vmem:[%s13 + $0x38] sm:$0xff]
    %v1473 = vld [vmem:[%s13 + $0x40] sm:$0xff]
    %v1474 = vld [vmem:[%s13 + $0x48] sm:$0xff]
    %v1475 = vld [vmem:[%s13 + $0x50] sm:$0xff]
    %v1476 = vld [vmem:[%s13 + $0x58] sm:$0xff]
    %v1477 = vld [vmem:[%s13 + $0x60] sm:$0xff]
    %v1478 = vld [vmem:[%s13 + $0x68] sm:$0xff]
    %v1479 = vld [vmem:[%s13 + $0x70] sm:$0xff]
    %v1480 = vld [vmem:[%s13 + $0x78] sm:$0xff]
    %1481 = vmatprep.subr.mxu0 0.0
    %1482 = vmatpush1.msra.mxu0 %v1480
    %1483 = vmatprep.subr.mxu0 0.0
    %1484 = vmatpush1.msra.mxu0 %v1479
    %1485 = vmatprep.subr.mxu0 0.0
    %1486 = vmatpush1.msra.mxu0 %v1478
    %1487 = vmatprep.subr.mxu0 0.0
    %1488 = vmatpush1.msra.mxu0 %v1477
    %1489 = vmatprep.subr.mxu0 0.0
    %1490 = vmatpush1.msra.mxu0 %v1476
    %1491 = vmatprep.subr.mxu0 0.0
    %1492 = vmatpush1.msra.mxu0 %v1475
    %1493 = vmatprep.subr.mxu0 0.0
    %1494 = vmatpush1.msra.mxu0 %v1474
    %1495 = vmatprep.subr.mxu0 0.0
    %1496 = vmatpush1.msra.mxu0 %v1473
    %1497 = vmatprep.subr.mxu0 0.0
    %1498 = vmatpush1.msra.mxu0 %v1472
    %1499 = vmatprep.subr.mxu0 0.0
    %1500 = vmatpush1.msra.mxu0 %v1471
    %1501 = vmatprep.subr.mxu0 0.0
    %1502 = vmatpush1.msra.mxu0 %v1470
    %1503 = vmatprep.subr.mxu0 0.0
    %1504 = vmatpush1.msra.mxu0 %v1469
    %1505 = vmatprep.subr.mxu0 0.0
    %1506 = vmatpush1.msra.mxu0 %v1468
    %1507 = vmatprep.subr.mxu0 0.0
    %1508 = vmatpush1.msra.mxu0 %v1467
    %1509 = vmatprep.subr.mxu0 0.0
    %1510 = vmatpush1.msra.mxu0 %v1466
    %1511 = vmatprep.subr.mxu0 0.0
    %1512 = vmatpush1.msra.mxu0 %v1465
    %1513 = vmatprep.subr.mxu0 0.0
    %1514 = vmatpush2.msra.mxu0 0.0
    %1515 = vmatprep.subr.mxu0 0.0
    %1516 = vmatpush2.msra.mxu0 0.0
    %1517 = vmatprep.subr.mxu0 0.0
    %1518 = vmatpush2.msra.mxu0 0.0
    %1519 = vmatprep.subr.mxu0 0.0
    %1520 = vmatpush2.msra.mxu0 0.0
    %1521 = vmatprep.subr.mxu0 0.0
    %1522 = vmatpush2.msra.mxu0 0.0
    %1523 = vmatprep.subr.mxu0 0.0
    %1524 = vmatpush2.msra.mxu0 0.0
    %1525 = vmatprep.subr.mxu0 0.0
    %1526 = vmatpush2.msra.mxu0 0.0
    %1527 = vmatprep.subr.mxu0 0.0
    %1528 = vmatpush2.msra.mxu0 0.0
    %1529 = vmatprep.subr.mxu0 0.0
    %1530 = vmatpush2.msra.mxu0 0.0
    %1531 = vmatprep.subr.mxu0 0.0
    %1532 = vmatpush2.msra.mxu0 0.0
    %1533 = vmatprep.subr.mxu0 0.0
    %1534 = vmatpush2.msra.mxu0 0.0
    %1535 = vmatprep.subr.mxu0 0.0
    %1536 = vmatpush2.msra.mxu0 0.0
    %1537 = vmatprep.subr.mxu0 0.0
    %1538 = vmatpush2.msra.mxu0 0.0
    %1539 = vmatprep.subr.mxu0 0.0
    %1540 = vmatpush2.msra.mxu0 0.0
    %1541 = vmatprep.subr.mxu0 0.0
    %1542 = vmatpush2.msra.mxu0 0.0
    %1543 = vmatprep.subr.mxu0 0.0
    %1544 = vmatpush2.msra.mxu0 0.0
    %1545 = vmatprep.mubr.f32.mxu0 0.0
    %1546 = vmatmul.mubr.f32.gmra.mxu0 %v1389
    %v1547 = vpop.f32.mrf.mxu0
    %v1548 = vadd.f32 0.0, %v1547
    %v1549 = vpop.f32.mrf.mxu0
    %1550 = vdwg.mxu0
    %v1552 = vlaneseq
    %v1553 = vshrl.u32 %v1552, 7
    %v1554 = vsub.s32 0, %v1553
    %v1555 = vrot.slane %v1317, %v1554
    %v1557 = vadd.f32 %v1555, %v1548
    %s1558 = scalar_lea.vmem %s13, 128
    %v1559 = vld [vmem:[%s1558] sm:$0xff]
    %v1560 = vld [vmem:[%s1558 + $0x8] sm:$0xff]
    %v1561 = vld [vmem:[%s1558 + $0x10] sm:$0xff]
    %v1562 = vld [vmem:[%s1558 + $0x18] sm:$0xff]
    %v1563 = vld [vmem:[%s1558 + $0x20] sm:$0xff]
    %v1564 = vld [vmem:[%s1558 + $0x28] sm:$0xff]
    %v1565 = vld [vmem:[%s1558 + $0x30] sm:$0xff]
    %v1566 = vld [vmem:[%s1558 + $0x38] sm:$0xff]
    %v1567 = vld [vmem:[%s1558 + $0x40] sm:$0xff]
    %v1568 = vld [vmem:[%s1558 + $0x48] sm:$0xff]
    %v1569 = vld [vmem:[%s1558 + $0x50] sm:$0xff]
    %v1570 = vld [vmem:[%s1558 + $0x58] sm:$0xff]
    %v1571 = vld [vmem:[%s1558 + $0x60] sm:$0xff]
    %v1572 = vld [vmem:[%s1558 + $0x68] sm:$0xff]
    %v1573 = vld [vmem:[%s1558 + $0x70] sm:$0xff]
    %v1574 = vld [vmem:[%s1558 + $0x78] sm:$0xff]
    %1575 = vmatprep.subr.mxu0 0.0
    %1576 = vmatpush1.msra.mxu0 %v1574
    %1577 = vmatprep.subr.mxu0 0.0
    %1578 = vmatpush1.msra.mxu0 %v1573
    %1579 = vmatprep.subr.mxu0 0.0
    %1580 = vmatpush1.msra.mxu0 %v1572
    %1581 = vmatprep.subr.mxu0 0.0
    %1582 = vmatpush1.msra.mxu0 %v1571
    %1583 = vmatprep.subr.mxu0 0.0
    %1584 = vmatpush1.msra.mxu0 %v1570
    %1585 = vmatprep.subr.mxu0 0.0
    %1586 = vmatpush1.msra.mxu0 %v1569
    %1587 = vmatprep.subr.mxu0 0.0
    %1588 = vmatpush1.msra.mxu0 %v1568
    %1589 = vmatprep.subr.mxu0 0.0
    %1590 = vmatpush1.msra.mxu0 %v1567
    %1591 = vmatprep.subr.mxu0 0.0
    %1592 = vmatpush1.msra.mxu0 %v1566
    %1593 = vmatprep.subr.mxu0 0.0
    %1594 = vmatpush1.msra.mxu0 %v1565
    %1595 = vmatprep.subr.mxu0 0.0
    %1596 = vmatpush1.msra.mxu0 %v1564
    %1597 = vmatprep.subr.mxu0 0.0
    %1598 = vmatpush1.msra.mxu0 %v1563
    %1599 = vmatprep.subr.mxu0 0.0
    %1600 = vmatpush1.msra.mxu0 %v1562
    %1601 = vmatprep.subr.mxu0 0.0
    %1602 = vmatpush1.msra.mxu0 %v1561
    %1603 = vmatprep.subr.mxu0 0.0
    %1604 = vmatpush1.msra.mxu0 %v1560
    %1605 = vmatprep.subr.mxu0 0.0
    %1606 = vmatpush1.msra.mxu0 %v1559
    %1607 = vmatprep.subr.mxu0 0.0
    %1608 = vmatpush2.msra.mxu0 0.0
    %1609 = vmatprep.subr.mxu0 0.0
    %1610 = vmatpush2.msra.mxu0 0.0
    %1611 = vmatprep.subr.mxu0 0.0
    %1612 = vmatpush2.msra.mxu0 0.0
    %1613 = vmatprep.subr.mxu0 0.0
    %1614 = vmatpush2.msra.mxu0 0.0
    %1615 = vmatprep.subr.mxu0 0.0
    %1616 = vmatpush2.msra.mxu0 0.0
    %1617 = vmatprep.subr.mxu0 0.0
    %1618 = vmatpush2.msra.mxu0 0.0
    %1619 = vmatprep.subr.mxu0 0.0
    %1620 = vmatpush2.msra.mxu0 0.0
    %1621 = vmatprep.subr.mxu0 0.0
    %1622 = vmatpush2.msra.mxu0 0.0
    %1623 = vmatprep.subr.mxu0 0.0
    %1624 = vmatpush2.msra.mxu0 0.0
    %1625 = vmatprep.subr.mxu0 0.0
    %1626 = vmatpush2.msra.mxu0 0.0
    %1627 = vmatprep.subr.mxu0 0.0
    %1628 = vmatpush2.msra.mxu0 0.0
    %1629 = vmatprep.subr.mxu0 0.0
    %1630 = vmatpush2.msra.mxu0 0.0
    %1631 = vmatprep.subr.mxu0 0.0
    %1632 = vmatpush2.msra.mxu0 0.0
    %1633 = vmatprep.subr.mxu0 0.0
    %1634 = vmatpush2.msra.mxu0 0.0
    %1635 = vmatprep.subr.mxu0 0.0
    %1636 = vmatpush2.msra.mxu0 0.0
    %1637 = vmatprep.subr.mxu0 0.0
    %1638 = vmatpush2.msra.mxu0 0.0
    %1639 = vmatprep.mubr.f32.mxu0 0.0
    %1640 = vmatmul.mubr.f32.gmra.mxu0 %v1316
    %v1641 = vpop.f32.mrf.mxu0
    %v1642 = vadd.f32 0.0, %v1641
    %v1643 = vpop.f32.mrf.mxu0
    %1644 = vdwg.mxu0
    %v1645 = vadd.f32 %v1557, %v1642
    %s1646 = scalar_lea.vmem %s13, 256
    %v1647 = vld [vmem:[%s1646] sm:$0xff]
    %v1648 = vld [vmem:[%s1646 + $0x8] sm:$0xff]
    %v1649 = vld [vmem:[%s1646 + $0x10] sm:$0xff]
    %v1650 = vld [vmem:[%s1646 + $0x18] sm:$0xff]
    %v1651 = vld [vmem:[%s1646 + $0x20] sm:$0xff]
    %v1652 = vld [vmem:[%s1646 + $0x28] sm:$0xff]
    %v1653 = vld [vmem:[%s1646 + $0x30] sm:$0xff]
    %v1654 = vld [vmem:[%s1646 + $0x38] sm:$0xff]
    %v1655 = vld [vmem:[%s1646 + $0x40] sm:$0xff]
    %v1656 = vld [vmem:[%s1646 + $0x48] sm:$0xff]
    %v1657 = vld [vmem:[%s1646 + $0x50] sm:$0xff]
    %v1658 = vld [vmem:[%s1646 + $0x58] sm:$0xff]
    %v1659 = vld [vmem:[%s1646 + $0x60] sm:$0xff]
    %v1660 = vld [vmem:[%s1646 + $0x68] sm:$0xff]
    %v1661 = vld [vmem:[%s1646 + $0x70] sm:$0xff]
    %v1662 = vld [vmem:[%s1646 + $0x78] sm:$0xff]
    %1663 = vmatprep.subr.mxu0 0.0
    %1664 = vmatpush1.msra.mxu0 %v1662
    %1665 = vmatprep.subr.mxu0 0.0
    %1666 = vmatpush1.msra.mxu0 %v1661
    %1667 = vmatprep.subr.mxu0 0.0
    %1668 = vmatpush1.msra.mxu0 %v1660
    %1669 = vmatprep.subr.mxu0 0.0
    %1670 = vmatpush1.msra.mxu0 %v1659
    %1671 = vmatprep.subr.mxu0 0.0
    %1672 = vmatpush1.msra.mxu0 %v1658
    %1673 = vmatprep.subr.mxu0 0.0
    %1674 = vmatpush1.msra.mxu0 %v1657
    %1675 = vmatprep.subr.mxu0 0.0
    %1676 = vmatpush1.msra.mxu0 %v1656
    %1677 = vmatprep.subr.mxu0 0.0
    %1678 = vmatpush1.msra.mxu0 %v1655
    %1679 = vmatprep.subr.mxu0 0.0
    %1680 = vmatpush1.msra.mxu0 %v1654
    %1681 = vmatprep.subr.mxu0 0.0
    %1682 = vmatpush1.msra.mxu0 %v1653
    %1683 = vmatprep.subr.mxu0 0.0
    %1684 = vmatpush1.msra.mxu0 %v1652
    %1685 = vmatprep.subr.mxu0 0.0
    %1686 = vmatpush1.msra.mxu0 %v1651
    %1687 = vmatprep.subr.mxu0 0.0
    %1688 = vmatpush1.msra.mxu0 %v1650
    %1689 = vmatprep.subr.mxu0 0.0
    %1690 = vmatpush1.msra.mxu0 %v1649
    %1691 = vmatprep.subr.mxu0 0.0
    %1692 = vmatpush1.msra.mxu0 %v1648
    %1693 = vmatprep.subr.mxu0 0.0
    %1694 = vmatpush1.msra.mxu0 %v1647
    %1695 = vmatprep.subr.mxu0 0.0
    %1696 = vmatpush2.msra.mxu0 0.0
    %1697 = vmatprep.subr.mxu0 0.0
    %1698 = vmatpush2.msra.mxu0 0.0
    %1699 = vmatprep.subr.mxu0 0.0
    %1700 = vmatpush2.msra.mxu0 0.0
    %1701 = vmatprep.subr.mxu0 0.0
    %1702 = vmatpush2.msra.mxu0 0.0
    %1703 = vmatprep.subr.mxu0 0.0
    %1704 = vmatpush2.msra.mxu0 0.0
    %1705 = vmatprep.subr.mxu0 0.0
    %1706 = vmatpush2.msra.mxu0 0.0
    %1707 = vmatprep.subr.mxu0 0.0
    %1708 = vmatpush2.msra.mxu0 0.0
    %1709 = vmatprep.subr.mxu0 0.0
    %1710 = vmatpush2.msra.mxu0 0.0
    %1711 = vmatprep.subr.mxu0 0.0
    %1712 = vmatpush2.msra.mxu0 0.0
    %1713 = vmatprep.subr.mxu0 0.0
    %1714 = vmatpush2.msra.mxu0 0.0
    %1715 = vmatprep.subr.mxu0 0.0
    %1716 = vmatpush2.msra.mxu0 0.0
    %1717 = vmatprep.subr.mxu0 0.0
    %1718 = vmatpush2.msra.mxu0 0.0
    %1719 = vmatprep.subr.mxu0 0.0
    %1720 = vmatpush2.msra.mxu0 0.0
    %1721 = vmatprep.subr.mxu0 0.0
    %1722 = vmatpush2.msra.mxu0 0.0
    %1723 = vmatprep.subr.mxu0 0.0
    %1724 = vmatpush2.msra.mxu0 0.0
    %1725 = vmatprep.subr.mxu0 0.0
    %1726 = vmatpush2.msra.mxu0 0.0
    %1727 = vmatprep.mubr.f32.mxu0 0.0
    %1728 = vmatmul.mubr.f32.gmra.mxu0 %v1462
    %v1729 = vpop.f32.mrf.mxu0
    %v1730 = vadd.f32 0.0, %v1729
    %v1731 = vpop.f32.mrf.mxu0
    %1732 = vdwg.mxu0
    %v1733 = vadd.f32 %v1645, %v1730
    %v1734 = vmax.f32 %v1733, 0.0
    %v1735 = vld [vmem:[#allocation18] sm:$0x1]
    %1736 = vmatprep.subr.mxu0 0.0
    %1737 = vmatpush1.msra.mxu0 0.0
    %1738 = vmatprep.subr.mxu0 0.0
    %1739 = vmatpush1.msra.mxu0 0.0
    %1740 = vmatprep.subr.mxu0 0.0
    %1741 = vmatpush1.msra.mxu0 0.0
    %1742 = vmatprep.subr.mxu0 0.0
    %1743 = vmatpush1.msra.mxu0 0.0
    %1744 = vmatprep.subr.mxu0 0.0
    %1745 = vmatpush1.msra.mxu0 0.0
    %1746 = vmatprep.subr.mxu0 0.0
    %1747 = vmatpush1.msra.mxu0 0.0
    %1748 = vmatprep.subr.mxu0 0.0
    %1749 = vmatpush1.msra.mxu0 0.0
    %1750 = vmatprep.subr.mxu0 0.0
    %1751 = vmatpush1.msra.mxu0 0.0
    %1752 = vmatprep.subr.mxu0 0.0
    %1753 = vmatpush1.msra.mxu0 0.0
    %1754 = vmatprep.subr.mxu0 0.0
    %1755 = vmatpush1.msra.mxu0 0.0
    %1756 = vmatprep.subr.mxu0 0.0
    %1757 = vmatpush1.msra.mxu0 0.0
    %1758 = vmatprep.subr.mxu0 0.0
    %1759 = vmatpush1.msra.mxu0 0.0
    %1760 = vmatprep.subr.mxu0 0.0
    %1761 = vmatpush1.msra.mxu0 0.0
    %1762 = vmatprep.subr.mxu0 0.0
    %1763 = vmatpush1.msra.mxu0 0.0
    %1764 = vmatprep.subr.mxu0 0.0
    %1765 = vmatpush1.msra.mxu0 0.0
    %1766 = vmatprep.subr.mxu0 0.0
    %1767 = vmatpush1.msra.mxu0 %v1734
    %1768 = vmatprep.subr.mxu0 0.0
    %1769 = vmatpush2.msra.mxu0 0.0
    %1770 = vmatprep.subr.mxu0 0.0
    %1771 = vmatpush2.msra.mxu0 0.0
    %1772 = vmatprep.subr.mxu0 0.0
    %1773 = vmatpush2.msra.mxu0 0.0
    %1774 = vmatprep.subr.mxu0 0.0
    %1775 = vmatpush2.msra.mxu0 0.0
    %1776 = vmatprep.subr.mxu0 0.0
    %1777 = vmatpush2.msra.mxu0 0.0
    %1778 = vmatprep.subr.mxu0 0.0
    %1779 = vmatpush2.msra.mxu0 0.0
    %1780 = vmatprep.subr.mxu0 0.0
    %1781 = vmatpush2.msra.mxu0 0.0
    %1782 = vmatprep.subr.mxu0 0.0
    %1783 = vmatpush2.msra.mxu0 0.0
    %1784 = vmatprep.subr.mxu0 0.0
    %1785 = vmatpush2.msra.mxu0 0.0
    %1786 = vmatprep.subr.mxu0 0.0
    %1787 = vmatpush2.msra.mxu0 0.0
    %1788 = vmatprep.subr.mxu0 0.0
    %1789 = vmatpush2.msra.mxu0 0.0
    %1790 = vmatprep.subr.mxu0 0.0
    %1791 = vmatpush2.msra.mxu0 0.0
    %1792 = vmatprep.subr.mxu0 0.0
    %1793 = vmatpush2.msra.mxu0 0.0
    %1794 = vmatprep.subr.mxu0 0.0
    %1795 = vmatpush2.msra.mxu0 0.0
    %1796 = vmatprep.subr.mxu0 0.0
    %1797 = vmatpush2.msra.mxu0 0.0
    %1798 = vmatprep.subr.mxu0 0.0
    %1799 = vmatpush2.msra.mxu0 0.0
    %1800 = vmatprep.mubr.f32.mxu0 0.0
    %1801 = vmatmul.mubr.f32.gmra.mxu0 %v1320
    %v1802 = vpop.f32.mrf.mxu0
    %v1803 = vadd.f32 0.0, %v1802
    %v1804 = vpop.f32.mrf.mxu0
    %1805 = vdwg.mxu0
    %1806 = vmatprep.subr.mxu0 0.0
    %1807 = vmatpush1.msra.mxu0 0.0
    %1808 = vmatprep.subr.mxu0 0.0
    %1809 = vmatpush1.msra.mxu0 0.0
    %1810 = vmatprep.subr.mxu0 0.0
    %1811 = vmatpush1.msra.mxu0 0.0
    %1812 = vmatprep.subr.mxu0 0.0
    %1813 = vmatpush1.msra.mxu0 0.0
    %1814 = vmatprep.subr.mxu0 0.0
    %1815 = vmatpush1.msra.mxu0 0.0
    %1816 = vmatprep.subr.mxu0 0.0
    %1817 = vmatpush1.msra.mxu0 0.0
    %1818 = vmatprep.subr.mxu0 0.0
    %1819 = vmatpush1.msra.mxu0 0.0
    %1820 = vmatprep.subr.mxu0 0.0
    %1821 = vmatpush1.msra.mxu0 0.0
    %1822 = vmatprep.subr.mxu0 0.0
    %1823 = vmatpush1.msra.mxu0 0.0
    %1824 = vmatprep.subr.mxu0 0.0
    %1825 = vmatpush1.msra.mxu0 0.0
    %1826 = vmatprep.subr.mxu0 0.0
    %1827 = vmatpush1.msra.mxu0 0.0
    %1828 = vmatprep.subr.mxu0 0.0
    %1829 = vmatpush1.msra.mxu0 0.0
    %1830 = vmatprep.subr.mxu0 0.0
    %1831 = vmatpush1.msra.mxu0 0.0
    %1832 = vmatprep.subr.mxu0 0.0
    %1833 = vmatpush1.msra.mxu0 0.0
    %1834 = vmatprep.subr.mxu0 0.0
    %1835 = vmatpush1.msra.mxu0 0.0
    %1836 = vmatprep.subr.mxu0 0.0
    %1837 = vmatpush1.msra.mxu0 %v1734
    %1838 = vmatprep.subr.mxu0 0.0
    %1839 = vmatpush2.msra.mxu0 0.0
    %1840 = vmatprep.subr.mxu0 0.0
    %1841 = vmatpush2.msra.mxu0 0.0
    %1842 = vmatprep.subr.mxu0 0.0
    %1843 = vmatpush2.msra.mxu0 0.0
    %1844 = vmatprep.subr.mxu0 0.0
    %1845 = vmatpush2.msra.mxu0 0.0
    %1846 = vmatprep.subr.mxu0 0.0
    %1847 = vmatpush2.msra.mxu0 0.0
    %1848 = vmatprep.subr.mxu0 0.0
    %1849 = vmatpush2.msra.mxu0 0.0
    %1850 = vmatprep.subr.mxu0 0.0
    %1851 = vmatpush2.msra.mxu0 0.0
    %1852 = vmatprep.subr.mxu0 0.0
    %1853 = vmatpush2.msra.mxu0 0.0
    %1854 = vmatprep.subr.mxu0 0.0
    %1855 = vmatpush2.msra.mxu0 0.0
    %1856 = vmatprep.subr.mxu0 0.0
    %1857 = vmatpush2.msra.mxu0 0.0
    %1858 = vmatprep.subr.mxu0 0.0
    %1859 = vmatpush2.msra.mxu0 0.0
    %1860 = vmatprep.subr.mxu0 0.0
    %1861 = vmatpush2.msra.mxu0 0.0
    %1862 = vmatprep.subr.mxu0 0.0
    %1863 = vmatpush2.msra.mxu0 0.0
    %1864 = vmatprep.subr.mxu0 0.0
    %1865 = vmatpush2.msra.mxu0 0.0
    %1866 = vmatprep.subr.mxu0 0.0
    %1867 = vmatpush2.msra.mxu0 0.0
    %1868 = vmatprep.subr.mxu0 0.0
    %1869 = vmatpush2.msra.mxu0 0.0
    %1870 = vmatprep.mubr.f32.mxu0 0.0
    %1871 = vmatmul.mubr.f32.gmra.mxu0 %v1393
    %v1872 = vpop.f32.mrf.mxu0
    %v1873 = vadd.f32 0.0, %v1872
    %v1874 = vpop.f32.mrf.mxu0
    %1875 = vdwg.mxu0
    %v1876 = vld [vmem:[#allocation16] sm:$0xff]
    %v1877 = vld [vmem:[#allocation16 + $0x8] sm:$0xff]
    %v1878 = vld [vmem:[#allocation16 + $0x10] sm:$0xff]
    %v1879 = vld [vmem:[#allocation16 + $0x18] sm:$0xff]
    %v1880 = vld [vmem:[#allocation16 + $0x20] sm:$0xff]
    %v1881 = vld [vmem:[#allocation16 + $0x28] sm:$0xff]
    %v1882 = vld [vmem:[#allocation16 + $0x30] sm:$0xff]
    %v1883 = vld [vmem:[#allocation16 + $0x38] sm:$0xff]
    %v1884 = vld [vmem:[#allocation16 + $0x40] sm:$0xff]
    %v1885 = vld [vmem:[#allocation16 + $0x48] sm:$0xff]
    %v1886 = vld [vmem:[#allocation16 + $0x50] sm:$0xff]
    %v1887 = vld [vmem:[#allocation16 + $0x58] sm:$0xff]
    %v1888 = vld [vmem:[#allocation16 + $0x60] sm:$0xff]
    %v1889 = vld [vmem:[#allocation16 + $0x68] sm:$0xff]
    %v1890 = vld [vmem:[#allocation16 + $0x70] sm:$0xff]
    %v1891 = vld [vmem:[#allocation16 + $0x78] sm:$0xff]
    %1892 = vmatprep.subr.mxu0 0.0
    %1893 = vmatpush1.msra.mxu0 %v1891
    %1894 = vmatprep.subr.mxu0 0.0
    %1895 = vmatpush1.msra.mxu0 %v1890
    %1896 = vmatprep.subr.mxu0 0.0
    %1897 = vmatpush1.msra.mxu0 %v1889
    %1898 = vmatprep.subr.mxu0 0.0
    %1899 = vmatpush1.msra.mxu0 %v1888
    %1900 = vmatprep.subr.mxu0 0.0
    %1901 = vmatpush1.msra.mxu0 %v1887
    %1902 = vmatprep.subr.mxu0 0.0
    %1903 = vmatpush1.msra.mxu0 %v1886
    %1904 = vmatprep.subr.mxu0 0.0
    %1905 = vmatpush1.msra.mxu0 %v1885
    %1906 = vmatprep.subr.mxu0 0.0
    %1907 = vmatpush1.msra.mxu0 %v1884
    %1908 = vmatprep.subr.mxu0 0.0
    %1909 = vmatpush1.msra.mxu0 %v1883
    %1910 = vmatprep.subr.mxu0 0.0
    %1911 = vmatpush1.msra.mxu0 %v1882
    %1912 = vmatprep.subr.mxu0 0.0
    %1913 = vmatpush1.msra.mxu0 %v1881
    %1914 = vmatprep.subr.mxu0 0.0
    %1915 = vmatpush1.msra.mxu0 %v1880
    %1916 = vmatprep.subr.mxu0 0.0
    %1917 = vmatpush1.msra.mxu0 %v1879
    %1918 = vmatprep.subr.mxu0 0.0
    %1919 = vmatpush1.msra.mxu0 %v1878
    %1920 = vmatprep.subr.mxu0 0.0
    %1921 = vmatpush1.msra.mxu0 %v1877
    %1922 = vmatprep.subr.mxu0 0.0
    %1923 = vmatpush1.msra.mxu0 %v1876
    %1924 = vmatprep.subr.mxu0 0.0
    %1925 = vmatpush2.msra.mxu0 0.0
    %1926 = vmatprep.subr.mxu0 0.0
    %1927 = vmatpush2.msra.mxu0 0.0
    %1928 = vmatprep.subr.mxu0 0.0
    %1929 = vmatpush2.msra.mxu0 0.0
    %1930 = vmatprep.subr.mxu0 0.0
    %1931 = vmatpush2.msra.mxu0 0.0
    %1932 = vmatprep.subr.mxu0 0.0
    %1933 = vmatpush2.msra.mxu0 0.0
    %1934 = vmatprep.subr.mxu0 0.0
    %1935 = vmatpush2.msra.mxu0 0.0
    %1936 = vmatprep.subr.mxu0 0.0
    %1937 = vmatpush2.msra.mxu0 0.0
    %1938 = vmatprep.subr.mxu0 0.0
    %1939 = vmatpush2.msra.mxu0 0.0
    %1940 = vmatprep.subr.mxu0 0.0
    %1941 = vmatpush2.msra.mxu0 0.0
    %1942 = vmatprep.subr.mxu0 0.0
    %1943 = vmatpush2.msra.mxu0 0.0
    %1944 = vmatprep.subr.mxu0 0.0
    %1945 = vmatpush2.msra.mxu0 0.0
    %1946 = vmatprep.subr.mxu0 0.0
    %1947 = vmatpush2.msra.mxu0 0.0
    %1948 = vmatprep.subr.mxu0 0.0
    %1949 = vmatpush2.msra.mxu0 0.0
    %1950 = vmatprep.subr.mxu0 0.0
    %1951 = vmatpush2.msra.mxu0 0.0
    %1952 = vmatprep.subr.mxu0 0.0
    %1953 = vmatpush2.msra.mxu0 0.0
    %1954 = vmatprep.subr.mxu0 0.0
    %1955 = vmatpush2.msra.mxu0 0.0
    %1956 = vmatprep.mubr.f32.mxu0 0.0
    %1957 = vmatmul.mubr.f32.gmra.mxu0 %v1803
    %v1958 = vpop.f32.mrf.mxu0
    %v1959 = vadd.f32 0.0, %v1958
    %v1960 = vpop.f32.mrf.mxu0
    %1961 = vdwg.mxu0
    %v1963 = vlaneseq
    %v1964 = vshrl.u32 %v1963, 7
    %v1965 = vsub.s32 0, %v1964
    %v1966 = vrot.slane %v1735, %v1965
    %v1968 = vadd.f32 %v1966, %v1959
    %s1969 = scalar_lea.vmem [#allocation16], 128
    %v1970 = vld [vmem:[%s1969] sm:$0xff]
    %v1971 = vld [vmem:[%s1969 + $0x8] sm:$0xff]
    %v1972 = vld [vmem:[%s1969 + $0x10] sm:$0xff]
    %v1973 = vld [vmem:[%s1969 + $0x18] sm:$0xff]
    %v1974 = vld [vmem:[%s1969 + $0x20] sm:$0xff]
    %v1975 = vld [vmem:[%s1969 + $0x28] sm:$0xff]
    %v1976 = vld [vmem:[%s1969 + $0x30] sm:$0xff]
    %v1977 = vld [vmem:[%s1969 + $0x38] sm:$0xff]
    %v1978 = vld [vmem:[%s1969 + $0x40] sm:$0xff]
    %v1979 = vld [vmem:[%s1969 + $0x48] sm:$0xff]
    %v1980 = vld [vmem:[%s1969 + $0x50] sm:$0xff]
    %v1981 = vld [vmem:[%s1969 + $0x58] sm:$0xff]
    %v1982 = vld [vmem:[%s1969 + $0x60] sm:$0xff]
    %v1983 = vld [vmem:[%s1969 + $0x68] sm:$0xff]
    %v1984 = vld [vmem:[%s1969 + $0x70] sm:$0xff]
    %v1985 = vld [vmem:[%s1969 + $0x78] sm:$0xff]
    %1986 = vmatprep.subr.mxu0 0.0
    %1987 = vmatpush1.msra.mxu0 %v1985
    %1988 = vmatprep.subr.mxu0 0.0
    %1989 = vmatpush1.msra.mxu0 %v1984
    %1990 = vmatprep.subr.mxu0 0.0
    %1991 = vmatpush1.msra.mxu0 %v1983
    %1992 = vmatprep.subr.mxu0 0.0
    %1993 = vmatpush1.msra.mxu0 %v1982
    %1994 = vmatprep.subr.mxu0 0.0
    %1995 = vmatpush1.msra.mxu0 %v1981
    %1996 = vmatprep.subr.mxu0 0.0
    %1997 = vmatpush1.msra.mxu0 %v1980
    %1998 = vmatprep.subr.mxu0 0.0
    %1999 = vmatpush1.msra.mxu0 %v1979
    %2000 = vmatprep.subr.mxu0 0.0
    %2001 = vmatpush1.msra.mxu0 %v1978
    %2002 = vmatprep.subr.mxu0 0.0
    %2003 = vmatpush1.msra.mxu0 %v1977
    %2004 = vmatprep.subr.mxu0 0.0
    %2005 = vmatpush1.msra.mxu0 %v1976
    %2006 = vmatprep.subr.mxu0 0.0
    %2007 = vmatpush1.msra.mxu0 %v1975
    %2008 = vmatprep.subr.mxu0 0.0
    %2009 = vmatpush1.msra.mxu0 %v1974
    %2010 = vmatprep.subr.mxu0 0.0
    %2011 = vmatpush1.msra.mxu0 %v1973
    %2012 = vmatprep.subr.mxu0 0.0
    %2013 = vmatpush1.msra.mxu0 %v1972
    %2014 = vmatprep.subr.mxu0 0.0
    %2015 = vmatpush1.msra.mxu0 %v1971
    %2016 = vmatprep.subr.mxu0 0.0
    %2017 = vmatpush1.msra.mxu0 %v1970
    %2018 = vmatprep.subr.mxu0 0.0
    %2019 = vmatpush2.msra.mxu0 0.0
    %2020 = vmatprep.subr.mxu0 0.0
    %2021 = vmatpush2.msra.mxu0 0.0
    %2022 = vmatprep.subr.mxu0 0.0
    %2023 = vmatpush2.msra.mxu0 0.0
    %2024 = vmatprep.subr.mxu0 0.0
    %2025 = vmatpush2.msra.mxu0 0.0
    %2026 = vmatprep.subr.mxu0 0.0
    %2027 = vmatpush2.msra.mxu0 0.0
    %2028 = vmatprep.subr.mxu0 0.0
    %2029 = vmatpush2.msra.mxu0 0.0
    %2030 = vmatprep.subr.mxu0 0.0
    %2031 = vmatpush2.msra.mxu0 0.0
    %2032 = vmatprep.subr.mxu0 0.0
    %2033 = vmatpush2.msra.mxu0 0.0
    %2034 = vmatprep.subr.mxu0 0.0
    %2035 = vmatpush2.msra.mxu0 0.0
    %2036 = vmatprep.subr.mxu0 0.0
    %2037 = vmatpush2.msra.mxu0 0.0
    %2038 = vmatprep.subr.mxu0 0.0
    %2039 = vmatpush2.msra.mxu0 0.0
    %2040 = vmatprep.subr.mxu0 0.0
    %2041 = vmatpush2.msra.mxu0 0.0
    %2042 = vmatprep.subr.mxu0 0.0
    %2043 = vmatpush2.msra.mxu0 0.0
    %2044 = vmatprep.subr.mxu0 0.0
    %2045 = vmatpush2.msra.mxu0 0.0
    %2046 = vmatprep.subr.mxu0 0.0
    %2047 = vmatpush2.msra.mxu0 0.0
    %2048 = vmatprep.subr.mxu0 0.0
    %2049 = vmatpush2.msra.mxu0 0.0
    %2050 = vmatprep.mubr.f32.mxu0 0.0
    %2051 = vmatmul.mubr.f32.gmra.mxu0 %v1734
    %v2052 = vpop.f32.mrf.mxu0
    %v2053 = vadd.f32 0.0, %v2052
    %v2054 = vpop.f32.mrf.mxu0
    %2055 = vdwg.mxu0
    %v2056 = vadd.f32 %v1968, %v2053
    %s2057 = scalar_lea.vmem [#allocation16], 256
    %v2058 = vld [vmem:[%s2057] sm:$0xff]
    %v2059 = vld [vmem:[%s2057 + $0x8] sm:$0xff]
    %v2060 = vld [vmem:[%s2057 + $0x10] sm:$0xff]
    %v2061 = vld [vmem:[%s2057 + $0x18] sm:$0xff]
    %v2062 = vld [vmem:[%s2057 + $0x20] sm:$0xff]
    %v2063 = vld [vmem:[%s2057 + $0x28] sm:$0xff]
    %v2064 = vld [vmem:[%s2057 + $0x30] sm:$0xff]
    %v2065 = vld [vmem:[%s2057 + $0x38] sm:$0xff]
    %v2066 = vld [vmem:[%s2057 + $0x40] sm:$0xff]
    %v2067 = vld [vmem:[%s2057 + $0x48] sm:$0xff]
    %v2068 = vld [vmem:[%s2057 + $0x50] sm:$0xff]
    %v2069 = vld [vmem:[%s2057 + $0x58] sm:$0xff]
    %v2070 = vld [vmem:[%s2057 + $0x60] sm:$0xff]
    %v2071 = vld [vmem:[%s2057 + $0x68] sm:$0xff]
    %v2072 = vld [vmem:[%s2057 + $0x70] sm:$0xff]
    %v2073 = vld [vmem:[%s2057 + $0x78] sm:$0xff]
    %2074 = vmatprep.subr.mxu0 0.0
    %2075 = vmatpush1.msra.mxu0 %v2073
    %2076 = vmatprep.subr.mxu0 0.0
    %2077 = vmatpush1.msra.mxu0 %v2072
    %2078 = vmatprep.subr.mxu0 0.0
    %2079 = vmatpush1.msra.mxu0 %v2071
    %2080 = vmatprep.subr.mxu0 0.0
    %2081 = vmatpush1.msra.mxu0 %v2070
    %2082 = vmatprep.subr.mxu0 0.0
    %2083 = vmatpush1.msra.mxu0 %v2069
    %2084 = vmatprep.subr.mxu0 0.0
    %2085 = vmatpush1.msra.mxu0 %v2068
    %2086 = vmatprep.subr.mxu0 0.0
    %2087 = vmatpush1.msra.mxu0 %v2067
    %2088 = vmatprep.subr.mxu0 0.0
    %2089 = vmatpush1.msra.mxu0 %v2066
    %2090 = vmatprep.subr.mxu0 0.0
    %2091 = vmatpush1.msra.mxu0 %v2065
    %2092 = vmatprep.subr.mxu0 0.0
    %2093 = vmatpush1.msra.mxu0 %v2064
    %2094 = vmatprep.subr.mxu0 0.0
    %2095 = vmatpush1.msra.mxu0 %v2063
    %2096 = vmatprep.subr.mxu0 0.0
    %2097 = vmatpush1.msra.mxu0 %v2062
    %2098 = vmatprep.subr.mxu0 0.0
    %2099 = vmatpush1.msra.mxu0 %v2061
    %2100 = vmatprep.subr.mxu0 0.0
    %2101 = vmatpush1.msra.mxu0 %v2060
    %2102 = vmatprep.subr.mxu0 0.0
    %2103 = vmatpush1.msra.mxu0 %v2059
    %2104 = vmatprep.subr.mxu0 0.0
    %2105 = vmatpush1.msra.mxu0 %v2058
    %2106 = vmatprep.subr.mxu0 0.0
    %2107 = vmatpush2.msra.mxu0 0.0
    %2108 = vmatprep.subr.mxu0 0.0
    %2109 = vmatpush2.msra.mxu0 0.0
    %2110 = vmatprep.subr.mxu0 0.0
    %2111 = vmatpush2.msra.mxu0 0.0
    %2112 = vmatprep.subr.mxu0 0.0
    %2113 = vmatpush2.msra.mxu0 0.0
    %2114 = vmatprep.subr.mxu0 0.0
    %2115 = vmatpush2.msra.mxu0 0.0
    %2116 = vmatprep.subr.mxu0 0.0
    %2117 = vmatpush2.msra.mxu0 0.0
    %2118 = vmatprep.subr.mxu0 0.0
    %2119 = vmatpush2.msra.mxu0 0.0
    %2120 = vmatprep.subr.mxu0 0.0
    %2121 = vmatpush2.msra.mxu0 0.0
    %2122 = vmatprep.subr.mxu0 0.0
    %2123 = vmatpush2.msra.mxu0 0.0
    %2124 = vmatprep.subr.mxu0 0.0
    %2125 = vmatpush2.msra.mxu0 0.0
    %2126 = vmatprep.subr.mxu0 0.0
    %2127 = vmatpush2.msra.mxu0 0.0
    %2128 = vmatprep.subr.mxu0 0.0
    %2129 = vmatpush2.msra.mxu0 0.0
    %2130 = vmatprep.subr.mxu0 0.0
    %2131 = vmatpush2.msra.mxu0 0.0
    %2132 = vmatprep.subr.mxu0 0.0
    %2133 = vmatpush2.msra.mxu0 0.0
    %2134 = vmatprep.subr.mxu0 0.0
    %2135 = vmatpush2.msra.mxu0 0.0
    %2136 = vmatprep.subr.mxu0 0.0
    %2137 = vmatpush2.msra.mxu0 0.0
    %2138 = vmatprep.mubr.f32.mxu0 0.0
    %2139 = vmatmul.mubr.f32.gmra.mxu0 %v1873
    %v2140 = vpop.f32.mrf.mxu0
    %v2141 = vadd.f32 0.0, %v2140
    %v2142 = vpop.f32.mrf.mxu0
    %2143 = vdwg.mxu0
    %v2144 = vadd.f32 %v2056, %v2141
    %v2145 = vadd.f32 %v2144, %v1313
    %v2146 = vmax.f32 %v2145, 0.0
    %v2147 = vld [vmem:[#allocation21] sm:$0x1]
    %2148 = vmatprep.subr.mxu0 0.0
    %2149 = vmatpush1.msra.mxu0 0.0
    %2150 = vmatprep.subr.mxu0 0.0
    %2151 = vmatpush1.msra.mxu0 0.0
    %2152 = vmatprep.subr.mxu0 0.0
    %2153 = vmatpush1.msra.mxu0 0.0
    %2154 = vmatprep.subr.mxu0 0.0
    %2155 = vmatpush1.msra.mxu0 0.0
    %2156 = vmatprep.subr.mxu0 0.0
    %2157 = vmatpush1.msra.mxu0 0.0
    %2158 = vmatprep.subr.mxu0 0.0
    %2159 = vmatpush1.msra.mxu0 0.0
    %2160 = vmatprep.subr.mxu0 0.0
    %2161 = vmatpush1.msra.mxu0 0.0
    %2162 = vmatprep.subr.mxu0 0.0
    %2163 = vmatpush1.msra.mxu0 0.0
    %2164 = vmatprep.subr.mxu0 0.0
    %2165 = vmatpush1.msra.mxu0 0.0
    %2166 = vmatprep.subr.mxu0 0.0
    %2167 = vmatpush1.msra.mxu0 0.0
    %2168 = vmatprep.subr.mxu0 0.0
    %2169 = vmatpush1.msra.mxu0 0.0
    %2170 = vmatprep.subr.mxu0 0.0
    %2171 = vmatpush1.msra.mxu0 0.0
    %2172 = vmatprep.subr.mxu0 0.0
    %2173 = vmatpush1.msra.mxu0 0.0
    %2174 = vmatprep.subr.mxu0 0.0
    %2175 = vmatpush1.msra.mxu0 0.0
    %2176 = vmatprep.subr.mxu0 0.0
    %2177 = vmatpush1.msra.mxu0 0.0
    %2178 = vmatprep.subr.mxu0 0.0
    %2179 = vmatpush1.msra.mxu0 %v2146
    %2180 = vmatprep.subr.mxu0 0.0
    %2181 = vmatpush2.msra.mxu0 0.0
    %2182 = vmatprep.subr.mxu0 0.0
    %2183 = vmatpush2.msra.mxu0 0.0
    %2184 = vmatprep.subr.mxu0 0.0
    %2185 = vmatpush2.msra.mxu0 0.0
    %2186 = vmatprep.subr.mxu0 0.0
    %2187 = vmatpush2.msra.mxu0 0.0
    %2188 = vmatprep.subr.mxu0 0.0
    %2189 = vmatpush2.msra.mxu0 0.0
    %2190 = vmatprep.subr.mxu0 0.0
    %2191 = vmatpush2.msra.mxu0 0.0
    %2192 = vmatprep.subr.mxu0 0.0
    %2193 = vmatpush2.msra.mxu0 0.0
    %2194 = vmatprep.subr.mxu0 0.0
    %2195 = vmatpush2.msra.mxu0 0.0
    %2196 = vmatprep.subr.mxu0 0.0
    %2197 = vmatpush2.msra.mxu0 0.0
    %2198 = vmatprep.subr.mxu0 0.0
    %2199 = vmatpush2.msra.mxu0 0.0
    %2200 = vmatprep.subr.mxu0 0.0
    %2201 = vmatpush2.msra.mxu0 0.0
    %2202 = vmatprep.subr.mxu0 0.0
    %2203 = vmatpush2.msra.mxu0 0.0
    %2204 = vmatprep.subr.mxu0 0.0
    %2205 = vmatpush2.msra.mxu0 0.0
    %2206 = vmatprep.subr.mxu0 0.0
    %2207 = vmatpush2.msra.mxu0 0.0
    %2208 = vmatprep.subr.mxu0 0.0
    %2209 = vmatpush2.msra.mxu0 0.0
    %2210 = vmatprep.subr.mxu0 0.0
    %2211 = vmatpush2.msra.mxu0 0.0
    %2212 = vmatprep.mubr.f32.mxu0 0.0
    %2213 = vmatmul.mubr.f32.gmra.mxu0 %v1320
    %v2214 = vpop.f32.mrf.mxu0
    %v2215 = vadd.f32 0.0, %v2214
    %v2216 = vpop.f32.mrf.mxu0
    %2217 = vdwg.mxu0
    %2218 = vmatprep.subr.mxu0 0.0
    %2219 = vmatpush1.msra.mxu0 0.0
    %2220 = vmatprep.subr.mxu0 0.0
    %2221 = vmatpush1.msra.mxu0 0.0
    %2222 = vmatprep.subr.mxu0 0.0
    %2223 = vmatpush1.msra.mxu0 0.0
    %2224 = vmatprep.subr.mxu0 0.0
    %2225 = vmatpush1.msra.mxu0 0.0
    %2226 = vmatprep.subr.mxu0 0.0
    %2227 = vmatpush1.msra.mxu0 0.0
    %2228 = vmatprep.subr.mxu0 0.0
    %2229 = vmatpush1.msra.mxu0 0.0
    %2230 = vmatprep.subr.mxu0 0.0
    %2231 = vmatpush1.msra.mxu0 0.0
    %2232 = vmatprep.subr.mxu0 0.0
    %2233 = vmatpush1.msra.mxu0 0.0
    %2234 = vmatprep.subr.mxu0 0.0
    %2235 = vmatpush1.msra.mxu0 0.0
    %2236 = vmatprep.subr.mxu0 0.0
    %2237 = vmatpush1.msra.mxu0 0.0
    %2238 = vmatprep.subr.mxu0 0.0
    %2239 = vmatpush1.msra.mxu0 0.0
    %2240 = vmatprep.subr.mxu0 0.0
    %2241 = vmatpush1.msra.mxu0 0.0
    %2242 = vmatprep.subr.mxu0 0.0
    %2243 = vmatpush1.msra.mxu0 0.0
    %2244 = vmatprep.subr.mxu0 0.0
    %2245 = vmatpush1.msra.mxu0 0.0
    %2246 = vmatprep.subr.mxu0 0.0
    %2247 = vmatpush1.msra.mxu0 0.0
    %2248 = vmatprep.subr.mxu0 0.0
    %2249 = vmatpush1.msra.mxu0 %v2146
    %2250 = vmatprep.subr.mxu0 0.0
    %2251 = vmatpush2.msra.mxu0 0.0
    %2252 = vmatprep.subr.mxu0 0.0
    %2253 = vmatpush2.msra.mxu0 0.0
    %2254 = vmatprep.subr.mxu0 0.0
    %2255 = vmatpush2.msra.mxu0 0.0
    %2256 = vmatprep.subr.mxu0 0.0
    %2257 = vmatpush2.msra.mxu0 0.0
    %2258 = vmatprep.subr.mxu0 0.0
    %2259 = vmatpush2.msra.mxu0 0.0
    %2260 = vmatprep.subr.mxu0 0.0
    %2261 = vmatpush2.msra.mxu0 0.0
    %2262 = vmatprep.subr.mxu0 0.0
    %2263 = vmatpush2.msra.mxu0 0.0
    %2264 = vmatprep.subr.mxu0 0.0
    %2265 = vmatpush2.msra.mxu0 0.0
    %2266 = vmatprep.subr.mxu0 0.0
    %2267 = vmatpush2.msra.mxu0 0.0
    %2268 = vmatprep.subr.mxu0 0.0
    %2269 = vmatpush2.msra.mxu0 0.0
    %2270 = vmatprep.subr.mxu0 0.0
    %2271 = vmatpush2.msra.mxu0 0.0
    %2272 = vmatprep.subr.mxu0 0.0
    %2273 = vmatpush2.msra.mxu0 0.0
    %2274 = vmatprep.subr.mxu0 0.0
    %2275 = vmatpush2.msra.mxu0 0.0
    %2276 = vmatprep.subr.mxu0 0.0
    %2277 = vmatpush2.msra.mxu0 0.0
    %2278 = vmatprep.subr.mxu0 0.0
    %2279 = vmatpush2.msra.mxu0 0.0
    %2280 = vmatprep.subr.mxu0 0.0
    %2281 = vmatpush2.msra.mxu0 0.0
    %2282 = vmatprep.mubr.f32.mxu0 0.0
    %2283 = vmatmul.mubr.f32.gmra.mxu0 %v1393
    %v2284 = vpop.f32.mrf.mxu0
    %v2285 = vadd.f32 0.0, %v2284
    %v2286 = vpop.f32.mrf.mxu0
    %2287 = vdwg.mxu0
    %v2288 = vld [vmem:[#allocation19] sm:$0xff]
    %v2289 = vld [vmem:[#allocation19 + $0x8] sm:$0xff]
    %v2290 = vld [vmem:[#allocation19 + $0x10] sm:$0xff]
    %v2291 = vld [vmem:[#allocation19 + $0x18] sm:$0xff]
    %v2292 = vld [vmem:[#allocation19 + $0x20] sm:$0xff]
    %v2293 = vld [vmem:[#allocation19 + $0x28] sm:$0xff]
    %v2294 = vld [vmem:[#allocation19 + $0x30] sm:$0xff]
    %v2295 = vld [vmem:[#allocation19 + $0x38] sm:$0xff]
    %v2296 = vld [vmem:[#allocation19 + $0x40] sm:$0xff]
    %v2297 = vld [vmem:[#allocation19 + $0x48] sm:$0xff]
    %v2298 = vld [vmem:[#allocation19 + $0x50] sm:$0xff]
    %v2299 = vld [vmem:[#allocation19 + $0x58] sm:$0xff]
    %v2300 = vld [vmem:[#allocation19 + $0x60] sm:$0xff]
    %v2301 = vld [vmem:[#allocation19 + $0x68] sm:$0xff]
    %v2302 = vld [vmem:[#allocation19 + $0x70] sm:$0xff]
    %v2303 = vld [vmem:[#allocation19 + $0x78] sm:$0xff]
    %2304 = vmatprep.subr.mxu0 0.0
    %2305 = vmatpush1.msra.mxu0 %v2303
    %2306 = vmatprep.subr.mxu0 0.0
    %2307 = vmatpush1.msra.mxu0 %v2302
    %2308 = vmatprep.subr.mxu0 0.0
    %2309 = vmatpush1.msra.mxu0 %v2301
    %2310 = vmatprep.subr.mxu0 0.0
    %2311 = vmatpush1.msra.mxu0 %v2300
    %2312 = vmatprep.subr.mxu0 0.0
    %2313 = vmatpush1.msra.mxu0 %v2299
    %2314 = vmatprep.subr.mxu0 0.0
    %2315 = vmatpush1.msra.mxu0 %v2298
    %2316 = vmatprep.subr.mxu0 0.0
    %2317 = vmatpush1.msra.mxu0 %v2297
    %2318 = vmatprep.subr.mxu0 0.0
    %2319 = vmatpush1.msra.mxu0 %v2296
    %2320 = vmatprep.subr.mxu0 0.0
    %2321 = vmatpush1.msra.mxu0 %v2295
    %2322 = vmatprep.subr.mxu0 0.0
    %2323 = vmatpush1.msra.mxu0 %v2294
    %2324 = vmatprep.subr.mxu0 0.0
    %2325 = vmatpush1.msra.mxu0 %v2293
    %2326 = vmatprep.subr.mxu0 0.0
    %2327 = vmatpush1.msra.mxu0 %v2292
    %2328 = vmatprep.subr.mxu0 0.0
    %2329 = vmatpush1.msra.mxu0 %v2291
    %2330 = vmatprep.subr.mxu0 0.0
    %2331 = vmatpush1.msra.mxu0 %v2290
    %2332 = vmatprep.subr.mxu0 0.0
    %2333 = vmatpush1.msra.mxu0 %v2289
    %2334 = vmatprep.subr.mxu0 0.0
    %2335 = vmatpush1.msra.mxu0 %v2288
    %2336 = vmatprep.subr.mxu0 0.0
    %2337 = vmatpush2.msra.mxu0 0.0
    %2338 = vmatprep.subr.mxu0 0.0
    %2339 = vmatpush2.msra.mxu0 0.0
    %2340 = vmatprep.subr.mxu0 0.0
    %2341 = vmatpush2.msra.mxu0 0.0
    %2342 = vmatprep.subr.mxu0 0.0
    %2343 = vmatpush2.msra.mxu0 0.0
    %2344 = vmatprep.subr.mxu0 0.0
    %2345 = vmatpush2.msra.mxu0 0.0
    %2346 = vmatprep.subr.mxu0 0.0
    %2347 = vmatpush2.msra.mxu0 0.0
    %2348 = vmatprep.subr.mxu0 0.0
    %2349 = vmatpush2.msra.mxu0 0.0
    %2350 = vmatprep.subr.mxu0 0.0
    %2351 = vmatpush2.msra.mxu0 0.0
    %2352 = vmatprep.subr.mxu0 0.0
    %2353 = vmatpush2.msra.mxu0 0.0
    %2354 = vmatprep.subr.mxu0 0.0
    %2355 = vmatpush2.msra.mxu0 0.0
    %2356 = vmatprep.subr.mxu0 0.0
    %2357 = vmatpush2.msra.mxu0 0.0
    %2358 = vmatprep.subr.mxu0 0.0
    %2359 = vmatpush2.msra.mxu0 0.0
    %2360 = vmatprep.subr.mxu0 0.0
    %2361 = vmatpush2.msra.mxu0 0.0
    %2362 = vmatprep.subr.mxu0 0.0
    %2363 = vmatpush2.msra.mxu0 0.0
    %2364 = vmatprep.subr.mxu0 0.0
    %2365 = vmatpush2.msra.mxu0 0.0
    %2366 = vmatprep.subr.mxu0 0.0
    %2367 = vmatpush2.msra.mxu0 0.0
    %2368 = vmatprep.mubr.f32.mxu0 0.0
    %2369 = vmatmul.mubr.f32.gmra.mxu0 %v2215
    %v2370 = vpop.f32.mrf.mxu0
    %v2371 = vadd.f32 0.0, %v2370
    %v2372 = vpop.f32.mrf.mxu0
    %2373 = vdwg.mxu0
    %v2375 = vlaneseq
    %v2376 = vshrl.u32 %v2375, 7
    %v2377 = vsub.s32 0, %v2376
    %v2378 = vrot.slane %v2147, %v2377
    %v2380 = vadd.f32 %v2378, %v2371
    %s2381 = scalar_lea.vmem [#allocation19], 128
    %v2382 = vld [vmem:[%s2381] sm:$0xff]
    %v2383 = vld [vmem:[%s2381 + $0x8] sm:$0xff]
    %v2384 = vld [vmem:[%s2381 + $0x10] sm:$0xff]
    %v2385 = vld [vmem:[%s2381 + $0x18] sm:$0xff]
    %v2386 = vld [vmem:[%s2381 + $0x20] sm:$0xff]
    %v2387 = vld [vmem:[%s2381 + $0x28] sm:$0xff]
    %v2388 = vld [vmem:[%s2381 + $0x30] sm:$0xff]
    %v2389 = vld [vmem:[%s2381 + $0x38] sm:$0xff]
    %v2390 = vld [vmem:[%s2381 + $0x40] sm:$0xff]
    %v2391 = vld [vmem:[%s2381 + $0x48] sm:$0xff]
    %v2392 = vld [vmem:[%s2381 + $0x50] sm:$0xff]
    %v2393 = vld [vmem:[%s2381 + $0x58] sm:$0xff]
    %v2394 = vld [vmem:[%s2381 + $0x60] sm:$0xff]
    %v2395 = vld [vmem:[%s2381 + $0x68] sm:$0xff]
    %v2396 = vld [vmem:[%s2381 + $0x70] sm:$0xff]
    %v2397 = vld [vmem:[%s2381 + $0x78] sm:$0xff]
    %2398 = vmatprep.subr.mxu0 0.0
    %2399 = vmatpush1.msra.mxu0 %v2397
    %2400 = vmatprep.subr.mxu0 0.0
    %2401 = vmatpush1.msra.mxu0 %v2396
    %2402 = vmatprep.subr.mxu0 0.0
    %2403 = vmatpush1.msra.mxu0 %v2395
    %2404 = vmatprep.subr.mxu0 0.0
    %2405 = vmatpush1.msra.mxu0 %v2394
    %2406 = vmatprep.subr.mxu0 0.0
    %2407 = vmatpush1.msra.mxu0 %v2393
    %2408 = vmatprep.subr.mxu0 0.0
    %2409 = vmatpush1.msra.mxu0 %v2392
    %2410 = vmatprep.subr.mxu0 0.0
    %2411 = vmatpush1.msra.mxu0 %v2391
    %2412 = vmatprep.subr.mxu0 0.0
    %2413 = vmatpush1.msra.mxu0 %v2390
    %2414 = vmatprep.subr.mxu0 0.0
    %2415 = vmatpush1.msra.mxu0 %v2389
    %2416 = vmatprep.subr.mxu0 0.0
    %2417 = vmatpush1.msra.mxu0 %v2388
    %2418 = vmatprep.subr.mxu0 0.0
    %2419 = vmatpush1.msra.mxu0 %v2387
    %2420 = vmatprep.subr.mxu0 0.0
    %2421 = vmatpush1.msra.mxu0 %v2386
    %2422 = vmatprep.subr.mxu0 0.0
    %2423 = vmatpush1.msra.mxu0 %v2385
    %2424 = vmatprep.subr.mxu0 0.0
    %2425 = vmatpush1.msra.mxu0 %v2384
    %2426 = vmatprep.subr.mxu0 0.0
    %2427 = vmatpush1.msra.mxu0 %v2383
    %2428 = vmatprep.subr.mxu0 0.0
    %2429 = vmatpush1.msra.mxu0 %v2382
    %2430 = vmatprep.subr.mxu0 0.0
    %2431 = vmatpush2.msra.mxu0 0.0
    %2432 = vmatprep.subr.mxu0 0.0
    %2433 = vmatpush2.msra.mxu0 0.0
    %2434 = vmatprep.subr.mxu0 0.0
    %2435 = vmatpush2.msra.mxu0 0.0
    %2436 = vmatprep.subr.mxu0 0.0
    %2437 = vmatpush2.msra.mxu0 0.0
    %2438 = vmatprep.subr.mxu0 0.0
    %2439 = vmatpush2.msra.mxu0 0.0
    %2440 = vmatprep.subr.mxu0 0.0
    %2441 = vmatpush2.msra.mxu0 0.0
    %2442 = vmatprep.subr.mxu0 0.0
    %2443 = vmatpush2.msra.mxu0 0.0
    %2444 = vmatprep.subr.mxu0 0.0
    %2445 = vmatpush2.msra.mxu0 0.0
    %2446 = vmatprep.subr.mxu0 0.0
    %2447 = vmatpush2.msra.mxu0 0.0
    %2448 = vmatprep.subr.mxu0 0.0
    %2449 = vmatpush2.msra.mxu0 0.0
    %2450 = vmatprep.subr.mxu0 0.0
    %2451 = vmatpush2.msra.mxu0 0.0
    %2452 = vmatprep.subr.mxu0 0.0
    %2453 = vmatpush2.msra.mxu0 0.0
    %2454 = vmatprep.subr.mxu0 0.0
    %2455 = vmatpush2.msra.mxu0 0.0
    %2456 = vmatprep.subr.mxu0 0.0
    %2457 = vmatpush2.msra.mxu0 0.0
    %2458 = vmatprep.subr.mxu0 0.0
    %2459 = vmatpush2.msra.mxu0 0.0
    %2460 = vmatprep.subr.mxu0 0.0
    %2461 = vmatpush2.msra.mxu0 0.0
    %2462 = vmatprep.mubr.f32.mxu0 0.0
    %2463 = vmatmul.mubr.f32.gmra.mxu0 %v2146
    %v2464 = vpop.f32.mrf.mxu0
    %v2465 = vadd.f32 0.0, %v2464
    %v2466 = vpop.f32.mrf.mxu0
    %2467 = vdwg.mxu0
    %v2468 = vadd.f32 %v2380, %v2465
    %s2469 = scalar_lea.vmem [#allocation19], 256
    %v2470 = vld [vmem:[%s2469] sm:$0xff]
    %v2471 = vld [vmem:[%s2469 + $0x8] sm:$0xff]
    %v2472 = vld [vmem:[%s2469 + $0x10] sm:$0xff]
    %v2473 = vld [vmem:[%s2469 + $0x18] sm:$0xff]
    %v2474 = vld [vmem:[%s2469 + $0x20] sm:$0xff]
    %v2475 = vld [vmem:[%s2469 + $0x28] sm:$0xff]
    %v2476 = vld [vmem:[%s2469 + $0x30] sm:$0xff]
    %v2477 = vld [vmem:[%s2469 + $0x38] sm:$0xff]
    %v2478 = vld [vmem:[%s2469 + $0x40] sm:$0xff]
    %v2479 = vld [vmem:[%s2469 + $0x48] sm:$0xff]
    %v2480 = vld [vmem:[%s2469 + $0x50] sm:$0xff]
    %v2481 = vld [vmem:[%s2469 + $0x58] sm:$0xff]
    %v2482 = vld [vmem:[%s2469 + $0x60] sm:$0xff]
    %v2483 = vld [vmem:[%s2469 + $0x68] sm:$0xff]
    %v2484 = vld [vmem:[%s2469 + $0x70] sm:$0xff]
    %v2485 = vld [vmem:[%s2469 + $0x78] sm:$0xff]
    %2486 = vmatprep.subr.mxu0 0.0
    %2487 = vmatpush1.msra.mxu0 %v2485
    %2488 = vmatprep.subr.mxu0 0.0
    %2489 = vmatpush1.msra.mxu0 %v2484
    %2490 = vmatprep.subr.mxu0 0.0
    %2491 = vmatpush1.msra.mxu0 %v2483
    %2492 = vmatprep.subr.mxu0 0.0
    %2493 = vmatpush1.msra.mxu0 %v2482
    %2494 = vmatprep.subr.mxu0 0.0
    %2495 = vmatpush1.msra.mxu0 %v2481
    %2496 = vmatprep.subr.mxu0 0.0
    %2497 = vmatpush1.msra.mxu0 %v2480
    %2498 = vmatprep.subr.mxu0 0.0
    %2499 = vmatpush1.msra.mxu0 %v2479
    %2500 = vmatprep.subr.mxu0 0.0
    %2501 = vmatpush1.msra.mxu0 %v2478
    %2502 = vmatprep.subr.mxu0 0.0
    %2503 = vmatpush1.msra.mxu0 %v2477
    %2504 = vmatprep.subr.mxu0 0.0
    %2505 = vmatpush1.msra.mxu0 %v2476
    %2506 = vmatprep.subr.mxu0 0.0
    %2507 = vmatpush1.msra.mxu0 %v2475
    %2508 = vmatprep.subr.mxu0 0.0
    %2509 = vmatpush1.msra.mxu0 %v2474
    %2510 = vmatprep.subr.mxu0 0.0
    %2511 = vmatpush1.msra.mxu0 %v2473
    %2512 = vmatprep.subr.mxu0 0.0
    %2513 = vmatpush1.msra.mxu0 %v2472
    %2514 = vmatprep.subr.mxu0 0.0
    %2515 = vmatpush1.msra.mxu0 %v2471
    %2516 = vmatprep.subr.mxu0 0.0
    %2517 = vmatpush1.msra.mxu0 %v2470
    %2518 = vmatprep.subr.mxu0 0.0
    %2519 = vmatpush2.msra.mxu0 0.0
    %2520 = vmatprep.subr.mxu0 0.0
    %2521 = vmatpush2.msra.mxu0 0.0
    %2522 = vmatprep.subr.mxu0 0.0
    %2523 = vmatpush2.msra.mxu0 0.0
    %2524 = vmatprep.subr.mxu0 0.0
    %2525 = vmatpush2.msra.mxu0 0.0
    %2526 = vmatprep.subr.mxu0 0.0
    %2527 = vmatpush2.msra.mxu0 0.0
    %2528 = vmatprep.subr.mxu0 0.0
    %2529 = vmatpush2.msra.mxu0 0.0
    %2530 = vmatprep.subr.mxu0 0.0
    %2531 = vmatpush2.msra.mxu0 0.0
    %2532 = vmatprep.subr.mxu0 0.0
    %2533 = vmatpush2.msra.mxu0 0.0
    %2534 = vmatprep.subr.mxu0 0.0
    %2535 = vmatpush2.msra.mxu0 0.0
    %2536 = vmatprep.subr.mxu0 0.0
    %2537 = vmatpush2.msra.mxu0 0.0
    %2538 = vmatprep.subr.mxu0 0.0
    %2539 = vmatpush2.msra.mxu0 0.0
    %2540 = vmatprep.subr.mxu0 0.0
    %2541 = vmatpush2.msra.mxu0 0.0
    %2542 = vmatprep.subr.mxu0 0.0
    %2543 = vmatpush2.msra.mxu0 0.0
    %2544 = vmatprep.subr.mxu0 0.0
    %2545 = vmatpush2.msra.mxu0 0.0
    %2546 = vmatprep.subr.mxu0 0.0
    %2547 = vmatpush2.msra.mxu0 0.0
    %2548 = vmatprep.subr.mxu0 0.0
    %2549 = vmatpush2.msra.mxu0 0.0
    %2550 = vmatprep.mubr.f32.mxu0 0.0
    %2551 = vmatmul.mubr.f32.gmra.mxu0 %v2285
    %v2552 = vpop.f32.mrf.mxu0
    %v2553 = vadd.f32 0.0, %v2552
    %v2554 = vpop.f32.mrf.mxu0
    %2555 = vdwg.mxu0
    %v2556 = vadd.f32 %v2468, %v2553
    %v2557 = vmax.f32 %v2556, 0.0
    %v2558 = vld [vmem:[#allocation24] sm:$0x1]
    %2559 = vmatprep.subr.mxu0 0.0
    %2560 = vmatpush1.msra.mxu0 0.0
    %2561 = vmatprep.subr.mxu0 0.0
    %2562 = vmatpush1.msra.mxu0 0.0
    %2563 = vmatprep.subr.mxu0 0.0
    %2564 = vmatpush1.msra.mxu0 0.0
    %2565 = vmatprep.subr.mxu0 0.0
    %2566 = vmatpush1.msra.mxu0 0.0
    %2567 = vmatprep.subr.mxu0 0.0
    %2568 = vmatpush1.msra.mxu0 0.0
    %2569 = vmatprep.subr.mxu0 0.0
    %2570 = vmatpush1.msra.mxu0 0.0
    %2571 = vmatprep.subr.mxu0 0.0
    %2572 = vmatpush1.msra.mxu0 0.0
    %2573 = vmatprep.subr.mxu0 0.0
    %2574 = vmatpush1.msra.mxu0 0.0
    %2575 = vmatprep.subr.mxu0 0.0
    %2576 = vmatpush1.msra.mxu0 0.0
    %2577 = vmatprep.subr.mxu0 0.0
    %2578 = vmatpush1.msra.mxu0 0.0
    %2579 = vmatprep.subr.mxu0 0.0
    %2580 = vmatpush1.msra.mxu0 0.0
    %2581 = vmatprep.subr.mxu0 0.0
    %2582 = vmatpush1.msra.mxu0 0.0
    %2583 = vmatprep.subr.mxu0 0.0
    %2584 = vmatpush1.msra.mxu0 0.0
    %2585 = vmatprep.subr.mxu0 0.0
    %2586 = vmatpush1.msra.mxu0 0.0
    %2587 = vmatprep.subr.mxu0 0.0
    %2588 = vmatpush1.msra.mxu0 0.0
    %2589 = vmatprep.subr.mxu0 0.0
    %2590 = vmatpush1.msra.mxu0 %v2557
    %2591 = vmatprep.subr.mxu0 0.0
    %2592 = vmatpush2.msra.mxu0 0.0
    %2593 = vmatprep.subr.mxu0 0.0
    %2594 = vmatpush2.msra.mxu0 0.0
    %2595 = vmatprep.subr.mxu0 0.0
    %2596 = vmatpush2.msra.mxu0 0.0
    %2597 = vmatprep.subr.mxu0 0.0
    %2598 = vmatpush2.msra.mxu0 0.0
    %2599 = vmatprep.subr.mxu0 0.0
    %2600 = vmatpush2.msra.mxu0 0.0
    %2601 = vmatprep.subr.mxu0 0.0
    %2602 = vmatpush2.msra.mxu0 0.0
    %2603 = vmatprep.subr.mxu0 0.0
    %2604 = vmatpush2.msra.mxu0 0.0
    %2605 = vmatprep.subr.mxu0 0.0
    %2606 = vmatpush2.msra.mxu0 0.0
    %2607 = vmatprep.subr.mxu0 0.0
    %2608 = vmatpush2.msra.mxu0 0.0
    %2609 = vmatprep.subr.mxu0 0.0
    %2610 = vmatpush2.msra.mxu0 0.0
    %2611 = vmatprep.subr.mxu0 0.0
    %2612 = vmatpush2.msra.mxu0 0.0
    %2613 = vmatprep.subr.mxu0 0.0
    %2614 = vmatpush2.msra.mxu0 0.0
    %2615 = vmatprep.subr.mxu0 0.0
    %2616 = vmatpush2.msra.mxu0 0.0
    %2617 = vmatprep.subr.mxu0 0.0
    %2618 = vmatpush2.msra.mxu0 0.0
    %2619 = vmatprep.subr.mxu0 0.0
    %2620 = vmatpush2.msra.mxu0 0.0
    %2621 = vmatprep.subr.mxu0 0.0
    %2622 = vmatpush2.msra.mxu0 0.0
    %2623 = vmatprep.mubr.f32.mxu0 0.0
    %2624 = vmatmul.mubr.f32.gmra.mxu0 %v1320
    %v2625 = vpop.f32.mrf.mxu0
    %v2626 = vadd.f32 0.0, %v2625
    %v2627 = vpop.f32.mrf.mxu0
    %2628 = vdwg.mxu0
    %2629 = vmatprep.subr.mxu0 0.0
    %2630 = vmatpush1.msra.mxu0 0.0
    %2631 = vmatprep.subr.mxu0 0.0
    %2632 = vmatpush1.msra.mxu0 0.0
    %2633 = vmatprep.subr.mxu0 0.0
    %2634 = vmatpush1.msra.mxu0 0.0
    %2635 = vmatprep.subr.mxu0 0.0
    %2636 = vmatpush1.msra.mxu0 0.0
    %2637 = vmatprep.subr.mxu0 0.0
    %2638 = vmatpush1.msra.mxu0 0.0
    %2639 = vmatprep.subr.mxu0 0.0
    %2640 = vmatpush1.msra.mxu0 0.0
    %2641 = vmatprep.subr.mxu0 0.0
    %2642 = vmatpush1.msra.mxu0 0.0
    %2643 = vmatprep.subr.mxu0 0.0
    %2644 = vmatpush1.msra.mxu0 0.0
    %2645 = vmatprep.subr.mxu0 0.0
    %2646 = vmatpush1.msra.mxu0 0.0
    %2647 = vmatprep.subr.mxu0 0.0
    %2648 = vmatpush1.msra.mxu0 0.0
    %2649 = vmatprep.subr.mxu0 0.0
    %2650 = vmatpush1.msra.mxu0 0.0
    %2651 = vmatprep.subr.mxu0 0.0
    %2652 = vmatpush1.msra.mxu0 0.0
    %2653 = vmatprep.subr.mxu0 0.0
    %2654 = vmatpush1.msra.mxu0 0.0
    %2655 = vmatprep.subr.mxu0 0.0
    %2656 = vmatpush1.msra.mxu0 0.0
    %2657 = vmatprep.subr.mxu0 0.0
    %2658 = vmatpush1.msra.mxu0 0.0
    %2659 = vmatprep.subr.mxu0 0.0
    %2660 = vmatpush1.msra.mxu0 %v2557
    %2661 = vmatprep.subr.mxu0 0.0
    %2662 = vmatpush2.msra.mxu0 0.0
    %2663 = vmatprep.subr.mxu0 0.0
    %2664 = vmatpush2.msra.mxu0 0.0
    %2665 = vmatprep.subr.mxu0 0.0
    %2666 = vmatpush2.msra.mxu0 0.0
    %2667 = vmatprep.subr.mxu0 0.0
    %2668 = vmatpush2.msra.mxu0 0.0
    %2669 = vmatprep.subr.mxu0 0.0
    %2670 = vmatpush2.msra.mxu0 0.0
    %2671 = vmatprep.subr.mxu0 0.0
    %2672 = vmatpush2.msra.mxu0 0.0
    %2673 = vmatprep.subr.mxu0 0.0
    %2674 = vmatpush2.msra.mxu0 0.0
    %2675 = vmatprep.subr.mxu0 0.0
    %2676 = vmatpush2.msra.mxu0 0.0
    %2677 = vmatprep.subr.mxu0 0.0
    %2678 = vmatpush2.msra.mxu0 0.0
    %2679 = vmatprep.subr.mxu0 0.0
    %2680 = vmatpush2.msra.mxu0 0.0
    %2681 = vmatprep.subr.mxu0 0.0
    %2682 = vmatpush2.msra.mxu0 0.0
    %2683 = vmatprep.subr.mxu0 0.0
    %2684 = vmatpush2.msra.mxu0 0.0
    %2685 = vmatprep.subr.mxu0 0.0
    %2686 = vmatpush2.msra.mxu0 0.0
    %2687 = vmatprep.subr.mxu0 0.0
    %2688 = vmatpush2.msra.mxu0 0.0
    %2689 = vmatprep.subr.mxu0 0.0
    %2690 = vmatpush2.msra.mxu0 0.0
    %2691 = vmatprep.subr.mxu0 0.0
    %2692 = vmatpush2.msra.mxu0 0.0
    %2693 = vmatprep.mubr.f32.mxu0 0.0
    %2694 = vmatmul.mubr.f32.gmra.mxu0 %v1393
    %v2695 = vpop.f32.mrf.mxu0
    %v2696 = vadd.f32 0.0, %v2695
    %v2697 = vpop.f32.mrf.mxu0
    %2698 = vdwg.mxu0
    %v2699 = vld [vmem:[#allocation22] sm:$0xff]
    %v2700 = vld [vmem:[#allocation22 + $0x8] sm:$0xff]
    %v2701 = vld [vmem:[#allocation22 + $0x10] sm:$0xff]
    %v2702 = vld [vmem:[#allocation22 + $0x18] sm:$0xff]
    %v2703 = vld [vmem:[#allocation22 + $0x20] sm:$0xff]
    %v2704 = vld [vmem:[#allocation22 + $0x28] sm:$0xff]
    %v2705 = vld [vmem:[#allocation22 + $0x30] sm:$0xff]
    %v2706 = vld [vmem:[#allocation22 + $0x38] sm:$0xff]
    %v2707 = vld [vmem:[#allocation22 + $0x40] sm:$0xff]
    %v2708 = vld [vmem:[#allocation22 + $0x48] sm:$0xff]
    %v2709 = vld [vmem:[#allocation22 + $0x50] sm:$0xff]
    %v2710 = vld [vmem:[#allocation22 + $0x58] sm:$0xff]
    %v2711 = vld [vmem:[#allocation22 + $0x60] sm:$0xff]
    %v2712 = vld [vmem:[#allocation22 + $0x68] sm:$0xff]
    %v2713 = vld [vmem:[#allocation22 + $0x70] sm:$0xff]
    %v2714 = vld [vmem:[#allocation22 + $0x78] sm:$0xff]
    %2715 = vmatprep.subr.mxu0 0.0
    %2716 = vmatpush1.msra.mxu0 %v2714
    %2717 = vmatprep.subr.mxu0 0.0
    %2718 = vmatpush1.msra.mxu0 %v2713
    %2719 = vmatprep.subr.mxu0 0.0
    %2720 = vmatpush1.msra.mxu0 %v2712
    %2721 = vmatprep.subr.mxu0 0.0
    %2722 = vmatpush1.msra.mxu0 %v2711
    %2723 = vmatprep.subr.mxu0 0.0
    %2724 = vmatpush1.msra.mxu0 %v2710
    %2725 = vmatprep.subr.mxu0 0.0
    %2726 = vmatpush1.msra.mxu0 %v2709
    %2727 = vmatprep.subr.mxu0 0.0
    %2728 = vmatpush1.msra.mxu0 %v2708
    %2729 = vmatprep.subr.mxu0 0.0
    %2730 = vmatpush1.msra.mxu0 %v2707
    %2731 = vmatprep.subr.mxu0 0.0
    %2732 = vmatpush1.msra.mxu0 %v2706
    %2733 = vmatprep.subr.mxu0 0.0
    %2734 = vmatpush1.msra.mxu0 %v2705
    %2735 = vmatprep.subr.mxu0 0.0
    %2736 = vmatpush1.msra.mxu0 %v2704
    %2737 = vmatprep.subr.mxu0 0.0
    %2738 = vmatpush1.msra.mxu0 %v2703
    %2739 = vmatprep.subr.mxu0 0.0
    %2740 = vmatpush1.msra.mxu0 %v2702
    %2741 = vmatprep.subr.mxu0 0.0
    %2742 = vmatpush1.msra.mxu0 %v2701
    %2743 = vmatprep.subr.mxu0 0.0
    %2744 = vmatpush1.msra.mxu0 %v2700
    %2745 = vmatprep.subr.mxu0 0.0
    %2746 = vmatpush1.msra.mxu0 %v2699
    %2747 = vmatprep.subr.mxu0 0.0
    %2748 = vmatpush2.msra.mxu0 0.0
    %2749 = vmatprep.subr.mxu0 0.0
    %2750 = vmatpush2.msra.mxu0 0.0
    %2751 = vmatprep.subr.mxu0 0.0
    %2752 = vmatpush2.msra.mxu0 0.0
    %2753 = vmatprep.subr.mxu0 0.0
    %2754 = vmatpush2.msra.mxu0 0.0
    %2755 = vmatprep.subr.mxu0 0.0
    %2756 = vmatpush2.msra.mxu0 0.0
    %2757 = vmatprep.subr.mxu0 0.0
    %2758 = vmatpush2.msra.mxu0 0.0
    %2759 = vmatprep.subr.mxu0 0.0
    %2760 = vmatpush2.msra.mxu0 0.0
    %2761 = vmatprep.subr.mxu0 0.0
    %2762 = vmatpush2.msra.mxu0 0.0
    %2763 = vmatprep.subr.mxu0 0.0
    %2764 = vmatpush2.msra.mxu0 0.0
    %2765 = vmatprep.subr.mxu0 0.0
    %2766 = vmatpush2.msra.mxu0 0.0
    %2767 = vmatprep.subr.mxu0 0.0
    %2768 = vmatpush2.msra.mxu0 0.0
    %2769 = vmatprep.subr.mxu0 0.0
    %2770 = vmatpush2.msra.mxu0 0.0
    %2771 = vmatprep.subr.mxu0 0.0
    %2772 = vmatpush2.msra.mxu0 0.0
    %2773 = vmatprep.subr.mxu0 0.0
    %2774 = vmatpush2.msra.mxu0 0.0
    %2775 = vmatprep.subr.mxu0 0.0
    %2776 = vmatpush2.msra.mxu0 0.0
    %2777 = vmatprep.subr.mxu0 0.0
    %2778 = vmatpush2.msra.mxu0 0.0
    %2779 = vmatprep.mubr.f32.mxu0 0.0
    %2780 = vmatmul.mubr.f32.gmra.mxu0 %v2626
    %v2781 = vpop.f32.mrf.mxu0
    %v2782 = vadd.f32 0.0, %v2781
    %v2783 = vpop.f32.mrf.mxu0
    %2784 = vdwg.mxu0
    %v2786 = vlaneseq
    %v2787 = vshrl.u32 %v2786, 7
    %v2788 = vsub.s32 0, %v2787
    %v2789 = vrot.slane %v2558, %v2788
    %v2791 = vadd.f32 %v2789, %v2782
    %s2792 = scalar_lea.vmem [#allocation22], 128
    %v2793 = vld [vmem:[%s2792] sm:$0xff]
    %v2794 = vld [vmem:[%s2792 + $0x8] sm:$0xff]
    %v2795 = vld [vmem:[%s2792 + $0x10] sm:$0xff]
    %v2796 = vld [vmem:[%s2792 + $0x18] sm:$0xff]
    %v2797 = vld [vmem:[%s2792 + $0x20] sm:$0xff]
    %v2798 = vld [vmem:[%s2792 + $0x28] sm:$0xff]
    %v2799 = vld [vmem:[%s2792 + $0x30] sm:$0xff]
    %v2800 = vld [vmem:[%s2792 + $0x38] sm:$0xff]
    %v2801 = vld [vmem:[%s2792 + $0x40] sm:$0xff]
    %v2802 = vld [vmem:[%s2792 + $0x48] sm:$0xff]
    %v2803 = vld [vmem:[%s2792 + $0x50] sm:$0xff]
    %v2804 = vld [vmem:[%s2792 + $0x58] sm:$0xff]
    %v2805 = vld [vmem:[%s2792 + $0x60] sm:$0xff]
    %v2806 = vld [vmem:[%s2792 + $0x68] sm:$0xff]
    %v2807 = vld [vmem:[%s2792 + $0x70] sm:$0xff]
    %v2808 = vld [vmem:[%s2792 + $0x78] sm:$0xff]
    %2809 = vmatprep.subr.mxu0 0.0
    %2810 = vmatpush1.msra.mxu0 %v2808
    %2811 = vmatprep.subr.mxu0 0.0
    %2812 = vmatpush1.msra.mxu0 %v2807
    %2813 = vmatprep.subr.mxu0 0.0
    %2814 = vmatpush1.msra.mxu0 %v2806
    %2815 = vmatprep.subr.mxu0 0.0
    %2816 = vmatpush1.msra.mxu0 %v2805
    %2817 = vmatprep.subr.mxu0 0.0
    %2818 = vmatpush1.msra.mxu0 %v2804
    %2819 = vmatprep.subr.mxu0 0.0
    %2820 = vmatpush1.msra.mxu0 %v2803
    %2821 = vmatprep.subr.mxu0 0.0
    %2822 = vmatpush1.msra.mxu0 %v2802
    %2823 = vmatprep.subr.mxu0 0.0
    %2824 = vmatpush1.msra.mxu0 %v2801
    %2825 = vmatprep.subr.mxu0 0.0
    %2826 = vmatpush1.msra.mxu0 %v2800
    %2827 = vmatprep.subr.mxu0 0.0
    %2828 = vmatpush1.msra.mxu0 %v2799
    %2829 = vmatprep.subr.mxu0 0.0
    %2830 = vmatpush1.msra.mxu0 %v2798
    %2831 = vmatprep.subr.mxu0 0.0
    %2832 = vmatpush1.msra.mxu0 %v2797
    %2833 = vmatprep.subr.mxu0 0.0
    %2834 = vmatpush1.msra.mxu0 %v2796
    %2835 = vmatprep.subr.mxu0 0.0
    %2836 = vmatpush1.msra.mxu0 %v2795
    %2837 = vmatprep.subr.mxu0 0.0
    %2838 = vmatpush1.msra.mxu0 %v2794
    %2839 = vmatprep.subr.mxu0 0.0
    %2840 = vmatpush1.msra.mxu0 %v2793
    %2841 = vmatprep.subr.mxu0 0.0
    %2842 = vmatpush2.msra.mxu0 0.0
    %2843 = vmatprep.subr.mxu0 0.0
    %2844 = vmatpush2.msra.mxu0 0.0
    %2845 = vmatprep.subr.mxu0 0.0
    %2846 = vmatpush2.msra.mxu0 0.0
    %2847 = vmatprep.subr.mxu0 0.0
    %2848 = vmatpush2.msra.mxu0 0.0
    %2849 = vmatprep.subr.mxu0 0.0
    %2850 = vmatpush2.msra.mxu0 0.0
    %2851 = vmatprep.subr.mxu0 0.0
    %2852 = vmatpush2.msra.mxu0 0.0
    %2853 = vmatprep.subr.mxu0 0.0
    %2854 = vmatpush2.msra.mxu0 0.0
    %2855 = vmatprep.subr.mxu0 0.0
    %2856 = vmatpush2.msra.mxu0 0.0
    %2857 = vmatprep.subr.mxu0 0.0
    %2858 = vmatpush2.msra.mxu0 0.0
    %2859 = vmatprep.subr.mxu0 0.0
    %2860 = vmatpush2.msra.mxu0 0.0
    %2861 = vmatprep.subr.mxu0 0.0
    %2862 = vmatpush2.msra.mxu0 0.0
    %2863 = vmatprep.subr.mxu0 0.0
    %2864 = vmatpush2.msra.mxu0 0.0
    %2865 = vmatprep.subr.mxu0 0.0
    %2866 = vmatpush2.msra.mxu0 0.0
    %2867 = vmatprep.subr.mxu0 0.0
    %2868 = vmatpush2.msra.mxu0 0.0
    %2869 = vmatprep.subr.mxu0 0.0
    %2870 = vmatpush2.msra.mxu0 0.0
    %2871 = vmatprep.subr.mxu0 0.0
    %2872 = vmatpush2.msra.mxu0 0.0
    %2873 = vmatprep.mubr.f32.mxu0 0.0
    %2874 = vmatmul.mubr.f32.gmra.mxu0 %v2557
    %v2875 = vpop.f32.mrf.mxu0
    %v2876 = vadd.f32 0.0, %v2875
    %v2877 = vpop.f32.mrf.mxu0
    %2878 = vdwg.mxu0
    %v2879 = vadd.f32 %v2791, %v2876
    %s2880 = scalar_lea.vmem [#allocation22], 256
    %v2881 = vld [vmem:[%s2880] sm:$0xff]
    %v2882 = vld [vmem:[%s2880 + $0x8] sm:$0xff]
    %v2883 = vld [vmem:[%s2880 + $0x10] sm:$0xff]
    %v2884 = vld [vmem:[%s2880 + $0x18] sm:$0xff]
    %v2885 = vld [vmem:[%s2880 + $0x20] sm:$0xff]
    %v2886 = vld [vmem:[%s2880 + $0x28] sm:$0xff]
    %v2887 = vld [vmem:[%s2880 + $0x30] sm:$0xff]
    %v2888 = vld [vmem:[%s2880 + $0x38] sm:$0xff]
    %v2889 = vld [vmem:[%s2880 + $0x40] sm:$0xff]
    %v2890 = vld [vmem:[%s2880 + $0x48] sm:$0xff]
    %v2891 = vld [vmem:[%s2880 + $0x50] sm:$0xff]
    %v2892 = vld [vmem:[%s2880 + $0x58] sm:$0xff]
    %v2893 = vld [vmem:[%s2880 + $0x60] sm:$0xff]
    %v2894 = vld [vmem:[%s2880 + $0x68] sm:$0xff]
    %v2895 = vld [vmem:[%s2880 + $0x70] sm:$0xff]
    %v2896 = vld [vmem:[%s2880 + $0x78] sm:$0xff]
    %2897 = vmatprep.subr.mxu0 0.0
    %2898 = vmatpush1.msra.mxu0 %v2896
    %2899 = vmatprep.subr.mxu0 0.0
    %2900 = vmatpush1.msra.mxu0 %v2895
    %2901 = vmatprep.subr.mxu0 0.0
    %2902 = vmatpush1.msra.mxu0 %v2894
    %2903 = vmatprep.subr.mxu0 0.0
    %2904 = vmatpush1.msra.mxu0 %v2893
    %2905 = vmatprep.subr.mxu0 0.0
    %2906 = vmatpush1.msra.mxu0 %v2892
    %2907 = vmatprep.subr.mxu0 0.0
    %2908 = vmatpush1.msra.mxu0 %v2891
    %2909 = vmatprep.subr.mxu0 0.0
    %2910 = vmatpush1.msra.mxu0 %v2890
    %2911 = vmatprep.subr.mxu0 0.0
    %2912 = vmatpush1.msra.mxu0 %v2889
    %2913 = vmatprep.subr.mxu0 0.0
    %2914 = vmatpush1.msra.mxu0 %v2888
    %2915 = vmatprep.subr.mxu0 0.0
    %2916 = vmatpush1.msra.mxu0 %v2887
    %2917 = vmatprep.subr.mxu0 0.0
    %2918 = vmatpush1.msra.mxu0 %v2886
    %2919 = vmatprep.subr.mxu0 0.0
    %2920 = vmatpush1.msra.mxu0 %v2885
    %2921 = vmatprep.subr.mxu0 0.0
    %2922 = vmatpush1.msra.mxu0 %v2884
    %2923 = vmatprep.subr.mxu0 0.0
    %2924 = vmatpush1.msra.mxu0 %v2883
    %2925 = vmatprep.subr.mxu0 0.0
    %2926 = vmatpush1.msra.mxu0 %v2882
    %2927 = vmatprep.subr.mxu0 0.0
    %2928 = vmatpush1.msra.mxu0 %v2881
    %2929 = vmatprep.subr.mxu0 0.0
    %2930 = vmatpush2.msra.mxu0 0.0
    %2931 = vmatprep.subr.mxu0 0.0
    %2932 = vmatpush2.msra.mxu0 0.0
    %2933 = vmatprep.subr.mxu0 0.0
    %2934 = vmatpush2.msra.mxu0 0.0
    %2935 = vmatprep.subr.mxu0 0.0
    %2936 = vmatpush2.msra.mxu0 0.0
    %2937 = vmatprep.subr.mxu0 0.0
    %2938 = vmatpush2.msra.mxu0 0.0
    %2939 = vmatprep.subr.mxu0 0.0
    %2940 = vmatpush2.msra.mxu0 0.0
    %2941 = vmatprep.subr.mxu0 0.0
    %2942 = vmatpush2.msra.mxu0 0.0
    %2943 = vmatprep.subr.mxu0 0.0
    %2944 = vmatpush2.msra.mxu0 0.0
    %2945 = vmatprep.subr.mxu0 0.0
    %2946 = vmatpush2.msra.mxu0 0.0
    %2947 = vmatprep.subr.mxu0 0.0
    %2948 = vmatpush2.msra.mxu0 0.0
    %2949 = vmatprep.subr.mxu0 0.0
    %2950 = vmatpush2.msra.mxu0 0.0
    %2951 = vmatprep.subr.mxu0 0.0
    %2952 = vmatpush2.msra.mxu0 0.0
    %2953 = vmatprep.subr.mxu0 0.0
    %2954 = vmatpush2.msra.mxu0 0.0
    %2955 = vmatprep.subr.mxu0 0.0
    %2956 = vmatpush2.msra.mxu0 0.0
    %2957 = vmatprep.subr.mxu0 0.0
    %2958 = vmatpush2.msra.mxu0 0.0
    %2959 = vmatprep.subr.mxu0 0.0
    %2960 = vmatpush2.msra.mxu0 0.0
    %2961 = vmatprep.mubr.f32.mxu0 0.0
    %2962 = vmatmul.mubr.f32.gmra.mxu0 %v2696
    %v2963 = vpop.f32.mrf.mxu0
    %v2964 = vadd.f32 0.0, %v2963
    %v2965 = vpop.f32.mrf.mxu0
    %2966 = vdwg.mxu0
    %v2967 = vadd.f32 %v2879, %v2964
    %v2968 = vadd.f32 %v2967, %v2145
    %2969 = vst [vmem:[%s21] sm:$0xff] %v2968
    // Predicated region
    $region146: #{impala_residual_stack.1} parent=1 // pred_check
      _
    $region147: #{impala_residual_stack.1} parent=1 // pred_check_branch
      %2971 = sbr.rel (0) target = $region149
    $region148: #{impala_residual_stack.1} parent=1 // pred_region
      _
    $region149: #{impala_residual_stack.1} parent=1 // pred_fallthru
      _
    // Predicated region
    $region150: #{impala_residual_stack.1} parent=1 // pred_check
      _
    $region151: #{impala_residual_stack.1} parent=1 // pred_check_branch
      %2973 = sbr.rel (0) target = $region153
    $region152: #{impala_residual_stack.1} parent=1 // pred_region
      _
    $region153: #{impala_residual_stack.1} parent=1 // pred_fallthru
      _
    %2974 = vsyncpa [#allocation3], 1
    %2975 = vsyncpa [#allocation5], 1
    %2976 = vsyncpa [#allocation8], 1
    %2977 = vsyncpa [#allocation11], 1
    %2978 = vsyncpa [#allocation14], 1
    %2979 = vsyncpa [#allocation17], 1
    %2980 = vsyncpa [#allocation20], 1
    %2981 = vsyncpa [#allocation23], 1

</llo_original>
